<compile_context>
chip_gen: v7x
topology: tpu7x:2x2x1
jax: 0.10.0
libtpu: 0.0.40
codegen_flags: <defaults>
</compile_context>

<pallas_src>
import math
import functools

import jax
import jax.numpy as jnp
from jax import lax
from jax.experimental import pallas as pl
from jax.experimental.pallas import tpu as pltpu


VMEM_SPEC = pl.BlockSpec(memory_space=pltpu.MemorySpace.VMEM)
SMEM_SPEC = pl.BlockSpec(memory_space=pltpu.MemorySpace.SMEM)
RRELU_SLOPE = (1.0 / 8.0 + 1.0 / 3.0) / 2.0  # nn.RReLU eval-mode fixed slope


# ---------------------------------------------------------------------------
# Fused TGSAN kernel (whole forward, no grid)
# ---------------------------------------------------------------------------
def _build_tgsan_kernel(T, rows_list, n_hidden, num_layers):
    inv_sqrt_h = 1.0 / math.sqrt(n_hidden)
    slope = RRELU_SLOPE

    def kernel(*refs):
        # ------------------------ unpack refs -------------------------------
        a_ref, x_ref = refs[0], refs[1]
        idx = 2
        layer_refs = []
        for _ in range(num_layers):
            layer_refs.append(refs[idx:idx + 4])        # (W0, WU_stk, Uh, b_stk)
            idx += 4
        wq_ref, bq_ref, wk_ref, bk_ref, wv_ref, bv_ref = refs[idx:idx + 6]
        idx += 6
        gate_ref = refs[idx]                            # SMEM (1, 1)
        o_ref = refs[idx + 1]                           # output (N, H)
        ws_ref = refs[idx + 2]                          # VMEM scratch (T*max_r, H)

        gate = jax.nn.sigmoid(gate_ref[0, 0])
        feats = [x_ref[t] for t in range(T)]            # each (N, F_in), lives in VMEM

        for i in range(num_layers):
            w0_ref, wu_ref, uh_ref, b_ref = layer_refs[i]
            r = rows_list[i]

            # ---- MatGRUCell recurrence over T snapshots (serial, unrolled) --
            #      prev_Q == z_topk == W (reference calls the cell with 1 arg)
            wu = wu_ref[...]                             # (5r, r) = [Wu;Wr;Wh;Uu;Ur]
            uh = uh_ref[...]                             # (r, r)
            b = b_ref[...]                               # (3r, H) = [bu;br;bh]
            W = w0_ref[...]                              # (r, H)
            for t in range(T):
                wux = jnp.dot(wu, W, preferred_element_type=jnp.float32)   # (5r, H)
                upd = jax.nn.sigmoid(wux[0 * r:1 * r] + wux[3 * r:4 * r] + b[0 * r:1 * r])
                rst = jax.nn.sigmoid(wux[1 * r:2 * r] + wux[4 * r:5 * r] + b[1 * r:2 * r])
                h_cap = jnp.tanh(
                    wux[2 * r:3 * r]
                    + jnp.dot(uh, rst * W, preferred_element_type=jnp.float32)
                    + b[2 * r:3 * r])
                W = (1.0 - upd) * W + upd * h_cap
                ws_ref[t * r:(t + 1) * r, :] = W         # park snapshot in VMEM scratch

            # ---- GatedSelfAttention: project Q/K/V once for all T snapshots -
            ws_flat = ws_ref[0:T * r, :]                 # (T*r, H)
            q = jnp.dot(ws_flat, wq_ref[...], preferred_element_type=jnp.float32) + bq_ref[...]
            k = jnp.dot(ws_flat, wk_ref[...], preferred_element_type=jnp.float32) + bk_ref[...]
            v = jnp.dot(ws_flat, wv_ref[...], preferred_element_type=jnp.float32) + bv_ref[...]
            ws_att = []
            for t in range(T):                           # static unroll, T small
                lo, hi = t * r, (t + 1) * r
                qt, kt, vt = q[lo:hi], k[lo:hi], v[lo:hi]
                # q @ k.T via contracting last dims (no materialized transpose)
                s = lax.dot_general(qt, kt, (((1,), (1,)), ((), ())),
                                    preferred_element_type=jnp.float32) * inv_sqrt_h
                m = jnp.max(s, axis=-1, keepdims=True)
                p = jnp.exp(s - m)
                attn = p / jnp.sum(p, axis=-1, keepdims=True)
                out_t = jnp.dot(attn, vt, preferred_element_type=jnp.float32)
                ws_att.append(gate * out_t + (1.0 - gate) * ws_flat[lo:hi])

            # NOTE: the reference re-runs the GRU in its second per-graph loop,
            # but that state never reaches Ws_attended or the returned features
            # (dead compute) -> skipped.

            # ---- GraphConv per snapshot: rrelu(A_hat @ X @ W_att) -----------
            #      (norm='both' precomputed in A_hat, no bias)
            new_feats = []
            for t in range(T):
                xw = jnp.dot(feats[t], ws_att[t], preferred_element_type=jnp.float32)
                y = jnp.dot(a_ref[t], xw, preferred_element_type=jnp.float32)
                new_feats.append(jnp.where(y >= 0.0, y, y * slope))
            feats = new_feats

        o_ref[...] = feats[T - 1]

    return kernel


def tgsan_forward(a_hats, feats, params, num_layers):
    # a_hats: (T, N, N) normalized adjacencies; feats: (T, N, in_feats)
    T, N, _ = a_hats.shape
    n_hidden = params["gcn_weights"][0].shape[-1]
    rows_list = tuple(params["gcn_weights"][i].shape[0] for i in range(num_layers))

    kernel = _build_tgsan_kernel(T, rows_list, n_hidden, num_layers)

    args = [a_hats, feats]
    for i in range(num_layers):
        gp = params["gru"][i]
        args += [params["gcn_weights"][i], gp["WU_stk"], gp["Uh"], gp["b_stk"]]
    ap = params["attn"]
    args += [ap["wq_t"], ap["bq"], ap["wk_t"], ap["bk"], ap["wv_t"], ap["bv"], ap["gate"]]

    in_specs = [VMEM_SPEC] * (len(args) - 1) + [SMEM_SPEC]   # gate scalar in SMEM

    return pl.pallas_call(
        kernel,
        out_shape=jax.ShapeDtypeStruct((N, n_hidden), jnp.float32),
        in_specs=in_specs,
        out_specs=VMEM_SPEC,
        scratch_shapes=[pltpu.VMEM((T * max(rows_list), n_hidden), jnp.float32)],
    )(*args)


# ---------------------------------------------------------------------------
# Parameter construction (deterministic, synthetic)
# ---------------------------------------------------------------------------
def xavier_uniform(key, shape):
    fan_in, fan_out = shape[-2], shape[-1]
    bound = math.sqrt(6.0 / (fan_in + fan_out))
    return jax.random.uniform(key, shape, jnp.float32, -bound, bound)


def make_matgru_params(key, rows, cols):
    ks = jax.random.split(key, 6)
    Wu, Uu = xavier_uniform(ks[0], (rows, rows)), xavier_uniform(ks[1], (rows, rows))
    Wr, Ur = xavier_uniform(ks[2], (rows, rows)), xavier_uniform(ks[3], (rows, rows))
    Wh, Uh = xavier_uniform(ks[4], (rows, rows)), xavier_uniform(ks[5], (rows, rows))
    return {
        # single stacked operand -> one MXU push per GRU step for all gates
        "WU_stk": jnp.concatenate([Wu, Wr, Wh, Uu, Ur], axis=0),   # (5r, r)
        "Uh": Uh,                                                  # (r, r)
        "b_stk": jnp.zeros((3 * rows, cols), jnp.float32),         # [bu;br;bh], zero init
    }


def make_attn_params(key, hidden):
    ks = jax.random.split(key, 7)
    bound = 1.0 / math.sqrt(hidden)
    u = lambda k, s: jax.random.uniform(k, s, jnp.float32, -bound, bound)
    # Projection weights stored pre-transposed ((in, out) layout) so the kernel
    # computes x @ W_t with no in-kernel transpose.
    return {
        "wq_t": u(ks[0], (hidden, hidden)), "bq": u(ks[1], (1, hidden)),
        "wk_t": u(ks[2], (hidden, hidden)), "bk": u(ks[3], (1, hidden)),
        "wv_t": u(ks[4], (hidden, hidden)), "bv": u(ks[5], (1, hidden)),
        "gate": jax.random.normal(ks[6], (1, 1), jnp.float32),
    }


def make_tgsan_params(key, in_feats, n_hidden, num_layers):
    ks = jax.random.split(key, 2 * num_layers + 1)
    gcn_weights, gru_params = [], []
    rows = in_feats
    for i in range(num_layers):
        gcn_weights.append(xavier_uniform(ks[2 * i], (rows, n_hidden)))
        gru_params.append(make_matgru_params(ks[2 * i + 1], rows, n_hidden))
        rows = n_hidden
    attn = make_attn_params(ks[-1], n_hidden)   # single attention shared by layers (as in reference)
    return {"gcn_weights": gcn_weights, "gru": gru_params, "attn": attn}


def make_graph(key, n_nodes):
    a = (jax.random.uniform(key, (n_nodes, n_nodes)) < 0.5).astype(jnp.float32)
    a = jnp.maximum(a, a.T)
    a = a * (1.0 - jnp.eye(n_nodes, dtype=jnp.float32))     # no self loops (DGL default)
    deg = jnp.clip(jnp.sum(a, axis=1), 1.0, None)
    norm = deg ** -0.5
    return norm[:, None] * a * norm[None, :]                 # D^-1/2 A D^-1/2


if __name__ == "__main__":
    T, N, IN_FEATS, N_HIDDEN, NUM_LAYERS = 4, 8, 8, 16, 2

    root = jax.random.PRNGKey(0)
    k_params, k_graphs, k_feats = jax.random.split(root, 3)

    params = make_tgsan_params(k_params, IN_FEATS, N_HIDDEN, NUM_LAYERS)

    gkeys = jax.random.split(k_graphs, T)
    a_hats = jnp.stack([make_graph(gkeys[j], N) for j in range(T)], axis=0)   # (T, N, N)
    feats = jax.random.normal(k_feats, (T, N, IN_FEATS), jnp.float32)         # (T, N, F)

    fwd = jax.jit(functools.partial(tgsan_forward, num_layers=NUM_LAYERS))
    out = fwd(a_hats, feats, params)
    out = jax.block_until_ready(out)
    assert out.shape == (N, N_HIDDEN) and out.dtype == jnp.float32
    assert bool(jnp.all(jnp.isfinite(out)))
    print("KERNEL_OK")
</pallas_src>

<mosaic_0001>
module attributes {stable_mosaic.version = 11 : i64} {
  func.func @kernel(%arg0: memref<4x8x8xf32, #tpu.memory_space<vmem>>, %arg1: memref<4x8x8xf32, #tpu.memory_space<vmem>>, %arg2: memref<8x16xf32, #tpu.memory_space<vmem>>, %arg3: memref<40x8xf32, #tpu.memory_space<vmem>>, %arg4: memref<8x8xf32, #tpu.memory_space<vmem>>, %arg5: memref<24x16xf32, #tpu.memory_space<vmem>>, %arg6: memref<16x16xf32, #tpu.memory_space<vmem>>, %arg7: memref<80x16xf32, #tpu.memory_space<vmem>>, %arg8: memref<16x16xf32, #tpu.memory_space<vmem>>, %arg9: memref<48x16xf32, #tpu.memory_space<vmem>>, %arg10: memref<16x16xf32, #tpu.memory_space<vmem>>, %arg11: memref<1x16xf32, #tpu.memory_space<vmem>>, %arg12: memref<16x16xf32, #tpu.memory_space<vmem>>, %arg13: memref<1x16xf32, #tpu.memory_space<vmem>>, %arg14: memref<16x16xf32, #tpu.memory_space<vmem>>, %arg15: memref<1x16xf32, #tpu.memory_space<vmem>>, %arg16: memref<1x1xf32, #tpu.memory_space<smem>>, %arg17: memref<8x16xf32, #tpu.memory_space<vmem>>, %arg18: memref<64x16xf32, #tpu.memory_space<vmem>>) attributes {dimension_semantics = [], scalar_prefetch = 0 : i64, scratch_operands = 1 : i64, tpu.core_type = #tpu.core_type<tc>} {
    %c0 = arith.constant 0 : index
    %c0_0 = arith.constant 0 : index
    %0 = memref.load %arg16[%c0, %c0_0] : memref<1x1xf32, #tpu.memory_space<smem>>
    %1 = arith.negf %0 : f32
    %2 = math.exp %1 : f32
    %cst = arith.constant 1.000000e+00 : f32
    %3 = arith.addf %cst, %2 : f32
    %4 = arith.divf %cst, %3 : f32
    %c3 = arith.constant 3 : index
    %c0_1 = arith.constant 0 : index
    %c0_2 = arith.constant 0 : index
    %5 = vector.load %arg1[%c3, %c0_1, %c0_2] : memref<4x8x8xf32, #tpu.memory_space<vmem>>, vector<1x8x8xf32>
    %6 = vector.shape_cast %5 : vector<1x8x8xf32> to vector<8x8xf32>
    %c0_3 = arith.constant 0 : index
    %c0_4 = arith.constant 0 : index
    %7 = vector.load %arg3[%c0_3, %c0_4] : memref<40x8xf32, #tpu.memory_space<vmem>>, vector<40x8xf32>
    %c0_5 = arith.constant 0 : index
    %c0_6 = arith.constant 0 : index
    %8 = vector.load %arg4[%c0_5, %c0_6] : memref<8x8xf32, #tpu.memory_space<vmem>>, vector<8x8xf32>
    %c0_7 = arith.constant 0 : index
    %c0_8 = arith.constant 0 : index
    %9 = vector.load %arg5[%c0_7, %c0_8] : memref<24x16xf32, #tpu.memory_space<vmem>>, vector<24x16xf32>
    %c0_9 = arith.constant 0 : index
    %c0_10 = arith.constant 0 : index
    %10 = vector.load %arg2[%c0_9, %c0_10] : memref<8x16xf32, #tpu.memory_space<vmem>>, vector<8x16xf32>
    %cst_11 = arith.constant dense<0.000000e+00> : vector<40x16xf32>
    %11 = tpu.matmul %7, %10, %cst_11 {dimension_numbers = #tpu.dot_dimension_numbers<[1], [0], [0], [1], [0, 0, 1, 1], [], []>} : vector<40x8xf32>, vector<8x16xf32>, vector<40x16xf32> -> vector<40x16xf32>
    %12 = vector.extract_strided_slice %11 {offsets = [0, 0], sizes = [8, 16], strides = [1, 1]} : vector<40x16xf32> to vector<8x16xf32>
    %13 = vector.extract_strided_slice %11 {offsets = [24, 0], sizes = [8, 16], strides = [1, 1]} : vector<40x16xf32> to vector<8x16xf32>
    %14 = arith.addf %12, %13 : vector<8x16xf32>
    %15 = vector.extract_strided_slice %9 {offsets = [0, 0], sizes = [8, 16], strides = [1, 1]} : vector<24x16xf32> to vector<8x16xf32>
    %16 = arith.addf %14, %15 : vector<8x16xf32>
    %17 = arith.negf %16 : vector<8x16xf32>
    %18 = math.exp %17 : vector<8x16xf32>
    %cst_12 = arith.constant 1.000000e+00 : f32
    %19 = vector.broadcast %cst_12 : f32 to vector<8x16xf32>
    %20 = arith.addf %19, %18 : vector<8x16xf32>
    %21 = arith.divf %19, %20 : vector<8x16xf32>
    %22 = vector.extract_strided_slice %11 {offsets = [8, 0], sizes = [8, 16], strides = [1, 1]} : vector<40x16xf32> to vector<8x16xf32>
    %23 = vector.extract_strided_slice %11 {offsets = [32, 0], sizes = [8, 16], strides = [1, 1]} : vector<40x16xf32> to vector<8x16xf32>
    %24 = arith.addf %22, %23 : vector<8x16xf32>
    %25 = vector.extract_strided_slice %9 {offsets = [8, 0], sizes = [8, 16], strides = [1, 1]} : vector<24x16xf32> to vector<8x16xf32>
    %26 = arith.addf %24, %25 : vector<8x16xf32>
    %27 = arith.negf %26 : vector<8x16xf32>
    %28 = math.exp %27 : vector<8x16xf32>
    %cst_13 = arith.constant 1.000000e+00 : f32
    %29 = vector.broadcast %cst_13 : f32 to vector<8x16xf32>
    %30 = arith.addf %29, %28 : vector<8x16xf32>
    %31 = arith.divf %29, %30 : vector<8x16xf32>
    %32 = vector.extract_strided_slice %11 {offsets = [16, 0], sizes = [8, 16], strides = [1, 1]} : vector<40x16xf32> to vector<8x16xf32>
    %33 = arith.mulf %31, %10 : vector<8x16xf32>
    %cst_14 = arith.constant dense<0.000000e+00> : vector<8x16xf32>
    %34 = tpu.matmul %8, %33, %cst_14 {dimension_numbers = #tpu.dot_dimension_numbers<[1], [0], [0], [1], [0, 0, 1, 1], [], []>} : vector<8x8xf32>, vector<8x16xf32>, vector<8x16xf32> -> vector<8x16xf32>
    %35 = arith.addf %32, %34 : vector<8x16xf32>
    %36 = vector.extract_strided_slice %9 {offsets = [16, 0], sizes = [8, 16], strides = [1, 1]} : vector<24x16xf32> to vector<8x16xf32>
    %37 = arith.addf %35, %36 : vector<8x16xf32>
    %38 = math.tanh %37 : vector<8x16xf32>
    %cst_15 = arith.constant 1.000000e+00 : f32
    %39 = vector.broadcast %cst_15 : f32 to vector<8x16xf32>
    %40 = arith.subf %39, %21 : vector<8x16xf32>
    %41 = arith.mulf %40, %10 : vector<8x16xf32>
    %42 = arith.mulf %21, %38 : vector<8x16xf32>
    %43 = arith.addf %41, %42 : vector<8x16xf32>
    %c0_16 = arith.constant 0 : index
    %c0_17 = arith.constant 0 : index
    %44 = vector.load %arg18[%c0_16, %c0_17] : memref<64x16xf32, #tpu.memory_space<vmem>>, vector<8x16xf32>
    tpu.vector_store %arg18[%c0_16, %c0_17], %43 {strides = array<i32>} : memref<64x16xf32, #tpu.memory_space<vmem>>, vector<8x16xf32>,
    %cst_18 = arith.constant dense<0.000000e+00> : vector<40x16xf32>
    %45 = tpu.matmul %7, %43, %cst_18 {dimension_numbers = #tpu.dot_dimension_numbers<[1], [0], [0], [1], [0, 0, 1, 1], [], []>} : vector<40x8xf32>, vector<8x16xf32>, vector<40x16xf32> -> vector<40x16xf32>
    %46 = vector.extract_strided_slice %45 {offsets = [0, 0], sizes = [8, 16], strides = [1, 1]} : vector<40x16xf32> to vector<8x16xf32>
    %47 = vector.extract_strided_slice %45 {offsets = [24, 0], sizes = [8, 16], strides = [1, 1]} : vector<40x16xf32> to vector<8x16xf32>
    %48 = arith.addf %46, %47 : vector<8x16xf32>
    %49 = vector.extract_strided_slice %9 {offsets = [0, 0], sizes = [8, 16], strides = [1, 1]} : vector<24x16xf32> to vector<8x16xf32>
    %50 = arith.addf %48, %49 : vector<8x16xf32>
    %51 = arith.negf %50 : vector<8x16xf32>
    %52 = math.exp %51 : vector<8x16xf32>
    %cst_19 = arith.constant 1.000000e+00 : f32
    %53 = vector.broadcast %cst_19 : f32 to vector<8x16xf32>
    %54 = arith.addf %53, %52 : vector<8x16xf32>
    %55 = arith.divf %53, %54 : vector<8x16xf32>
    %56 = vector.extract_strided_slice %45 {offsets = [8, 0], sizes = [8, 16], strides = [1, 1]} : vector<40x16xf32> to vector<8x16xf32>
    %57 = vector.extract_strided_slice %45 {offsets = [32, 0], sizes = [8, 16], strides = [1, 1]} : vector<40x16xf32> to vector<8x16xf32>
    %58 = arith.addf %56, %57 : vector<8x16xf32>
    %59 = vector.extract_strided_slice %9 {offsets = [8, 0], sizes = [8, 16], strides = [1, 1]} : vector<24x16xf32> to vector<8x16xf32>
    %60 = arith.addf %58, %59 : vector<8x16xf32>
    %61 = arith.negf %60 : vector<8x16xf32>
    %62 = math.exp %61 : vector<8x16xf32>
    %cst_20 = arith.constant 1.000000e+00 : f32
    %63 = vector.broadcast %cst_20 : f32 to vector<8x16xf32>
    %64 = arith.addf %63, %62 : vector<8x16xf32>
    %65 = arith.divf %63, %64 : vector<8x16xf32>
    %66 = vector.extract_strided_slice %45 {offsets = [16, 0], sizes = [8, 16], strides = [1, 1]} : vector<40x16xf32> to vector<8x16xf32>
    %67 = arith.mulf %65, %43 : vector<8x16xf32>
    %cst_21 = arith.constant dense<0.000000e+00> : vector<8x16xf32>
    %68 = tpu.matmul %8, %67, %cst_21 {dimension_numbers = #tpu.dot_dimension_numbers<[1], [0], [0], [1], [0, 0, 1, 1], [], []>} : vector<8x8xf32>, vector<8x16xf32>, vector<8x16xf32> -> vector<8x16xf32>
    %69 = arith.addf %66, %68 : vector<8x16xf32>
    %70 = vector.extract_strided_slice %9 {offsets = [16, 0], sizes = [8, 16], strides = [1, 1]} : vector<24x16xf32> to vector<8x16xf32>
    %71 = arith.addf %69, %70 : vector<8x16xf32>
    %72 = math.tanh %71 : vector<8x16xf32>
    %cst_22 = arith.constant 1.000000e+00 : f32
    %73 = vector.broadcast %cst_22 : f32 to vector<8x16xf32>
    %74 = arith.subf %73, %55 : vector<8x16xf32>
    %75 = arith.mulf %74, %43 : vector<8x16xf32>
    %76 = arith.mulf %55, %72 : vector<8x16xf32>
    %77 = arith.addf %75, %76 : vector<8x16xf32>
    %c8 = arith.constant 8 : index
    %c0_23 = arith.constant 0 : index
    %78 = vector.load %arg18[%c8, %c0_23] : memref<64x16xf32, #tpu.memory_space<vmem>>, vector<8x16xf32>
    tpu.vector_store %arg18[%c8, %c0_23], %77 {strides = array<i32>} : memref<64x16xf32, #tpu.memory_space<vmem>>, vector<8x16xf32>,
    %cst_24 = arith.constant dense<0.000000e+00> : vector<40x16xf32>
    %79 = tpu.matmul %7, %77, %cst_24 {dimension_numbers = #tpu.dot_dimension_numbers<[1], [0], [0], [1], [0, 0, 1, 1], [], []>} : vector<40x8xf32>, vector<8x16xf32>, vector<40x16xf32> -> vector<40x16xf32>
    %80 = vector.extract_strided_slice %79 {offsets = [0, 0], sizes = [8, 16], strides = [1, 1]} : vector<40x16xf32> to vector<8x16xf32>
    %81 = vector.extract_strided_slice %79 {offsets = [24, 0], sizes = [8, 16], strides = [1, 1]} : vector<40x16xf32> to vector<8x16xf32>
    %82 = arith.addf %80, %81 : vector<8x16xf32>
    %83 = vector.extract_strided_slice %9 {offsets = [0, 0], sizes = [8, 16], strides = [1, 1]} : vector<24x16xf32> to vector<8x16xf32>
    %84 = arith.addf %82, %83 : vector<8x16xf32>
    %85 = arith.negf %84 : vector<8x16xf32>
    %86 = math.exp %85 : vector<8x16xf32>
    %cst_25 = arith.constant 1.000000e+00 : f32
    %87 = vector.broadcast %cst_25 : f32 to vector<8x16xf32>
    %88 = arith.addf %87, %86 : vector<8x16xf32>
    %89 = arith.divf %87, %88 : vector<8x16xf32>
    %90 = vector.extract_strided_slice %79 {offsets = [8, 0], sizes = [8, 16], strides = [1, 1]} : vector<40x16xf32> to vector<8x16xf32>
    %91 = vector.extract_strided_slice %79 {offsets = [32, 0], sizes = [8, 16], strides = [1, 1]} : vector<40x16xf32> to vector<8x16xf32>
    %92 = arith.addf %90, %91 : vector<8x16xf32>
    %93 = vector.extract_strided_slice %9 {offsets = [8, 0], sizes = [8, 16], strides = [1, 1]} : vector<24x16xf32> to vector<8x16xf32>
    %94 = arith.addf %92, %93 : vector<8x16xf32>
    %95 = arith.negf %94 : vector<8x16xf32>
    %96 = math.exp %95 : vector<8x16xf32>
    %cst_26 = arith.constant 1.000000e+00 : f32
    %97 = vector.broadcast %cst_26 : f32 to vector<8x16xf32>
    %98 = arith.addf %97, %96 : vector<8x16xf32>
    %99 = arith.divf %97, %98 : vector<8x16xf32>
    %100 = vector.extract_strided_slice %79 {offsets = [16, 0], sizes = [8, 16], strides = [1, 1]} : vector<40x16xf32> to vector<8x16xf32>
    %101 = arith.mulf %99, %77 : vector<8x16xf32>
    %cst_27 = arith.constant dense<0.000000e+00> : vector<8x16xf32>
    %102 = tpu.matmul %8, %101, %cst_27 {dimension_numbers = #tpu.dot_dimension_numbers<[1], [0], [0], [1], [0, 0, 1, 1], [], []>} : vector<8x8xf32>, vector<8x16xf32>, vector<8x16xf32> -> vector<8x16xf32>
    %103 = arith.addf %100, %102 : vector<8x16xf32>
    %104 = vector.extract_strided_slice %9 {offsets = [16, 0], sizes = [8, 16], strides = [1, 1]} : vector<24x16xf32> to vector<8x16xf32>
    %105 = arith.addf %103, %104 : vector<8x16xf32>
    %106 = math.tanh %105 : vector<8x16xf32>
    %cst_28 = arith.constant 1.000000e+00 : f32
    %107 = vector.broadcast %cst_28 : f32 to vector<8x16xf32>
    %108 = arith.subf %107, %89 : vector<8x16xf32>
    %109 = arith.mulf %108, %77 : vector<8x16xf32>
    %110 = arith.mulf %89, %106 : vector<8x16xf32>
    %111 = arith.addf %109, %110 : vector<8x16xf32>
    %c16 = arith.constant 16 : index
    %c0_29 = arith.constant 0 : index
    %112 = vector.load %arg18[%c16, %c0_29] : memref<64x16xf32, #tpu.memory_space<vmem>>, vector<8x16xf32>
    tpu.vector_store %arg18[%c16, %c0_29], %111 {strides = array<i32>} : memref<64x16xf32, #tpu.memory_space<vmem>>, vector<8x16xf32>,
    %cst_30 = arith.constant dense<0.000000e+00> : vector<40x16xf32>
    %113 = tpu.matmul %7, %111, %cst_30 {dimension_numbers = #tpu.dot_dimension_numbers<[1], [0], [0], [1], [0, 0, 1, 1], [], []>} : vector<40x8xf32>, vector<8x16xf32>, vector<40x16xf32> -> vector<40x16xf32>
    %114 = vector.extract_strided_slice %113 {offsets = [0, 0], sizes = [8, 16], strides = [1, 1]} : vector<40x16xf32> to vector<8x16xf32>
    %115 = vector.extract_strided_slice %113 {offsets = [24, 0], sizes = [8, 16], strides = [1, 1]} : vector<40x16xf32> to vector<8x16xf32>
    %116 = arith.addf %114, %115 : vector<8x16xf32>
    %117 = vector.extract_strided_slice %9 {offsets = [0, 0], sizes = [8, 16], strides = [1, 1]} : vector<24x16xf32> to vector<8x16xf32>
    %118 = arith.addf %116, %117 : vector<8x16xf32>
    %119 = arith.negf %118 : vector<8x16xf32>
    %120 = math.exp %119 : vector<8x16xf32>
    %cst_31 = arith.constant 1.000000e+00 : f32
    %121 = vector.broadcast %cst_31 : f32 to vector<8x16xf32>
    %122 = arith.addf %121, %120 : vector<8x16xf32>
    %123 = arith.divf %121, %122 : vector<8x16xf32>
    %124 = vector.extract_strided_slice %113 {offsets = [8, 0], sizes = [8, 16], strides = [1, 1]} : vector<40x16xf32> to vector<8x16xf32>
    %125 = vector.extract_strided_slice %113 {offsets = [32, 0], sizes = [8, 16], strides = [1, 1]} : vector<40x16xf32> to vector<8x16xf32>
    %126 = arith.addf %124, %125 : vector<8x16xf32>
    %127 = vector.extract_strided_slice %9 {offsets = [8, 0], sizes = [8, 16], strides = [1, 1]} : vector<24x16xf32> to vector<8x16xf32>
    %128 = arith.addf %126, %127 : vector<8x16xf32>
    %129 = arith.negf %128 : vector<8x16xf32>
    %130 = math.exp %129 : vector<8x16xf32>
    %cst_32 = arith.constant 1.000000e+00 : f32
    %131 = vector.broadcast %cst_32 : f32 to vector<8x16xf32>
    %132 = arith.addf %131, %130 : vector<8x16xf32>
    %133 = arith.divf %131, %132 : vector<8x16xf32>
    %134 = vector.extract_strided_slice %113 {offsets = [16, 0], sizes = [8, 16], strides = [1, 1]} : vector<40x16xf32> to vector<8x16xf32>
    %135 = arith.mulf %133, %111 : vector<8x16xf32>
    %cst_33 = arith.constant dense<0.000000e+00> : vector<8x16xf32>
    %136 = tpu.matmul %8, %135, %cst_33 {dimension_numbers = #tpu.dot_dimension_numbers<[1], [0], [0], [1], [0, 0, 1, 1], [], []>} : vector<8x8xf32>, vector<8x16xf32>, vector<8x16xf32> -> vector<8x16xf32>
    %137 = arith.addf %134, %136 : vector<8x16xf32>
    %138 = vector.extract_strided_slice %9 {offsets = [16, 0], sizes = [8, 16], strides = [1, 1]} : vector<24x16xf32> to vector<8x16xf32>
    %139 = arith.addf %137, %138 : vector<8x16xf32>
    %140 = math.tanh %139 : vector<8x16xf32>
    %cst_34 = arith.constant 1.000000e+00 : f32
    %141 = vector.broadcast %cst_34 : f32 to vector<8x16xf32>
    %142 = arith.subf %141, %123 : vector<8x16xf32>
    %143 = arith.mulf %142, %111 : vector<8x16xf32>
    %144 = arith.mulf %123, %140 : vector<8x16xf32>
    %145 = arith.addf %143, %144 : vector<8x16xf32>
    %c24 = arith.constant 24 : index
    %c0_35 = arith.constant 0 : index
    %146 = vector.load %arg18[%c24, %c0_35] : memref<64x16xf32, #tpu.memory_space<vmem>>, vector<8x16xf32>
    tpu.vector_store %arg18[%c24, %c0_35], %145 {strides = array<i32>} : memref<64x16xf32, #tpu.memory_space<vmem>>, vector<8x16xf32>,
    %c0_36 = arith.constant 0 : index
    %c0_37 = arith.constant 0 : index
    %147 = vector.load %arg18[%c0_36, %c0_37] : memref<64x16xf32, #tpu.memory_space<vmem>>, vector<32x16xf32>
    %c0_38 = arith.constant 0 : index
    %c0_39 = arith.constant 0 : index
    %148 = vector.load %arg10[%c0_38, %c0_39] : memref<16x16xf32, #tpu.memory_space<vmem>>, vector<16x16xf32>
    %cst_40 = arith.constant dense<0.000000e+00> : vector<32x16xf32>
    %149 = tpu.matmul %147, %148, %cst_40 {dimension_numbers = #tpu.dot_dimension_numbers<[1], [0], [0], [1], [0, 0, 1, 1], [], []>} : vector<32x16xf32>, vector<16x16xf32>, vector<32x16xf32> -> vector<32x16xf32>
    %c0_41 = arith.constant 0 : index
    %c0_42 = arith.constant 0 : index
    %150 = vector.load %arg11[%c0_41, %c0_42] : memref<1x16xf32, #tpu.memory_space<vmem>>, vector<1x16xf32>
    %151 = vector.broadcast %150 : vector<1x16xf32> to vector<32x16xf32>
    %152 = arith.addf %149, %151 : vector<32x16xf32>
    %c0_43 = arith.constant 0 : index
    %c0_44 = arith.constant 0 : index
    %153 = vector.load %arg12[%c0_43, %c0_44] : memref<16x16xf32, #tpu.memory_space<vmem>>, vector<16x16xf32>
    %cst_45 = arith.constant dense<0.000000e+00> : vector<32x16xf32>
    %154 = tpu.matmul %147, %153, %cst_45 {dimension_numbers = #tpu.dot_dimension_numbers<[1], [0], [0], [1], [0, 0, 1, 1], [], []>} : vector<32x16xf32>, vector<16x16xf32>, vector<32x16xf32> -> vector<32x16xf32>
    %c0_46 = arith.constant 0 : index
    %c0_47 = arith.constant 0 : index
    %155 = vector.load %arg13[%c0_46, %c0_47] : memref<1x16xf32, #tpu.memory_space<vmem>>, vector<1x16xf32>
    %156 = vector.broadcast %155 : vector<1x16xf32> to vector<32x16xf32>
    %157 = arith.addf %154, %156 : vector<32x16xf32>
    %c0_48 = arith.constant 0 : index
    %c0_49 = arith.constant 0 : index
    %158 = vector.load %arg14[%c0_48, %c0_49] : memref<16x16xf32, #tpu.memory_space<vmem>>, vector<16x16xf32>
    %cst_50 = arith.constant dense<0.000000e+00> : vector<32x16xf32>
    %159 = tpu.matmul %147, %158, %cst_50 {dimension_numbers = #tpu.dot_dimension_numbers<[1], [0], [0], [1], [0, 0, 1, 1], [], []>} : vector<32x16xf32>, vector<16x16xf32>, vector<32x16xf32> -> vector<32x16xf32>
    %c0_51 = arith.constant 0 : index
    %c0_52 = arith.constant 0 : index
    %160 = vector.load %arg15[%c0_51, %c0_52] : memref<1x16xf32, #tpu.memory_space<vmem>>, vector<1x16xf32>
    %161 = vector.broadcast %160 : vector<1x16xf32> to vector<32x16xf32>
    %162 = arith.addf %159, %161 : vector<32x16xf32>
    %163 = vector.extract_strided_slice %152 {offsets = [24, 0], sizes = [8, 16], strides = [1, 1]} : vector<32x16xf32> to vector<8x16xf32>
    %164 = vector.extract_strided_slice %157 {offsets = [24, 0], sizes = [8, 16], strides = [1, 1]} : vector<32x16xf32> to vector<8x16xf32>
    %165 = vector.extract_strided_slice %162 {offsets = [24, 0], sizes = [8, 16], strides = [1, 1]} : vector<32x16xf32> to vector<8x16xf32>
    %cst_53 = arith.constant dense<0.000000e+00> : vector<8x8xf32>
    %166 = tpu.matmul %163, %164, %cst_53 {dimension_numbers = #tpu.dot_dimension_numbers<[1], [1], [0], [0], [0, 0, 1, 0], [], []>} : vector<8x16xf32>, vector<8x16xf32>, vector<8x8xf32> -> vector<8x8xf32>
    %cst_54 = arith.constant 2.500000e-01 : f32
    %167 = vector.broadcast %cst_54 : f32 to vector<8x8xf32>
    %168 = arith.mulf %166, %167 : vector<8x8xf32>
    %cst_55 = arith.constant dense<0xFF800000> : vector<8xf32>
    %169 = vector.multi_reduction <maximumf>, %168, %cst_55 [1] : vector<8x8xf32> to vector<8xf32>
    %170 = vector.shape_cast %169 : vector<8xf32> to vector<8x1xf32>
    %171 = vector.broadcast %170 : vector<8x1xf32> to vector<8x8xf32>
    %172 = arith.subf %168, %171 : vector<8x8xf32>
    %173 = math.exp %172 : vector<8x8xf32>
    %cst_56 = arith.constant dense<0.000000e+00> : vector<8xf32>
    %174 = vector.multi_reduction <add>, %173, %cst_56 [1] : vector<8x8xf32> to vector<8xf32>
    %175 = vector.shape_cast %174 : vector<8xf32> to vector<8x1xf32>
    %176 = vector.broadcast %175 : vector<8x1xf32> to vector<8x8xf32>
    %177 = arith.divf %173, %176 : vector<8x8xf32>
    %cst_57 = arith.constant dense<0.000000e+00> : vector<8x16xf32>
    %178 = tpu.matmul %177, %165, %cst_57 {dimension_numbers = #tpu.dot_dimension_numbers<[1], [0], [0], [1], [0, 0, 1, 1], [], []>} : vector<8x8xf32>, vector<8x16xf32>, vector<8x16xf32> -> vector<8x16xf32>
    %179 = vector.broadcast %4 : f32 to vector<8x16xf32>
    %180 = arith.mulf %179, %178 : vector<8x16xf32>
    %cst_58 = arith.constant 1.000000e+00 : f32
    %181 = arith.subf %cst_58, %4 : f32
    %182 = vector.extract_strided_slice %147 {offsets = [24, 0], sizes = [8, 16], strides = [1, 1]} : vector<32x16xf32> to vector<8x16xf32>
    %183 = vector.broadcast %181 : f32 to vector<8x16xf32>
    %184 = arith.mulf %183, %182 : vector<8x16xf32>
    %185 = arith.addf %180, %184 : vector<8x16xf32>
    %cst_59 = arith.constant dense<0.000000e+00> : vector<8x16xf32>
    %186 = tpu.matmul %6, %185, %cst_59 {dimension_numbers = #tpu.dot_dimension_numbers<[1], [0], [0], [1], [0, 0, 1, 1], [], []>} : vector<8x8xf32>, vector<8x16xf32>, vector<8x16xf32> -> vector<8x16xf32>
    %c3_60 = arith.constant 3 : index
    %c0_61 = arith.constant 0 : index
    %c0_62 = arith.constant 0 : index
    %187 = vector.load %arg0[%c3_60, %c0_61, %c0_62] : memref<4x8x8xf32, #tpu.memory_space<vmem>>, vector<1x8x8xf32>
    %188 = vector.shape_cast %187 : vector<1x8x8xf32> to vector<8x8xf32>
    %cst_63 = arith.constant dense<0.000000e+00> : vector<8x16xf32>
    %189 = tpu.matmul %188, %186, %cst_63 {dimension_numbers = #tpu.dot_dimension_numbers<[1], [0], [0], [1], [0, 0, 1, 1], [], []>} : vector<8x8xf32>, vector<8x16xf32>, vector<8x16xf32> -> vector<8x16xf32>
    %cst_64 = arith.constant 0.000000e+00 : f32
    %190 = vector.broadcast %cst_64 : f32 to vector<8x16xf32>
    %191 = arith.cmpf oge, %189, %190 : vector<8x16xf32>
    %cst_65 = arith.constant 0.229166672 : f32
    %192 = vector.broadcast %cst_65 : f32 to vector<8x16xf32>
    %193 = arith.mulf %189, %192 : vector<8x16xf32>
    %194 = arith.select %191, %189, %193 : vector<8x16xi1>, vector<8x16xf32>
    %c0_66 = arith.constant 0 : index
    %c0_67 = arith.constant 0 : index
    %195 = vector.load %arg7[%c0_66, %c0_67] : memref<80x16xf32, #tpu.memory_space<vmem>>, vector<80x16xf32>
    %c0_68 = arith.constant 0 : index
    %c0_69 = arith.constant 0 : index
    %196 = vector.load %arg8[%c0_68, %c0_69] : memref<16x16xf32, #tpu.memory_space<vmem>>, vector<16x16xf32>
    %c0_70 = arith.constant 0 : index
    %c0_71 = arith.constant 0 : index
    %197 = vector.load %arg9[%c0_70, %c0_71] : memref<48x16xf32, #tpu.memory_space<vmem>>, vector<48x16xf32>
    %c0_72 = arith.constant 0 : index
    %c0_73 = arith.constant 0 : index
    %198 = vector.load %arg6[%c0_72, %c0_73] : memref<16x16xf32, #tpu.memory_space<vmem>>, vector<16x16xf32>
    %cst_74 = arith.constant dense<0.000000e+00> : vector<80x16xf32>
    %199 = tpu.matmul %195, %198, %cst_74 {dimension_numbers = #tpu.dot_dimension_numbers<[1], [0], [0], [1], [0, 0, 1, 1], [], []>} : vector<80x16xf32>, vector<16x16xf32>, vector<80x16xf32> -> vector<80x16xf32>
    %200 = vector.extract_strided_slice %199 {offsets = [0, 0], sizes = [16, 16], strides = [1, 1]} : vector<80x16xf32> to vector<16x16xf32>
    %201 = vector.extract_strided_slice %199 {offsets = [48, 0], sizes = [16, 16], strides = [1, 1]} : vector<80x16xf32> to vector<16x16xf32>
    %202 = arith.addf %200, %201 : vector<16x16xf32>
    %203 = vector.extract_strided_slice %197 {offsets = [0, 0], sizes = [16, 16], strides = [1, 1]} : vector<48x16xf32> to vector<16x16xf32>
    %204 = arith.addf %202, %203 : vector<16x16xf32>
    %205 = arith.negf %204 : vector<16x16xf32>
    %206 = math.exp %205 : vector<16x16xf32>
    %cst_75 = arith.constant 1.000000e+00 : f32
    %207 = vector.broadcast %cst_75 : f32 to vector<16x16xf32>
    %208 = arith.addf %207, %206 : vector<16x16xf32>
    %209 = arith.divf %207, %208 : vector<16x16xf32>
    %210 = vector.extract_strided_slice %199 {offsets = [16, 0], sizes = [16, 16], strides = [1, 1]} : vector<80x16xf32> to vector<16x16xf32>
    %211 = vector.extract_strided_slice %199 {offsets = [64, 0], sizes = [16, 16], strides = [1, 1]} : vector<80x16xf32> to vector<16x16xf32>
    %212 = arith.addf %210, %211 : vector<16x16xf32>
    %213 = vector.extract_strided_slice %197 {offsets = [16, 0], sizes = [16, 16], strides = [1, 1]} : vector<48x16xf32> to vector<16x16xf32>
    %214 = arith.addf %212, %213 : vector<16x16xf32>
    %215 = arith.negf %214 : vector<16x16xf32>
    %216 = math.exp %215 : vector<16x16xf32>
    %cst_76 = arith.constant 1.000000e+00 : f32
    %217 = vector.broadcast %cst_76 : f32 to vector<16x16xf32>
    %218 = arith.addf %217, %216 : vector<16x16xf32>
    %219 = arith.divf %217, %218 : vector<16x16xf32>
    %220 = vector.extract_strided_slice %199 {offsets = [32, 0], sizes = [16, 16], strides = [1, 1]} : vector<80x16xf32> to vector<16x16xf32>
    %221 = arith.mulf %219, %198 : vector<16x16xf32>
    %cst_77 = arith.constant dense<0.000000e+00> : vector<16x16xf32>
    %222 = tpu.matmul %196, %221, %cst_77 {dimension_numbers = #tpu.dot_dimension_numbers<[1], [0], [0], [1], [0, 0, 1, 1], [], []>} : vector<16x16xf32>, vector<16x16xf32>, vector<16x16xf32> -> vector<16x16xf32>
    %223 = arith.addf %220, %222 : vector<16x16xf32>
    %224 = vector.extract_strided_slice %197 {offsets = [32, 0], sizes = [16, 16], strides = [1, 1]} : vector<48x16xf32> to vector<16x16xf32>
    %225 = arith.addf %223, %224 : vector<16x16xf32>
    %226 = math.tanh %225 : vector<16x16xf32>
    %cst_78 = arith.constant 1.000000e+00 : f32
    %227 = vector.broadcast %cst_78 : f32 to vector<16x16xf32>
    %228 = arith.subf %227, %209 : vector<16x16xf32>
    %229 = arith.mulf %228, %198 : vector<16x16xf32>
    %230 = arith.mulf %209, %226 : vector<16x16xf32>
    %231 = arith.addf %229, %230 : vector<16x16xf32>
    %c0_79 = arith.constant 0 : index
    %c0_80 = arith.constant 0 : index
    %232 = vector.load %arg18[%c0_79, %c0_80] : memref<64x16xf32, #tpu.memory_space<vmem>>, vector<16x16xf32>
    tpu.vector_store %arg18[%c0_79, %c0_80], %231 {strides = array<i32>} : memref<64x16xf32, #tpu.memory_space<vmem>>, vector<16x16xf32>,
    %cst_81 = arith.constant dense<0.000000e+00> : vector<80x16xf32>
    %233 = tpu.matmul %195, %231, %cst_81 {dimension_numbers = #tpu.dot_dimension_numbers<[1], [0], [0], [1], [0, 0, 1, 1], [], []>} : vector<80x16xf32>, vector<16x16xf32>, vector<80x16xf32> -> vector<80x16xf32>
    %234 = vector.extract_strided_slice %233 {offsets = [0, 0], sizes = [16, 16], strides = [1, 1]} : vector<80x16xf32> to vector<16x16xf32>
    %235 = vector.extract_strided_slice %233 {offsets = [48, 0], sizes = [16, 16], strides = [1, 1]} : vector<80x16xf32> to vector<16x16xf32>
    %236 = arith.addf %234, %235 : vector<16x16xf32>
    %237 = vector.extract_strided_slice %197 {offsets = [0, 0], sizes = [16, 16], strides = [1, 1]} : vector<48x16xf32> to vector<16x16xf32>
    %238 = arith.addf %236, %237 : vector<16x16xf32>
    %239 = arith.negf %238 : vector<16x16xf32>
    %240 = math.exp %239 : vector<16x16xf32>
    %cst_82 = arith.constant 1.000000e+00 : f32
    %241 = vector.broadcast %cst_82 : f32 to vector<16x16xf32>
    %242 = arith.addf %241, %240 : vector<16x16xf32>
    %243 = arith.divf %241, %242 : vector<16x16xf32>
    %244 = vector.extract_strided_slice %233 {offsets = [16, 0], sizes = [16, 16], strides = [1, 1]} : vector<80x16xf32> to vector<16x16xf32>
    %245 = vector.extract_strided_slice %233 {offsets = [64, 0], sizes = [16, 16], strides = [1, 1]} : vector<80x16xf32> to vector<16x16xf32>
    %246 = arith.addf %244, %245 : vector<16x16xf32>
    %247 = vector.extract_strided_slice %197 {offsets = [16, 0], sizes = [16, 16], strides = [1, 1]} : vector<48x16xf32> to vector<16x16xf32>
    %248 = arith.addf %246, %247 : vector<16x16xf32>
    %249 = arith.negf %248 : vector<16x16xf32>
    %250 = math.exp %249 : vector<16x16xf32>
    %cst_83 = arith.constant 1.000000e+00 : f32
    %251 = vector.broadcast %cst_83 : f32 to vector<16x16xf32>
    %252 = arith.addf %251, %250 : vector<16x16xf32>
    %253 = arith.divf %251, %252 : vector<16x16xf32>
    %254 = vector.extract_strided_slice %233 {offsets = [32, 0], sizes = [16, 16], strides = [1, 1]} : vector<80x16xf32> to vector<16x16xf32>
    %255 = arith.mulf %253, %231 : vector<16x16xf32>
    %cst_84 = arith.constant dense<0.000000e+00> : vector<16x16xf32>
    %256 = tpu.matmul %196, %255, %cst_84 {dimension_numbers = #tpu.dot_dimension_numbers<[1], [0], [0], [1], [0, 0, 1, 1], [], []>} : vector<16x16xf32>, vector<16x16xf32>, vector<16x16xf32> -> vector<16x16xf32>
    %257 = arith.addf %254, %256 : vector<16x16xf32>
    %258 = vector.extract_strided_slice %197 {offsets = [32, 0], sizes = [16, 16], strides = [1, 1]} : vector<48x16xf32> to vector<16x16xf32>
    %259 = arith.addf %257, %258 : vector<16x16xf32>
    %260 = math.tanh %259 : vector<16x16xf32>
    %cst_85 = arith.constant 1.000000e+00 : f32
    %261 = vector.broadcast %cst_85 : f32 to vector<16x16xf32>
    %262 = arith.subf %261, %243 : vector<16x16xf32>
    %263 = arith.mulf %262, %231 : vector<16x16xf32>
    %264 = arith.mulf %243, %260 : vector<16x16xf32>
    %265 = arith.addf %263, %264 : vector<16x16xf32>
    %c16_86 = arith.constant 16 : index
    %c0_87 = arith.constant 0 : index
    %266 = vector.load %arg18[%c16_86, %c0_87] : memref<64x16xf32, #tpu.memory_space<vmem>>, vector<16x16xf32>
    tpu.vector_store %arg18[%c16_86, %c0_87], %265 {strides = array<i32>} : memref<64x16xf32, #tpu.memory_space<vmem>>, vector<16x16xf32>,
    %cst_88 = arith.constant dense<0.000000e+00> : vector<80x16xf32>
    %267 = tpu.matmul %195, %265, %cst_88 {dimension_numbers = #tpu.dot_dimension_numbers<[1], [0], [0], [1], [0, 0, 1, 1], [], []>} : vector<80x16xf32>, vector<16x16xf32>, vector<80x16xf32> -> vector<80x16xf32>
    %268 = vector.extract_strided_slice %267 {offsets = [0, 0], sizes = [16, 16], strides = [1, 1]} : vector<80x16xf32> to vector<16x16xf32>
    %269 = vector.extract_strided_slice %267 {offsets = [48, 0], sizes = [16, 16], strides = [1, 1]} : vector<80x16xf32> to vector<16x16xf32>
    %270 = arith.addf %268, %269 : vector<16x16xf32>
    %271 = vector.extract_strided_slice %197 {offsets = [0, 0], sizes = [16, 16], strides = [1, 1]} : vector<48x16xf32> to vector<16x16xf32>
    %272 = arith.addf %270, %271 : vector<16x16xf32>
    %273 = arith.negf %272 : vector<16x16xf32>
    %274 = math.exp %273 : vector<16x16xf32>
    %cst_89 = arith.constant 1.000000e+00 : f32
    %275 = vector.broadcast %cst_89 : f32 to vector<16x16xf32>
    %276 = arith.addf %275, %274 : vector<16x16xf32>
    %277 = arith.divf %275, %276 : vector<16x16xf32>
    %278 = vector.extract_strided_slice %267 {offsets = [16, 0], sizes = [16, 16], strides = [1, 1]} : vector<80x16xf32> to vector<16x16xf32>
    %279 = vector.extract_strided_slice %267 {offsets = [64, 0], sizes = [16, 16], strides = [1, 1]} : vector<80x16xf32> to vector<16x16xf32>
    %280 = arith.addf %278, %279 : vector<16x16xf32>
    %281 = vector.extract_strided_slice %197 {offsets = [16, 0], sizes = [16, 16], strides = [1, 1]} : vector<48x16xf32> to vector<16x16xf32>
    %282 = arith.addf %280, %281 : vector<16x16xf32>
    %283 = arith.negf %282 : vector<16x16xf32>
    %284 = math.exp %283 : vector<16x16xf32>
    %cst_90 = arith.constant 1.000000e+00 : f32
    %285 = vector.broadcast %cst_90 : f32 to vector<16x16xf32>
    %286 = arith.addf %285, %284 : vector<16x16xf32>
    %287 = arith.divf %285, %286 : vector<16x16xf32>
    %288 = vector.extract_strided_slice %267 {offsets = [32, 0], sizes = [16, 16], strides = [1, 1]} : vector<80x16xf32> to vector<16x16xf32>
    %289 = arith.mulf %287, %265 : vector<16x16xf32>
    %cst_91 = arith.constant dense<0.000000e+00> : vector<16x16xf32>
    %290 = tpu.matmul %196, %289, %cst_91 {dimension_numbers = #tpu.dot_dimension_numbers<[1], [0], [0], [1], [0, 0, 1, 1], [], []>} : vector<16x16xf32>, vector<16x16xf32>, vector<16x16xf32> -> vector<16x16xf32>
    %291 = arith.addf %288, %290 : vector<16x16xf32>
    %292 = vector.extract_strided_slice %197 {offsets = [32, 0], sizes = [16, 16], strides = [1, 1]} : vector<48x16xf32> to vector<16x16xf32>
    %293 = arith.addf %291, %292 : vector<16x16xf32>
    %294 = math.tanh %293 : vector<16x16xf32>
    %cst_92 = arith.constant 1.000000e+00 : f32
    %295 = vector.broadcast %cst_92 : f32 to vector<16x16xf32>
    %296 = arith.subf %295, %277 : vector<16x16xf32>
    %297 = arith.mulf %296, %265 : vector<16x16xf32>
    %298 = arith.mulf %277, %294 : vector<16x16xf32>
    %299 = arith.addf %297, %298 : vector<16x16xf32>
    %c32 = arith.constant 32 : index
    %c0_93 = arith.constant 0 : index
    %300 = vector.load %arg18[%c32, %c0_93] : memref<64x16xf32, #tpu.memory_space<vmem>>, vector<16x16xf32>
    tpu.vector_store %arg18[%c32, %c0_93], %299 {strides = array<i32>} : memref<64x16xf32, #tpu.memory_space<vmem>>, vector<16x16xf32>,
    %cst_94 = arith.constant dense<0.000000e+00> : vector<80x16xf32>
    %301 = tpu.matmul %195, %299, %cst_94 {dimension_numbers = #tpu.dot_dimension_numbers<[1], [0], [0], [1], [0, 0, 1, 1], [], []>} : vector<80x16xf32>, vector<16x16xf32>, vector<80x16xf32> -> vector<80x16xf32>
    %302 = vector.extract_strided_slice %301 {offsets = [0, 0], sizes = [16, 16], strides = [1, 1]} : vector<80x16xf32> to vector<16x16xf32>
    %303 = vector.extract_strided_slice %301 {offsets = [48, 0], sizes = [16, 16], strides = [1, 1]} : vector<80x16xf32> to vector<16x16xf32>
    %304 = arith.addf %302, %303 : vector<16x16xf32>
    %305 = vector.extract_strided_slice %197 {offsets = [0, 0], sizes = [16, 16], strides = [1, 1]} : vector<48x16xf32> to vector<16x16xf32>
    %306 = arith.addf %304, %305 : vector<16x16xf32>
    %307 = arith.negf %306 : vector<16x16xf32>
    %308 = math.exp %307 : vector<16x16xf32>
    %cst_95 = arith.constant 1.000000e+00 : f32
    %309 = vector.broadcast %cst_95 : f32 to vector<16x16xf32>
    %310 = arith.addf %309, %308 : vector<16x16xf32>
    %311 = arith.divf %309, %310 : vector<16x16xf32>
    %312 = vector.extract_strided_slice %301 {offsets = [16, 0], sizes = [16, 16], strides = [1, 1]} : vector<80x16xf32> to vector<16x16xf32>
    %313 = vector.extract_strided_slice %301 {offsets = [64, 0], sizes = [16, 16], strides = [1, 1]} : vector<80x16xf32> to vector<16x16xf32>
    %314 = arith.addf %312, %313 : vector<16x16xf32>
    %315 = vector.extract_strided_slice %197 {offsets = [16, 0], sizes = [16, 16], strides = [1, 1]} : vector<48x16xf32> to vector<16x16xf32>
    %316 = arith.addf %314, %315 : vector<16x16xf32>
    %317 = arith.negf %316 : vector<16x16xf32>
    %318 = math.exp %317 : vector<16x16xf32>
    %cst_96 = arith.constant 1.000000e+00 : f32
    %319 = vector.broadcast %cst_96 : f32 to vector<16x16xf32>
    %320 = arith.addf %319, %318 : vector<16x16xf32>
    %321 = arith.divf %319, %320 : vector<16x16xf32>
    %322 = vector.extract_strided_slice %301 {offsets = [32, 0], sizes = [16, 16], strides = [1, 1]} : vector<80x16xf32> to vector<16x16xf32>
    %323 = arith.mulf %321, %299 : vector<16x16xf32>
    %cst_97 = arith.constant dense<0.000000e+00> : vector<16x16xf32>
    %324 = tpu.matmul %196, %323, %cst_97 {dimension_numbers = #tpu.dot_dimension_numbers<[1], [0], [0], [1], [0, 0, 1, 1], [], []>} : vector<16x16xf32>, vector<16x16xf32>, vector<16x16xf32> -> vector<16x16xf32>
    %325 = arith.addf %322, %324 : vector<16x16xf32>
    %326 = vector.extract_strided_slice %197 {offsets = [32, 0], sizes = [16, 16], strides = [1, 1]} : vector<48x16xf32> to vector<16x16xf32>
    %327 = arith.addf %325, %326 : vector<16x16xf32>
    %328 = math.tanh %327 : vector<16x16xf32>
    %cst_98 = arith.constant 1.000000e+00 : f32
    %329 = vector.broadcast %cst_98 : f32 to vector<16x16xf32>
    %330 = arith.subf %329, %311 : vector<16x16xf32>
    %331 = arith.mulf %330, %299 : vector<16x16xf32>
    %332 = arith.mulf %311, %328 : vector<16x16xf32>
    %333 = arith.addf %331, %332 : vector<16x16xf32>
    %c48 = arith.constant 48 : index
    %c0_99 = arith.constant 0 : index
    %334 = vector.load %arg18[%c48, %c0_99] : memref<64x16xf32, #tpu.memory_space<vmem>>, vector<16x16xf32>
    tpu.vector_store %arg18[%c48, %c0_99], %333 {strides = array<i32>} : memref<64x16xf32, #tpu.memory_space<vmem>>, vector<16x16xf32>,
    %c0_100 = arith.constant 0 : index
    %c0_101 = arith.constant 0 : index
    %335 = vector.load %arg18[%c0_100, %c0_101] : memref<64x16xf32, #tpu.memory_space<vmem>>, vector<64x16xf32>
    %c0_102 = arith.constant 0 : index
    %c0_103 = arith.constant 0 : index
    %336 = vector.load %arg10[%c0_102, %c0_103] : memref<16x16xf32, #tpu.memory_space<vmem>>, vector<16x16xf32>
    %cst_104 = arith.constant dense<0.000000e+00> : vector<64x16xf32>
    %337 = tpu.matmul %335, %336, %cst_104 {dimension_numbers = #tpu.dot_dimension_numbers<[1], [0], [0], [1], [0, 0, 1, 1], [], []>} : vector<64x16xf32>, vector<16x16xf32>, vector<64x16xf32> -> vector<64x16xf32>
    %c0_105 = arith.constant 0 : index
    %c0_106 = arith.constant 0 : index
    %338 = vector.load %arg11[%c0_105, %c0_106] : memref<1x16xf32, #tpu.memory_space<vmem>>, vector<1x16xf32>
    %339 = vector.broadcast %338 : vector<1x16xf32> to vector<64x16xf32>
    %340 = arith.addf %337, %339 : vector<64x16xf32>
    %c0_107 = arith.constant 0 : index
    %c0_108 = arith.constant 0 : index
    %341 = vector.load %arg12[%c0_107, %c0_108] : memref<16x16xf32, #tpu.memory_space<vmem>>, vector<16x16xf32>
    %cst_109 = arith.constant dense<0.000000e+00> : vector<64x16xf32>
    %342 = tpu.matmul %335, %341, %cst_109 {dimension_numbers = #tpu.dot_dimension_numbers<[1], [0], [0], [1], [0, 0, 1, 1], [], []>} : vector<64x16xf32>, vector<16x16xf32>, vector<64x16xf32> -> vector<64x16xf32>
    %c0_110 = arith.constant 0 : index
    %c0_111 = arith.constant 0 : index
    %343 = vector.load %arg13[%c0_110, %c0_111] : memref<1x16xf32, #tpu.memory_space<vmem>>, vector<1x16xf32>
    %344 = vector.broadcast %343 : vector<1x16xf32> to vector<64x16xf32>
    %345 = arith.addf %342, %344 : vector<64x16xf32>
    %c0_112 = arith.constant 0 : index
    %c0_113 = arith.constant 0 : index
    %346 = vector.load %arg14[%c0_112, %c0_113] : memref<16x16xf32, #tpu.memory_space<vmem>>, vector<16x16xf32>
    %cst_114 = arith.constant dense<0.000000e+00> : vector<64x16xf32>
    %347 = tpu.matmul %335, %346, %cst_114 {dimension_numbers = #tpu.dot_dimension_numbers<[1], [0], [0], [1], [0, 0, 1, 1], [], []>} : vector<64x16xf32>, vector<16x16xf32>, vector<64x16xf32> -> vector<64x16xf32>
    %c0_115 = arith.constant 0 : index
    %c0_116 = arith.constant 0 : index
    %348 = vector.load %arg15[%c0_115, %c0_116] : memref<1x16xf32, #tpu.memory_space<vmem>>, vector<1x16xf32>
    %349 = vector.broadcast %348 : vector<1x16xf32> to vector<64x16xf32>
    %350 = arith.addf %347, %349 : vector<64x16xf32>
    %351 = vector.extract_strided_slice %340 {offsets = [48, 0], sizes = [16, 16], strides = [1, 1]} : vector<64x16xf32> to vector<16x16xf32>
    %352 = vector.extract_strided_slice %345 {offsets = [48, 0], sizes = [16, 16], strides = [1, 1]} : vector<64x16xf32> to vector<16x16xf32>
    %353 = vector.extract_strided_slice %350 {offsets = [48, 0], sizes = [16, 16], strides = [1, 1]} : vector<64x16xf32> to vector<16x16xf32>
    %cst_117 = arith.constant dense<0.000000e+00> : vector<16x16xf32>
    %354 = tpu.matmul %351, %352, %cst_117 {dimension_numbers = #tpu.dot_dimension_numbers<[1], [1], [0], [0], [0, 0, 1, 0], [], []>} : vector<16x16xf32>, vector<16x16xf32>, vector<16x16xf32> -> vector<16x16xf32>
    %cst_118 = arith.constant 2.500000e-01 : f32
    %355 = vector.broadcast %cst_118 : f32 to vector<16x16xf32>
    %356 = arith.mulf %354, %355 : vector<16x16xf32>
    %cst_119 = arith.constant dense<0xFF800000> : vector<16xf32>
    %357 = vector.multi_reduction <maximumf>, %356, %cst_119 [1] : vector<16x16xf32> to vector<16xf32>
    %358 = vector.shape_cast %357 : vector<16xf32> to vector<16x1xf32>
    %359 = vector.broadcast %358 : vector<16x1xf32> to vector<16x16xf32>
    %360 = arith.subf %356, %359 : vector<16x16xf32>
    %361 = math.exp %360 : vector<16x16xf32>
    %cst_120 = arith.constant dense<0.000000e+00> : vector<16xf32>
    %362 = vector.multi_reduction <add>, %361, %cst_120 [1] : vector<16x16xf32> to vector<16xf32>
    %363 = vector.shape_cast %362 : vector<16xf32> to vector<16x1xf32>
    %364 = vector.broadcast %363 : vector<16x1xf32> to vector<16x16xf32>
    %365 = arith.divf %361, %364 : vector<16x16xf32>
    %cst_121 = arith.constant dense<0.000000e+00> : vector<16x16xf32>
    %366 = tpu.matmul %365, %353, %cst_121 {dimension_numbers = #tpu.dot_dimension_numbers<[1], [0], [0], [1], [0, 0, 1, 1], [], []>} : vector<16x16xf32>, vector<16x16xf32>, vector<16x16xf32> -> vector<16x16xf32>
    %367 = vector.broadcast %4 : f32 to vector<16x16xf32>
    %368 = arith.mulf %367, %366 : vector<16x16xf32>
    %cst_122 = arith.constant 1.000000e+00 : f32
    %369 = arith.subf %cst_122, %4 : f32
    %370 = vector.extract_strided_slice %335 {offsets = [48, 0], sizes = [16, 16], strides = [1, 1]} : vector<64x16xf32> to vector<16x16xf32>
    %371 = vector.broadcast %369 : f32 to vector<16x16xf32>
    %372 = arith.mulf %371, %370 : vector<16x16xf32>
    %373 = arith.addf %368, %372 : vector<16x16xf32>
    %cst_123 = arith.constant dense<0.000000e+00> : vector<8x16xf32>
    %374 = tpu.matmul %194, %373, %cst_123 {dimension_numbers = #tpu.dot_dimension_numbers<[1], [0], [0], [1], [0, 0, 1, 1], [], []>} : vector<8x16xf32>, vector<16x16xf32>, vector<8x16xf32> -> vector<8x16xf32>
    %c3_124 = arith.constant 3 : index
    %c0_125 = arith.constant 0 : index
    %c0_126 = arith.constant 0 : index
    %375 = vector.load %arg0[%c3_124, %c0_125, %c0_126] : memref<4x8x8xf32, #tpu.memory_space<vmem>>, vector<1x8x8xf32>
    %376 = vector.shape_cast %375 : vector<1x8x8xf32> to vector<8x8xf32>
    %cst_127 = arith.constant dense<0.000000e+00> : vector<8x16xf32>
    %377 = tpu.matmul %376, %374, %cst_127 {dimension_numbers = #tpu.dot_dimension_numbers<[1], [0], [0], [1], [0, 0, 1, 1], [], []>} : vector<8x8xf32>, vector<8x16xf32>, vector<8x16xf32> -> vector<8x16xf32>
    %cst_128 = arith.constant 0.000000e+00 : f32
    %378 = vector.broadcast %cst_128 : f32 to vector<8x16xf32>
    %379 = arith.cmpf oge, %377, %378 : vector<8x16xf32>
    %cst_129 = arith.constant 0.229166672 : f32
    %380 = vector.broadcast %cst_129 : f32 to vector<8x16xf32>
    %381 = arith.mulf %377, %380 : vector<8x16xf32>
    %382 = arith.select %379, %377, %381 : vector<8x16xi1>, vector<8x16xf32>
    %c0_130 = arith.constant 0 : index
    %c0_131 = arith.constant 0 : index
    %383 = vector.load %arg17[%c0_130, %c0_131] : memref<8x16xf32, #tpu.memory_space<vmem>>, vector<8x16xf32>
    tpu.vector_store %arg17[%c0_130, %c0_131], %382 {strides = array<i32>} : memref<8x16xf32, #tpu.memory_space<vmem>>, vector<8x16xf32>,
    return
  }
}

</mosaic_0001>

<llo_original>
// kernel: tgsan_forward.1
$region0: #{tgsan_forward.1}
  #allocation0 [shape = 'u32[]', space=smem, size = 0x4, offset = 0x4, fixed_abs, tag = 'smem constant byte address 0x4 - core index']
  #allocation1 [shape = 'u32[144,128]{1,0:T(1,128)}', space=vmem, size = 0x12000, scoped, tag = 'internal scratch']
  #allocation2 [shape = 'f32[64,16]{1,0:T(8,128)}', space=vmem, size = 0x8000, scoped, tag = 'scratch operand']
  #allocation3 [shape = 'f32[1,1]{1,0:T(1,128)S(6)}', space=smem, size = 0x200, scoped, tag = 'scoped memory for tgsan_forward.1']
  %s0 = inlined_call_operand.vmem [shape: f32[4,8,8], index: 0, kind: input, shape index: {}]
  %s1 = inlined_call_operand.vmem [shape: f32[4,8,8], index: 1, kind: input, shape index: {}]
  %s2 = inlined_call_operand.vmem [shape: f32[8,16], index: 2, kind: input, shape index: {}]
  %s3 = inlined_call_operand.vmem [shape: f32[40,8], index: 3, kind: input, shape index: {}]
  %s4 = inlined_call_operand.vmem [shape: f32[8,8], index: 4, kind: input, shape index: {}]
  %s5 = inlined_call_operand.vmem [shape: f32[24,16], index: 5, kind: input, shape index: {}]
  %s6 = inlined_call_operand.vmem [shape: f32[16,16], index: 6, kind: input, shape index: {}]
  %s7 = inlined_call_operand.vmem [shape: f32[80,16], index: 7, kind: input, shape index: {}]
  %s8 = inlined_call_operand.vmem [shape: f32[16,16], index: 8, kind: input, shape index: {}]
  %s9 = inlined_call_operand.vmem [shape: f32[48,16], index: 9, kind: input, shape index: {}]
  %s10 = inlined_call_operand.vmem [shape: f32[16,16], index: 10, kind: input, shape index: {}]
  %s11 = inlined_call_operand.vmem [shape: f32[1,16], index: 11, kind: input, shape index: {}]
  %s12 = inlined_call_operand.vmem [shape: f32[16,16], index: 12, kind: input, shape index: {}]
  %s13 = inlined_call_operand.vmem [shape: f32[1,16], index: 13, kind: input, shape index: {}]
  %s14 = inlined_call_operand.vmem [shape: f32[16,16], index: 14, kind: input, shape index: {}]
  %s15 = inlined_call_operand.vmem [shape: f32[1,16], index: 15, kind: input, shape index: {}]
  %s16 = inlined_call_operand.<no memory space> [shape: f32[1,1], index: 16, kind: input, shape index: {}]
  %s17 = inlined_call_operand.hbm [shape: f32[8,16], index: 17, kind: output, shape index: {}]
  %s18 = sld [smem:[#allocation0]]
  $region78: #{tgsan_forward.1} parent=0
    _
  %s20 = ssub.s32 1, %s18
  %s21 = scalar_select 0, %s20, %s18
  %22 = sst [smem:[#allocation3]] %s16
  $region1: #{tgsan_forward.1} parent=0
    #allocation4 [shape = 'u8[4096]{0}', space=vmem, size = 0x1000, scoped, tag = 'output window, operand 0, single buffered']
    #allocation5 [shape = 's32[1]{0}', space=sflag, size = 0x4, scoped, tag = 'scoped memory for tgsan_forward.1']
    %23 = vsyncpa [#allocation5], 0
    // Predicated region
    $region2: #{tgsan_forward.1} parent=1 // pred_check
      _
    $region3: #{tgsan_forward.1} parent=1 // pred_check_branch
      %25 = sbr.rel (0) target = $region5
    $region4: #{tgsan_forward.1} parent=1 // pred_region
      _
    $region5: #{tgsan_forward.1} parent=1 // pred_fallthru
      _
    // Predicated region
    $region6: #{tgsan_forward.1} parent=1 // pred_check
      _
    $region7: #{tgsan_forward.1} parent=1 // pred_check_branch
      %27 = sbr.rel (0) target = $region9
    $region8: #{tgsan_forward.1} parent=1 // pred_region
      _
    $region9: #{tgsan_forward.1} parent=1 // pred_fallthru
      _
    // Predicated region
    $region10: #{tgsan_forward.1} parent=1 // pred_check
      _
    $region11: #{tgsan_forward.1} parent=1 // pred_check_branch
      %29 = sbr.rel (0) target = $region13
    $region12: #{tgsan_forward.1} parent=1 // pred_region
      _
    $region13: #{tgsan_forward.1} parent=1 // pred_fallthru
      _
    // Predicated region
    $region14: #{tgsan_forward.1} parent=1 // pred_check
      _
    $region15: #{tgsan_forward.1} parent=1 // pred_check_branch
      %31 = sbr.rel (0) target = $region17
    $region16: #{tgsan_forward.1} parent=1 // pred_region
      _
    $region17: #{tgsan_forward.1} parent=1 // pred_fallthru
      _
    // Predicated region
    $region18: #{tgsan_forward.1} parent=1 // pred_check
      _
    $region19: #{tgsan_forward.1} parent=1 // pred_check_branch
      %33 = sbr.rel (0) target = $region21
    $region20: #{tgsan_forward.1} parent=1 // pred_region
      _
    $region21: #{tgsan_forward.1} parent=1 // pred_fallthru
      _
    // Predicated region
    $region22: #{tgsan_forward.1} parent=1 // pred_check
      _
    $region23: #{tgsan_forward.1} parent=1 // pred_check_branch
      %35 = sbr.rel (0) target = $region25
    $region24: #{tgsan_forward.1} parent=1 // pred_region
      _
    $region25: #{tgsan_forward.1} parent=1 // pred_fallthru
      _
    // Predicated region
    $region26: #{tgsan_forward.1} parent=1 // pred_check
      _
    $region27: #{tgsan_forward.1} parent=1 // pred_check_branch
      %37 = sbr.rel (0) target = $region29
    $region28: #{tgsan_forward.1} parent=1 // pred_region
      _
    $region29: #{tgsan_forward.1} parent=1 // pred_fallthru
      _
    // Predicated region
    $region30: #{tgsan_forward.1} parent=1 // pred_check
      _
    $region31: #{tgsan_forward.1} parent=1 // pred_check_branch
      %39 = sbr.rel (0) target = $region33
    $region32: #{tgsan_forward.1} parent=1 // pred_region
      _
    $region33: #{tgsan_forward.1} parent=1 // pred_fallthru
      _
    // Predicated region
    $region34: #{tgsan_forward.1} parent=1 // pred_check
      _
    $region35: #{tgsan_forward.1} parent=1 // pred_check_branch
      %41 = sbr.rel (0) target = $region37
    $region36: #{tgsan_forward.1} parent=1 // pred_region
      _
    $region37: #{tgsan_forward.1} parent=1 // pred_fallthru
      _
    // Predicated region
    $region38: #{tgsan_forward.1} parent=1 // pred_check
      _
    $region39: #{tgsan_forward.1} parent=1 // pred_check_branch
      %43 = sbr.rel (0) target = $region41
    $region40: #{tgsan_forward.1} parent=1 // pred_region
      _
    $region41: #{tgsan_forward.1} parent=1 // pred_fallthru
      _
    // Predicated region
    $region42: #{tgsan_forward.1} parent=1 // pred_check
      _
    $region43: #{tgsan_forward.1} parent=1 // pred_check_branch
      %45 = sbr.rel (0) target = $region45
    $region44: #{tgsan_forward.1} parent=1 // pred_region
      _
    $region45: #{tgsan_forward.1} parent=1 // pred_fallthru
      _
    // Predicated region
    $region46: #{tgsan_forward.1} parent=1 // pred_check
      _
    $region47: #{tgsan_forward.1} parent=1 // pred_check_branch
      %47 = sbr.rel (0) target = $region49
    $region48: #{tgsan_forward.1} parent=1 // pred_region
      _
    $region49: #{tgsan_forward.1} parent=1 // pred_fallthru
      _
    // Predicated region
    $region50: #{tgsan_forward.1} parent=1 // pred_check
      _
    $region51: #{tgsan_forward.1} parent=1 // pred_check_branch
      %49 = sbr.rel (0) target = $region53
    $region52: #{tgsan_forward.1} parent=1 // pred_region
      _
    $region53: #{tgsan_forward.1} parent=1 // pred_fallthru
      _
    // Predicated region
    $region54: #{tgsan_forward.1} parent=1 // pred_check
      _
    $region55: #{tgsan_forward.1} parent=1 // pred_check_branch
      %51 = sbr.rel (0) target = $region57
    $region56: #{tgsan_forward.1} parent=1 // pred_region
      _
    $region57: #{tgsan_forward.1} parent=1 // pred_fallthru
      _
    // Predicated region
    $region58: #{tgsan_forward.1} parent=1 // pred_check
      _
    $region59: #{tgsan_forward.1} parent=1 // pred_check_branch
      %53 = sbr.rel (0) target = $region61
    $region60: #{tgsan_forward.1} parent=1 // pred_region
      _
    $region61: #{tgsan_forward.1} parent=1 // pred_fallthru
      _
    // Predicated region
    $region62: #{tgsan_forward.1} parent=1 // pred_check
      _
    $region63: #{tgsan_forward.1} parent=1 // pred_check_branch
      %55 = sbr.rel (0) target = $region65
    $region64: #{tgsan_forward.1} parent=1 // pred_region
      _
    $region65: #{tgsan_forward.1} parent=1 // pred_fallthru
      _
    // Predicated region
    $region66: #{tgsan_forward.1} parent=1 // pred_check
      _
    $region67: #{tgsan_forward.1} parent=1 // pred_check_branch
      %57 = sbr.rel (0) target = $region69
    $region68: #{tgsan_forward.1} parent=1 // pred_region
      _
    $region69: #{tgsan_forward.1} parent=1 // pred_fallthru
      _
    %s58 = sld [smem:[#allocation3]]
    %s59 = sxor.u32 %s58, 2147483648
    %v60 = vstv %s59
    %v61 = vmul.f32 %v60, 1.442695
    %v62 = vpow.pop %v61
    %s63 = vtos %v62
    %s64 = sadd.f32 %s63, 1.0
    %v65 = vstv %s64
    %v66 = vrcp.pop %v65
    %s67 = vtos %v66
    %s68 = scalar_lea.vmem %s1, 24
    %v69 = vld [vmem:[%s68] sm:$0xff]
    %v70 = vld [vmem:[%s3] sm:$0xff]
    %v71 = vld [vmem:[%s3 + $0x8] sm:$0xff]
    %v72 = vld [vmem:[%s3 + $0x10] sm:$0xff]
    %v73 = vld [vmem:[%s3 + $0x18] sm:$0xff]
    %v74 = vld [vmem:[%s3 + $0x20] sm:$0xff]
    %v75 = vld [vmem:[%s4] sm:$0xff]
    %v76 = vld [vmem:[%s5] sm:$0xff]
    %v77 = vld [vmem:[%s5 + $0x8] sm:$0xff]
    %v78 = vld [vmem:[%s5 + $0x10] sm:$0xff]
    %v79 = vld [vmem:[%s2] sm:$0xff]
    %vm80 = vcmask 64512
    %v82 = vsel %vm80, %v70, 0
    %v85 = vsel %vm80, %v71, 0
    %v88 = vsel %vm80, %v72, 0
    %v91 = vsel %vm80, %v73, 0
    %v94 = vsel %vm80, %v74, 0
    %96 = vmatprep.subr.mxu0 0.0
    %97 = vmatpush1.msra.mxu0 %v79
    %98 = vmatprep.subr.mxu0 0.0
    %99 = vmatpush1.msra.mxu0 0.0
    %100 = vmatprep.subr.mxu0 0.0
    %101 = vmatpush1.msra.mxu0 0.0
    %102 = vmatprep.subr.mxu0 0.0
    %103 = vmatpush1.msra.mxu0 0.0
    %104 = vmatprep.subr.mxu0 0.0
    %105 = vmatpush1.msra.mxu0 0.0
    %106 = vmatprep.subr.mxu0 0.0
    %107 = vmatpush1.msra.mxu0 0.0
    %108 = vmatprep.subr.mxu0 0.0
    %109 = vmatpush1.msra.mxu0 0.0
    %110 = vmatprep.subr.mxu0 0.0
    %111 = vmatpush1.msra.mxu0 0.0
    %112 = vmatprep.subr.mxu0 0.0
    %113 = vmatpush1.msra.mxu0 0.0
    %114 = vmatprep.subr.mxu0 0.0
    %115 = vmatpush1.msra.mxu0 0.0
    %116 = vmatprep.subr.mxu0 0.0
    %117 = vmatpush1.msra.mxu0 0.0
    %118 = vmatprep.subr.mxu0 0.0
    %119 = vmatpush1.msra.mxu0 0.0
    %120 = vmatprep.subr.mxu0 0.0
    %121 = vmatpush1.msra.mxu0 0.0
    %122 = vmatprep.subr.mxu0 0.0
    %123 = vmatpush1.msra.mxu0 0.0
    %124 = vmatprep.subr.mxu0 0.0
    %125 = vmatpush1.msra.mxu0 0.0
    %126 = vmatprep.subr.mxu0 0.0
    %127 = vmatpush1.msra.mxu0 0.0
    %128 = vmatprep.subr.mxu0 0.0
    %129 = vmatpush1.msra.mxu0 0.0
    %130 = vmatprep.subr.mxu0 0.0
    %131 = vmatpush1.msra.mxu0 0.0
    %132 = vmatprep.subr.mxu0 0.0
    %133 = vmatpush1.msra.mxu0 0.0
    %134 = vmatprep.subr.mxu0 0.0
    %135 = vmatpush1.msra.mxu0 0.0
    %136 = vmatprep.subr.mxu0 0.0
    %137 = vmatpush1.msra.mxu0 0.0
    %138 = vmatprep.subr.mxu0 0.0
    %139 = vmatpush1.msra.mxu0 0.0
    %140 = vmatprep.subr.mxu0 0.0
    %141 = vmatpush1.msra.mxu0 0.0
    %142 = vmatprep.subr.mxu0 0.0
    %143 = vmatpush1.msra.mxu0 0.0
    %144 = vmatprep.subr.mxu0 0.0
    %145 = vmatpush1.msra.mxu0 0.0
    %146 = vmatprep.subr.mxu0 0.0
    %147 = vmatpush1.msra.mxu0 0.0
    %148 = vmatprep.subr.mxu0 0.0
    %149 = vmatpush1.msra.mxu0 0.0
    %150 = vmatprep.subr.mxu0 0.0
    %151 = vmatpush1.msra.mxu0 0.0
    %152 = vmatprep.subr.mxu0 0.0
    %153 = vmatpush1.msra.mxu0 0.0
    %154 = vmatprep.subr.mxu0 0.0
    %155 = vmatpush1.msra.mxu0 0.0
    %156 = vmatprep.subr.mxu0 0.0
    %157 = vmatpush1.msra.mxu0 0.0
    %158 = vmatprep.subr.mxu0 0.0
    %159 = vmatpush1.msra.mxu0 0.0
    %160 = vmatprep.mubr.f32.mxu0 0.0
    %161 = vmatmul.mubr.f32.gmra.mrb[0].mxu0 %v82
    %v162 = vpop.f32.mrb[0].mxu0
    %v163 = vadd.f32 0.0, %v162
    %v164 = vpop.f32.mrb[0].mxu0
    %165 = vmatprep.mubr.f32.mxu0 0.0
    %166 = vmatmul.mubr.f32.gmra.mrb[0].mxu0 %v85
    %v167 = vpop.f32.mrb[0].mxu0
    %v168 = vadd.f32 0.0, %v167
    %v169 = vpop.f32.mrb[0].mxu0
    %170 = vmatprep.mubr.f32.mxu0 0.0
    %171 = vmatmul.mubr.f32.gmra.mrb[0].mxu0 %v88
    %v172 = vpop.f32.mrb[0].mxu0
    %v173 = vadd.f32 0.0, %v172
    %v174 = vpop.f32.mrb[0].mxu0
    %175 = vmatprep.mubr.f32.mxu0 0.0
    %176 = vmatmul.mubr.f32.gmra.mrb[0].mxu0 %v91
    %v177 = vpop.f32.mrb[0].mxu0
    %v178 = vadd.f32 0.0, %v177
    %v179 = vpop.f32.mrb[0].mxu0
    %180 = vmatprep.mubr.f32.mxu0 0.0
    %181 = vmatmul.mubr.f32.gmra.mrb[0].mxu0 %v94
    %v182 = vpop.f32.mrb[0].mxu0
    %v183 = vadd.f32 0.0, %v182
    %v184 = vpop.f32.mrb[0].mxu0
    %185 = vdwg.mxu0
    %v186 = vadd.f32 %v163, %v178
    %v187 = vadd.f32 %v186, %v76
    %v188 = vxor.u32 %v187, 2147483648
    %v189 = vmul.f32 %v188, 1.442695
    %v190 = vpow.pop %v189
    %v191 = vadd.f32 %v190, 1.0
    %v192 = vrcp.pop %v191
    %v193 = vmul.f32 1.0, %v192
    %v194 = vadd.f32 %v168, %v183
    %v195 = vadd.f32 %v194, %v77
    %v196 = vxor.u32 %v195, 2147483648
    %v197 = vmul.f32 %v196, 1.442695
    %v198 = vpow.pop %v197
    %v199 = vadd.f32 %v198, 1.0
    %v200 = vrcp.pop %v199
    %v201 = vmul.f32 1.0, %v200
    %v202 = vmul.f32 %v201, %v79
    %v204 = vsel %vm80, %v75, 0
    %206 = vmatprep.subr.mxu0 0.0
    %207 = vmatpush1.msra.mxu0 %v202
    %208 = vmatprep.subr.mxu0 0.0
    %209 = vmatpush1.msra.mxu0 0.0
    %210 = vmatprep.subr.mxu0 0.0
    %211 = vmatpush1.msra.mxu0 0.0
    %212 = vmatprep.subr.mxu0 0.0
    %213 = vmatpush1.msra.mxu0 0.0
    %214 = vmatprep.subr.mxu0 0.0
    %215 = vmatpush1.msra.mxu0 0.0
    %216 = vmatprep.subr.mxu0 0.0
    %217 = vmatpush1.msra.mxu0 0.0
    %218 = vmatprep.subr.mxu0 0.0
    %219 = vmatpush1.msra.mxu0 0.0
    %220 = vmatprep.subr.mxu0 0.0
    %221 = vmatpush1.msra.mxu0 0.0
    %222 = vmatprep.subr.mxu0 0.0
    %223 = vmatpush1.msra.mxu0 0.0
    %224 = vmatprep.subr.mxu0 0.0
    %225 = vmatpush1.msra.mxu0 0.0
    %226 = vmatprep.subr.mxu0 0.0
    %227 = vmatpush1.msra.mxu0 0.0
    %228 = vmatprep.subr.mxu0 0.0
    %229 = vmatpush1.msra.mxu0 0.0
    %230 = vmatprep.subr.mxu0 0.0
    %231 = vmatpush1.msra.mxu0 0.0
    %232 = vmatprep.subr.mxu0 0.0
    %233 = vmatpush1.msra.mxu0 0.0
    %234 = vmatprep.subr.mxu0 0.0
    %235 = vmatpush1.msra.mxu0 0.0
    %236 = vmatprep.subr.mxu0 0.0
    %237 = vmatpush1.msra.mxu0 0.0
    %238 = vmatprep.subr.mxu0 0.0
    %239 = vmatpush1.msra.mxu0 0.0
    %240 = vmatprep.subr.mxu0 0.0
    %241 = vmatpush1.msra.mxu0 0.0
    %242 = vmatprep.subr.mxu0 0.0
    %243 = vmatpush1.msra.mxu0 0.0
    %244 = vmatprep.subr.mxu0 0.0
    %245 = vmatpush1.msra.mxu0 0.0
    %246 = vmatprep.subr.mxu0 0.0
    %247 = vmatpush1.msra.mxu0 0.0
    %248 = vmatprep.subr.mxu0 0.0
    %249 = vmatpush1.msra.mxu0 0.0
    %250 = vmatprep.subr.mxu0 0.0
    %251 = vmatpush1.msra.mxu0 0.0
    %252 = vmatprep.subr.mxu0 0.0
    %253 = vmatpush1.msra.mxu0 0.0
    %254 = vmatprep.subr.mxu0 0.0
    %255 = vmatpush1.msra.mxu0 0.0
    %256 = vmatprep.subr.mxu0 0.0
    %257 = vmatpush1.msra.mxu0 0.0
    %258 = vmatprep.subr.mxu0 0.0
    %259 = vmatpush1.msra.mxu0 0.0
    %260 = vmatprep.subr.mxu0 0.0
    %261 = vmatpush1.msra.mxu0 0.0
    %262 = vmatprep.subr.mxu0 0.0
    %263 = vmatpush1.msra.mxu0 0.0
    %264 = vmatprep.subr.mxu0 0.0
    %265 = vmatpush1.msra.mxu0 0.0
    %266 = vmatprep.subr.mxu0 0.0
    %267 = vmatpush1.msra.mxu0 0.0
    %268 = vmatprep.subr.mxu0 0.0
    %269 = vmatpush1.msra.mxu0 0.0
    %270 = vmatprep.mubr.f32.mxu0 0.0
    %271 = vmatmul.mubr.f32.gmra.mrb[0].mxu0 %v204
    %v272 = vpop.f32.mrb[0].mxu0
    %v273 = vadd.f32 0.0, %v272
    %v274 = vpop.f32.mrb[0].mxu0
    %275 = vdwg.mxu0
    %v276 = vadd.f32 %v173, %v273
    %v277 = vadd.f32 %v276, %v78
    %v278 = vtanh.pop %v277
    %v279 = vsub.f32 1.0, %v193
    %v280 = vmul.f32 %v279, %v79
    %v281 = vmul.f32 %v193, %v278
    %v282 = vadd.f32 %v280, %v281
    %vm283 = vcmask 130048
    %284 = vst.msk [vmem:[#allocation2] sm:$0xff] %vm283, %v282
    %285 = vmatprep.subr.mxu0 0.0
    %286 = vmatpush1.msra.mxu0 %v282
    %287 = vmatprep.subr.mxu0 0.0
    %288 = vmatpush1.msra.mxu0 0.0
    %289 = vmatprep.subr.mxu0 0.0
    %290 = vmatpush1.msra.mxu0 0.0
    %291 = vmatprep.subr.mxu0 0.0
    %292 = vmatpush1.msra.mxu0 0.0
    %293 = vmatprep.subr.mxu0 0.0
    %294 = vmatpush1.msra.mxu0 0.0
    %295 = vmatprep.subr.mxu0 0.0
    %296 = vmatpush1.msra.mxu0 0.0
    %297 = vmatprep.subr.mxu0 0.0
    %298 = vmatpush1.msra.mxu0 0.0
    %299 = vmatprep.subr.mxu0 0.0
    %300 = vmatpush1.msra.mxu0 0.0
    %301 = vmatprep.subr.mxu0 0.0
    %302 = vmatpush1.msra.mxu0 0.0
    %303 = vmatprep.subr.mxu0 0.0
    %304 = vmatpush1.msra.mxu0 0.0
    %305 = vmatprep.subr.mxu0 0.0
    %306 = vmatpush1.msra.mxu0 0.0
    %307 = vmatprep.subr.mxu0 0.0
    %308 = vmatpush1.msra.mxu0 0.0
    %309 = vmatprep.subr.mxu0 0.0
    %310 = vmatpush1.msra.mxu0 0.0
    %311 = vmatprep.subr.mxu0 0.0
    %312 = vmatpush1.msra.mxu0 0.0
    %313 = vmatprep.subr.mxu0 0.0
    %314 = vmatpush1.msra.mxu0 0.0
    %315 = vmatprep.subr.mxu0 0.0
    %316 = vmatpush1.msra.mxu0 0.0
    %317 = vmatprep.subr.mxu0 0.0
    %318 = vmatpush1.msra.mxu0 0.0
    %319 = vmatprep.subr.mxu0 0.0
    %320 = vmatpush1.msra.mxu0 0.0
    %321 = vmatprep.subr.mxu0 0.0
    %322 = vmatpush1.msra.mxu0 0.0
    %323 = vmatprep.subr.mxu0 0.0
    %324 = vmatpush1.msra.mxu0 0.0
    %325 = vmatprep.subr.mxu0 0.0
    %326 = vmatpush1.msra.mxu0 0.0
    %327 = vmatprep.subr.mxu0 0.0
    %328 = vmatpush1.msra.mxu0 0.0
    %329 = vmatprep.subr.mxu0 0.0
    %330 = vmatpush1.msra.mxu0 0.0
    %331 = vmatprep.subr.mxu0 0.0
    %332 = vmatpush1.msra.mxu0 0.0
    %333 = vmatprep.subr.mxu0 0.0
    %334 = vmatpush1.msra.mxu0 0.0
    %335 = vmatprep.subr.mxu0 0.0
    %336 = vmatpush1.msra.mxu0 0.0
    %337 = vmatprep.subr.mxu0 0.0
    %338 = vmatpush1.msra.mxu0 0.0
    %339 = vmatprep.subr.mxu0 0.0
    %340 = vmatpush1.msra.mxu0 0.0
    %341 = vmatprep.subr.mxu0 0.0
    %342 = vmatpush1.msra.mxu0 0.0
    %343 = vmatprep.subr.mxu0 0.0
    %344 = vmatpush1.msra.mxu0 0.0
    %345 = vmatprep.subr.mxu0 0.0
    %346 = vmatpush1.msra.mxu0 0.0
    %347 = vmatprep.subr.mxu0 0.0
    %348 = vmatpush1.msra.mxu0 0.0
    %349 = vmatprep.mubr.f32.mxu0 0.0
    %350 = vmatmul.mubr.f32.gmra.mrb[0].mxu0 %v82
    %v351 = vpop.f32.mrb[0].mxu0
    %v352 = vadd.f32 0.0, %v351
    %v353 = vpop.f32.mrb[0].mxu0
    %354 = vmatprep.mubr.f32.mxu0 0.0
    %355 = vmatmul.mubr.f32.gmra.mrb[0].mxu0 %v85
    %v356 = vpop.f32.mrb[0].mxu0
    %v357 = vadd.f32 0.0, %v356
    %v358 = vpop.f32.mrb[0].mxu0
    %359 = vmatprep.mubr.f32.mxu0 0.0
    %360 = vmatmul.mubr.f32.gmra.mrb[0].mxu0 %v88
    %v361 = vpop.f32.mrb[0].mxu0
    %v362 = vadd.f32 0.0, %v361
    %v363 = vpop.f32.mrb[0].mxu0
    %364 = vmatprep.mubr.f32.mxu0 0.0
    %365 = vmatmul.mubr.f32.gmra.mrb[0].mxu0 %v91
    %v366 = vpop.f32.mrb[0].mxu0
    %v367 = vadd.f32 0.0, %v366
    %v368 = vpop.f32.mrb[0].mxu0
    %369 = vmatprep.mubr.f32.mxu0 0.0
    %370 = vmatmul.mubr.f32.gmra.mrb[0].mxu0 %v94
    %v371 = vpop.f32.mrb[0].mxu0
    %v372 = vadd.f32 0.0, %v371
    %v373 = vpop.f32.mrb[0].mxu0
    %374 = vdwg.mxu0
    %v375 = vadd.f32 %v352, %v367
    %v376 = vadd.f32 %v375, %v76
    %v377 = vxor.u32 %v376, 2147483648
    %v378 = vmul.f32 %v377, 1.442695
    %v379 = vpow.pop %v378
    %v380 = vadd.f32 %v379, 1.0
    %v381 = vrcp.pop %v380
    %v382 = vmul.f32 1.0, %v381
    %v383 = vadd.f32 %v357, %v372
    %v384 = vadd.f32 %v383, %v77
    %v385 = vxor.u32 %v384, 2147483648
    %v386 = vmul.f32 %v385, 1.442695
    %v387 = vpow.pop %v386
    %v388 = vadd.f32 %v387, 1.0
    %v389 = vrcp.pop %v388
    %v390 = vmul.f32 1.0, %v389
    %v391 = vmul.f32 %v390, %v282
    %392 = vmatprep.subr.mxu0 0.0
    %393 = vmatpush1.msra.mxu0 %v391
    %394 = vmatprep.subr.mxu0 0.0
    %395 = vmatpush1.msra.mxu0 0.0
    %396 = vmatprep.subr.mxu0 0.0
    %397 = vmatpush1.msra.mxu0 0.0
    %398 = vmatprep.subr.mxu0 0.0
    %399 = vmatpush1.msra.mxu0 0.0
    %400 = vmatprep.subr.mxu0 0.0
    %401 = vmatpush1.msra.mxu0 0.0
    %402 = vmatprep.subr.mxu0 0.0
    %403 = vmatpush1.msra.mxu0 0.0
    %404 = vmatprep.subr.mxu0 0.0
    %405 = vmatpush1.msra.mxu0 0.0
    %406 = vmatprep.subr.mxu0 0.0
    %407 = vmatpush1.msra.mxu0 0.0
    %408 = vmatprep.subr.mxu0 0.0
    %409 = vmatpush1.msra.mxu0 0.0
    %410 = vmatprep.subr.mxu0 0.0
    %411 = vmatpush1.msra.mxu0 0.0
    %412 = vmatprep.subr.mxu0 0.0
    %413 = vmatpush1.msra.mxu0 0.0
    %414 = vmatprep.subr.mxu0 0.0
    %415 = vmatpush1.msra.mxu0 0.0
    %416 = vmatprep.subr.mxu0 0.0
    %417 = vmatpush1.msra.mxu0 0.0
    %418 = vmatprep.subr.mxu0 0.0
    %419 = vmatpush1.msra.mxu0 0.0
    %420 = vmatprep.subr.mxu0 0.0
    %421 = vmatpush1.msra.mxu0 0.0
    %422 = vmatprep.subr.mxu0 0.0
    %423 = vmatpush1.msra.mxu0 0.0
    %424 = vmatprep.subr.mxu0 0.0
    %425 = vmatpush1.msra.mxu0 0.0
    %426 = vmatprep.subr.mxu0 0.0
    %427 = vmatpush1.msra.mxu0 0.0
    %428 = vmatprep.subr.mxu0 0.0
    %429 = vmatpush1.msra.mxu0 0.0
    %430 = vmatprep.subr.mxu0 0.0
    %431 = vmatpush1.msra.mxu0 0.0
    %432 = vmatprep.subr.mxu0 0.0
    %433 = vmatpush1.msra.mxu0 0.0
    %434 = vmatprep.subr.mxu0 0.0
    %435 = vmatpush1.msra.mxu0 0.0
    %436 = vmatprep.subr.mxu0 0.0
    %437 = vmatpush1.msra.mxu0 0.0
    %438 = vmatprep.subr.mxu0 0.0
    %439 = vmatpush1.msra.mxu0 0.0
    %440 = vmatprep.subr.mxu0 0.0
    %441 = vmatpush1.msra.mxu0 0.0
    %442 = vmatprep.subr.mxu0 0.0
    %443 = vmatpush1.msra.mxu0 0.0
    %444 = vmatprep.subr.mxu0 0.0
    %445 = vmatpush1.msra.mxu0 0.0
    %446 = vmatprep.subr.mxu0 0.0
    %447 = vmatpush1.msra.mxu0 0.0
    %448 = vmatprep.subr.mxu0 0.0
    %449 = vmatpush1.msra.mxu0 0.0
    %450 = vmatprep.subr.mxu0 0.0
    %451 = vmatpush1.msra.mxu0 0.0
    %452 = vmatprep.subr.mxu0 0.0
    %453 = vmatpush1.msra.mxu0 0.0
    %454 = vmatprep.subr.mxu0 0.0
    %455 = vmatpush1.msra.mxu0 0.0
    %456 = vmatprep.mubr.f32.mxu0 0.0
    %457 = vmatmul.mubr.f32.gmra.mrb[0].mxu0 %v204
    %v458 = vpop.f32.mrb[0].mxu0
    %v459 = vadd.f32 0.0, %v458
    %v460 = vpop.f32.mrb[0].mxu0
    %461 = vdwg.mxu0
    %v462 = vadd.f32 %v362, %v459
    %v463 = vadd.f32 %v462, %v78
    %v464 = vtanh.pop %v463
    %v465 = vsub.f32 1.0, %v382
    %v466 = vmul.f32 %v465, %v282
    %v467 = vmul.f32 %v382, %v464
    %v468 = vadd.f32 %v466, %v467
    %469 = vst.msk [vmem:[#allocation2 + $0x8] sm:$0xff] %vm283, %v468
    %470 = vmatprep.subr.mxu0 0.0
    %471 = vmatpush1.msra.mxu0 %v468
    %472 = vmatprep.subr.mxu0 0.0
    %473 = vmatpush1.msra.mxu0 0.0
    %474 = vmatprep.subr.mxu0 0.0
    %475 = vmatpush1.msra.mxu0 0.0
    %476 = vmatprep.subr.mxu0 0.0
    %477 = vmatpush1.msra.mxu0 0.0
    %478 = vmatprep.subr.mxu0 0.0
    %479 = vmatpush1.msra.mxu0 0.0
    %480 = vmatprep.subr.mxu0 0.0
    %481 = vmatpush1.msra.mxu0 0.0
    %482 = vmatprep.subr.mxu0 0.0
    %483 = vmatpush1.msra.mxu0 0.0
    %484 = vmatprep.subr.mxu0 0.0
    %485 = vmatpush1.msra.mxu0 0.0
    %486 = vmatprep.subr.mxu0 0.0
    %487 = vmatpush1.msra.mxu0 0.0
    %488 = vmatprep.subr.mxu0 0.0
    %489 = vmatpush1.msra.mxu0 0.0
    %490 = vmatprep.subr.mxu0 0.0
    %491 = vmatpush1.msra.mxu0 0.0
    %492 = vmatprep.subr.mxu0 0.0
    %493 = vmatpush1.msra.mxu0 0.0
    %494 = vmatprep.subr.mxu0 0.0
    %495 = vmatpush1.msra.mxu0 0.0
    %496 = vmatprep.subr.mxu0 0.0
    %497 = vmatpush1.msra.mxu0 0.0
    %498 = vmatprep.subr.mxu0 0.0
    %499 = vmatpush1.msra.mxu0 0.0
    %500 = vmatprep.subr.mxu0 0.0
    %501 = vmatpush1.msra.mxu0 0.0
    %502 = vmatprep.subr.mxu0 0.0
    %503 = vmatpush1.msra.mxu0 0.0
    %504 = vmatprep.subr.mxu0 0.0
    %505 = vmatpush1.msra.mxu0 0.0
    %506 = vmatprep.subr.mxu0 0.0
    %507 = vmatpush1.msra.mxu0 0.0
    %508 = vmatprep.subr.mxu0 0.0
    %509 = vmatpush1.msra.mxu0 0.0
    %510 = vmatprep.subr.mxu0 0.0
    %511 = vmatpush1.msra.mxu0 0.0
    %512 = vmatprep.subr.mxu0 0.0
    %513 = vmatpush1.msra.mxu0 0.0
    %514 = vmatprep.subr.mxu0 0.0
    %515 = vmatpush1.msra.mxu0 0.0
    %516 = vmatprep.subr.mxu0 0.0
    %517 = vmatpush1.msra.mxu0 0.0
    %518 = vmatprep.subr.mxu0 0.0
    %519 = vmatpush1.msra.mxu0 0.0
    %520 = vmatprep.subr.mxu0 0.0
    %521 = vmatpush1.msra.mxu0 0.0
    %522 = vmatprep.subr.mxu0 0.0
    %523 = vmatpush1.msra.mxu0 0.0
    %524 = vmatprep.subr.mxu0 0.0
    %525 = vmatpush1.msra.mxu0 0.0
    %526 = vmatprep.subr.mxu0 0.0
    %527 = vmatpush1.msra.mxu0 0.0
    %528 = vmatprep.subr.mxu0 0.0
    %529 = vmatpush1.msra.mxu0 0.0
    %530 = vmatprep.subr.mxu0 0.0
    %531 = vmatpush1.msra.mxu0 0.0
    %532 = vmatprep.subr.mxu0 0.0
    %533 = vmatpush1.msra.mxu0 0.0
    %534 = vmatprep.mubr.f32.mxu0 0.0
    %535 = vmatmul.mubr.f32.gmra.mrb[0].mxu0 %v82
    %v536 = vpop.f32.mrb[0].mxu0
    %v537 = vadd.f32 0.0, %v536
    %v538 = vpop.f32.mrb[0].mxu0
    %539 = vmatprep.mubr.f32.mxu0 0.0
    %540 = vmatmul.mubr.f32.gmra.mrb[0].mxu0 %v85
    %v541 = vpop.f32.mrb[0].mxu0
    %v542 = vadd.f32 0.0, %v541
    %v543 = vpop.f32.mrb[0].mxu0
    %544 = vmatprep.mubr.f32.mxu0 0.0
    %545 = vmatmul.mubr.f32.gmra.mrb[0].mxu0 %v88
    %v546 = vpop.f32.mrb[0].mxu0
    %v547 = vadd.f32 0.0, %v546
    %v548 = vpop.f32.mrb[0].mxu0
    %549 = vmatprep.mubr.f32.mxu0 0.0
    %550 = vmatmul.mubr.f32.gmra.mrb[0].mxu0 %v91
    %v551 = vpop.f32.mrb[0].mxu0
    %v552 = vadd.f32 0.0, %v551
    %v553 = vpop.f32.mrb[0].mxu0
    %554 = vmatprep.mubr.f32.mxu0 0.0
    %555 = vmatmul.mubr.f32.gmra.mrb[0].mxu0 %v94
    %v556 = vpop.f32.mrb[0].mxu0
    %v557 = vadd.f32 0.0, %v556
    %v558 = vpop.f32.mrb[0].mxu0
    %559 = vdwg.mxu0
    %v560 = vadd.f32 %v537, %v552
    %v561 = vadd.f32 %v560, %v76
    %v562 = vxor.u32 %v561, 2147483648
    %v563 = vmul.f32 %v562, 1.442695
    %v564 = vpow.pop %v563
    %v565 = vadd.f32 %v564, 1.0
    %v566 = vrcp.pop %v565
    %v567 = vmul.f32 1.0, %v566
    %v568 = vadd.f32 %v542, %v557
    %v569 = vadd.f32 %v568, %v77
    %v570 = vxor.u32 %v569, 2147483648
    %v571 = vmul.f32 %v570, 1.442695
    %v572 = vpow.pop %v571
    %v573 = vadd.f32 %v572, 1.0
    %v574 = vrcp.pop %v573
    %v575 = vmul.f32 1.0, %v574
    %v576 = vmul.f32 %v575, %v468
    %577 = vmatprep.subr.mxu0 0.0
    %578 = vmatpush1.msra.mxu0 %v576
    %579 = vmatprep.subr.mxu0 0.0
    %580 = vmatpush1.msra.mxu0 0.0
    %581 = vmatprep.subr.mxu0 0.0
    %582 = vmatpush1.msra.mxu0 0.0
    %583 = vmatprep.subr.mxu0 0.0
    %584 = vmatpush1.msra.mxu0 0.0
    %585 = vmatprep.subr.mxu0 0.0
    %586 = vmatpush1.msra.mxu0 0.0
    %587 = vmatprep.subr.mxu0 0.0
    %588 = vmatpush1.msra.mxu0 0.0
    %589 = vmatprep.subr.mxu0 0.0
    %590 = vmatpush1.msra.mxu0 0.0
    %591 = vmatprep.subr.mxu0 0.0
    %592 = vmatpush1.msra.mxu0 0.0
    %593 = vmatprep.subr.mxu0 0.0
    %594 = vmatpush1.msra.mxu0 0.0
    %595 = vmatprep.subr.mxu0 0.0
    %596 = vmatpush1.msra.mxu0 0.0
    %597 = vmatprep.subr.mxu0 0.0
    %598 = vmatpush1.msra.mxu0 0.0
    %599 = vmatprep.subr.mxu0 0.0
    %600 = vmatpush1.msra.mxu0 0.0
    %601 = vmatprep.subr.mxu0 0.0
    %602 = vmatpush1.msra.mxu0 0.0
    %603 = vmatprep.subr.mxu0 0.0
    %604 = vmatpush1.msra.mxu0 0.0
    %605 = vmatprep.subr.mxu0 0.0
    %606 = vmatpush1.msra.mxu0 0.0
    %607 = vmatprep.subr.mxu0 0.0
    %608 = vmatpush1.msra.mxu0 0.0
    %609 = vmatprep.subr.mxu0 0.0
    %610 = vmatpush1.msra.mxu0 0.0
    %611 = vmatprep.subr.mxu0 0.0
    %612 = vmatpush1.msra.mxu0 0.0
    %613 = vmatprep.subr.mxu0 0.0
    %614 = vmatpush1.msra.mxu0 0.0
    %615 = vmatprep.subr.mxu0 0.0
    %616 = vmatpush1.msra.mxu0 0.0
    %617 = vmatprep.subr.mxu0 0.0
    %618 = vmatpush1.msra.mxu0 0.0
    %619 = vmatprep.subr.mxu0 0.0
    %620 = vmatpush1.msra.mxu0 0.0
    %621 = vmatprep.subr.mxu0 0.0
    %622 = vmatpush1.msra.mxu0 0.0
    %623 = vmatprep.subr.mxu0 0.0
    %624 = vmatpush1.msra.mxu0 0.0
    %625 = vmatprep.subr.mxu0 0.0
    %626 = vmatpush1.msra.mxu0 0.0
    %627 = vmatprep.subr.mxu0 0.0
    %628 = vmatpush1.msra.mxu0 0.0
    %629 = vmatprep.subr.mxu0 0.0
    %630 = vmatpush1.msra.mxu0 0.0
    %631 = vmatprep.subr.mxu0 0.0
    %632 = vmatpush1.msra.mxu0 0.0
    %633 = vmatprep.subr.mxu0 0.0
    %634 = vmatpush1.msra.mxu0 0.0
    %635 = vmatprep.subr.mxu0 0.0
    %636 = vmatpush1.msra.mxu0 0.0
    %637 = vmatprep.subr.mxu0 0.0
    %638 = vmatpush1.msra.mxu0 0.0
    %639 = vmatprep.subr.mxu0 0.0
    %640 = vmatpush1.msra.mxu0 0.0
    %641 = vmatprep.mubr.f32.mxu0 0.0
    %642 = vmatmul.mubr.f32.gmra.mrb[0].mxu0 %v204
    %v643 = vpop.f32.mrb[0].mxu0
    %v644 = vadd.f32 0.0, %v643
    %v645 = vpop.f32.mrb[0].mxu0
    %646 = vdwg.mxu0
    %v647 = vadd.f32 %v547, %v644
    %v648 = vadd.f32 %v647, %v78
    %v649 = vtanh.pop %v648
    %v650 = vsub.f32 1.0, %v567
    %v651 = vmul.f32 %v650, %v468
    %v652 = vmul.f32 %v567, %v649
    %v653 = vadd.f32 %v651, %v652
    %654 = vst.msk [vmem:[#allocation2 + $0x10] sm:$0xff] %vm283, %v653
    %655 = vmatprep.subr.mxu0 0.0
    %656 = vmatpush1.msra.mxu0 %v653
    %657 = vmatprep.subr.mxu0 0.0
    %658 = vmatpush1.msra.mxu0 0.0
    %659 = vmatprep.subr.mxu0 0.0
    %660 = vmatpush1.msra.mxu0 0.0
    %661 = vmatprep.subr.mxu0 0.0
    %662 = vmatpush1.msra.mxu0 0.0
    %663 = vmatprep.subr.mxu0 0.0
    %664 = vmatpush1.msra.mxu0 0.0
    %665 = vmatprep.subr.mxu0 0.0
    %666 = vmatpush1.msra.mxu0 0.0
    %667 = vmatprep.subr.mxu0 0.0
    %668 = vmatpush1.msra.mxu0 0.0
    %669 = vmatprep.subr.mxu0 0.0
    %670 = vmatpush1.msra.mxu0 0.0
    %671 = vmatprep.subr.mxu0 0.0
    %672 = vmatpush1.msra.mxu0 0.0
    %673 = vmatprep.subr.mxu0 0.0
    %674 = vmatpush1.msra.mxu0 0.0
    %675 = vmatprep.subr.mxu0 0.0
    %676 = vmatpush1.msra.mxu0 0.0
    %677 = vmatprep.subr.mxu0 0.0
    %678 = vmatpush1.msra.mxu0 0.0
    %679 = vmatprep.subr.mxu0 0.0
    %680 = vmatpush1.msra.mxu0 0.0
    %681 = vmatprep.subr.mxu0 0.0
    %682 = vmatpush1.msra.mxu0 0.0
    %683 = vmatprep.subr.mxu0 0.0
    %684 = vmatpush1.msra.mxu0 0.0
    %685 = vmatprep.subr.mxu0 0.0
    %686 = vmatpush1.msra.mxu0 0.0
    %687 = vmatprep.subr.mxu0 0.0
    %688 = vmatpush1.msra.mxu0 0.0
    %689 = vmatprep.subr.mxu0 0.0
    %690 = vmatpush1.msra.mxu0 0.0
    %691 = vmatprep.subr.mxu0 0.0
    %692 = vmatpush1.msra.mxu0 0.0
    %693 = vmatprep.subr.mxu0 0.0
    %694 = vmatpush1.msra.mxu0 0.0
    %695 = vmatprep.subr.mxu0 0.0
    %696 = vmatpush1.msra.mxu0 0.0
    %697 = vmatprep.subr.mxu0 0.0
    %698 = vmatpush1.msra.mxu0 0.0
    %699 = vmatprep.subr.mxu0 0.0
    %700 = vmatpush1.msra.mxu0 0.0
    %701 = vmatprep.subr.mxu0 0.0
    %702 = vmatpush1.msra.mxu0 0.0
    %703 = vmatprep.subr.mxu0 0.0
    %704 = vmatpush1.msra.mxu0 0.0
    %705 = vmatprep.subr.mxu0 0.0
    %706 = vmatpush1.msra.mxu0 0.0
    %707 = vmatprep.subr.mxu0 0.0
    %708 = vmatpush1.msra.mxu0 0.0
    %709 = vmatprep.subr.mxu0 0.0
    %710 = vmatpush1.msra.mxu0 0.0
    %711 = vmatprep.subr.mxu0 0.0
    %712 = vmatpush1.msra.mxu0 0.0
    %713 = vmatprep.subr.mxu0 0.0
    %714 = vmatpush1.msra.mxu0 0.0
    %715 = vmatprep.subr.mxu0 0.0
    %716 = vmatpush1.msra.mxu0 0.0
    %717 = vmatprep.subr.mxu0 0.0
    %718 = vmatpush1.msra.mxu0 0.0
    %719 = vmatprep.mubr.f32.mxu0 0.0
    %720 = vmatmul.mubr.f32.gmra.mrb[0].mxu0 %v82
    %v721 = vpop.f32.mrb[0].mxu0
    %v722 = vadd.f32 0.0, %v721
    %v723 = vpop.f32.mrb[0].mxu0
    %724 = vmatprep.mubr.f32.mxu0 0.0
    %725 = vmatmul.mubr.f32.gmra.mrb[0].mxu0 %v85
    %v726 = vpop.f32.mrb[0].mxu0
    %v727 = vadd.f32 0.0, %v726
    %v728 = vpop.f32.mrb[0].mxu0
    %729 = vmatprep.mubr.f32.mxu0 0.0
    %730 = vmatmul.mubr.f32.gmra.mrb[0].mxu0 %v88
    %v731 = vpop.f32.mrb[0].mxu0
    %v732 = vadd.f32 0.0, %v731
    %v733 = vpop.f32.mrb[0].mxu0
    %734 = vmatprep.mubr.f32.mxu0 0.0
    %735 = vmatmul.mubr.f32.gmra.mrb[0].mxu0 %v91
    %v736 = vpop.f32.mrb[0].mxu0
    %v737 = vadd.f32 0.0, %v736
    %v738 = vpop.f32.mrb[0].mxu0
    %739 = vmatprep.mubr.f32.mxu0 0.0
    %740 = vmatmul.mubr.f32.gmra.mrb[0].mxu0 %v94
    %v741 = vpop.f32.mrb[0].mxu0
    %v742 = vadd.f32 0.0, %v741
    %v743 = vpop.f32.mrb[0].mxu0
    %744 = vdwg.mxu0
    %v745 = vadd.f32 %v722, %v737
    %v746 = vadd.f32 %v745, %v76
    %v747 = vxor.u32 %v746, 2147483648
    %v748 = vmul.f32 %v747, 1.442695
    %v749 = vpow.pop %v748
    %v750 = vadd.f32 %v749, 1.0
    %v751 = vrcp.pop %v750
    %v752 = vmul.f32 1.0, %v751
    %v753 = vadd.f32 %v727, %v742
    %v754 = vadd.f32 %v753, %v77
    %v755 = vxor.u32 %v754, 2147483648
    %v756 = vmul.f32 %v755, 1.442695
    %v757 = vpow.pop %v756
    %v758 = vadd.f32 %v757, 1.0
    %v759 = vrcp.pop %v758
    %v760 = vmul.f32 1.0, %v759
    %v761 = vmul.f32 %v760, %v653
    %762 = vmatprep.subr.mxu0 0.0
    %763 = vmatpush1.msra.mxu0 %v761
    %764 = vmatprep.subr.mxu0 0.0
    %765 = vmatpush1.msra.mxu0 0.0
    %766 = vmatprep.subr.mxu0 0.0
    %767 = vmatpush1.msra.mxu0 0.0
    %768 = vmatprep.subr.mxu0 0.0
    %769 = vmatpush1.msra.mxu0 0.0
    %770 = vmatprep.subr.mxu0 0.0
    %771 = vmatpush1.msra.mxu0 0.0
    %772 = vmatprep.subr.mxu0 0.0
    %773 = vmatpush1.msra.mxu0 0.0
    %774 = vmatprep.subr.mxu0 0.0
    %775 = vmatpush1.msra.mxu0 0.0
    %776 = vmatprep.subr.mxu0 0.0
    %777 = vmatpush1.msra.mxu0 0.0
    %778 = vmatprep.subr.mxu0 0.0
    %779 = vmatpush1.msra.mxu0 0.0
    %780 = vmatprep.subr.mxu0 0.0
    %781 = vmatpush1.msra.mxu0 0.0
    %782 = vmatprep.subr.mxu0 0.0
    %783 = vmatpush1.msra.mxu0 0.0
    %784 = vmatprep.subr.mxu0 0.0
    %785 = vmatpush1.msra.mxu0 0.0
    %786 = vmatprep.subr.mxu0 0.0
    %787 = vmatpush1.msra.mxu0 0.0
    %788 = vmatprep.subr.mxu0 0.0
    %789 = vmatpush1.msra.mxu0 0.0
    %790 = vmatprep.subr.mxu0 0.0
    %791 = vmatpush1.msra.mxu0 0.0
    %792 = vmatprep.subr.mxu0 0.0
    %793 = vmatpush1.msra.mxu0 0.0
    %794 = vmatprep.subr.mxu0 0.0
    %795 = vmatpush1.msra.mxu0 0.0
    %796 = vmatprep.subr.mxu0 0.0
    %797 = vmatpush1.msra.mxu0 0.0
    %798 = vmatprep.subr.mxu0 0.0
    %799 = vmatpush1.msra.mxu0 0.0
    %800 = vmatprep.subr.mxu0 0.0
    %801 = vmatpush1.msra.mxu0 0.0
    %802 = vmatprep.subr.mxu0 0.0
    %803 = vmatpush1.msra.mxu0 0.0
    %804 = vmatprep.subr.mxu0 0.0
    %805 = vmatpush1.msra.mxu0 0.0
    %806 = vmatprep.subr.mxu0 0.0
    %807 = vmatpush1.msra.mxu0 0.0
    %808 = vmatprep.subr.mxu0 0.0
    %809 = vmatpush1.msra.mxu0 0.0
    %810 = vmatprep.subr.mxu0 0.0
    %811 = vmatpush1.msra.mxu0 0.0
    %812 = vmatprep.subr.mxu0 0.0
    %813 = vmatpush1.msra.mxu0 0.0
    %814 = vmatprep.subr.mxu0 0.0
    %815 = vmatpush1.msra.mxu0 0.0
    %816 = vmatprep.subr.mxu0 0.0
    %817 = vmatpush1.msra.mxu0 0.0
    %818 = vmatprep.subr.mxu0 0.0
    %819 = vmatpush1.msra.mxu0 0.0
    %820 = vmatprep.subr.mxu0 0.0
    %821 = vmatpush1.msra.mxu0 0.0
    %822 = vmatprep.subr.mxu0 0.0
    %823 = vmatpush1.msra.mxu0 0.0
    %824 = vmatprep.subr.mxu0 0.0
    %825 = vmatpush1.msra.mxu0 0.0
    %826 = vmatprep.mubr.f32.mxu0 0.0
    %827 = vmatmul.mubr.f32.gmra.mrb[0].mxu0 %v204
    %v828 = vpop.f32.mrb[0].mxu0
    %v829 = vadd.f32 0.0, %v828
    %v830 = vpop.f32.mrb[0].mxu0
    %831 = vdwg.mxu0
    %v832 = vadd.f32 %v732, %v829
    %v833 = vadd.f32 %v832, %v78
    %v834 = vtanh.pop %v833
    %v835 = vsub.f32 1.0, %v752
    %v836 = vmul.f32 %v835, %v653
    %v837 = vmul.f32 %v752, %v834
    %v838 = vadd.f32 %v836, %v837
    %839 = vst.msk [vmem:[#allocation2 + $0x18] sm:$0xff] %vm283, %v838
    %v840 = vld [vmem:[#allocation2] sm:$0xff]
    %v841 = vld [vmem:[#allocation2 + $0x8] sm:$0xff]
    %v842 = vld [vmem:[#allocation2 + $0x10] sm:$0xff]
    %v843 = vld [vmem:[#allocation2 + $0x18] sm:$0xff]
    %v844 = vld [vmem:[%s10] sm:$0xff]
    %v845 = vld [vmem:[%s10 + $0x8] sm:$0xff]
    %v846 = vld [vmem:[%s11] sm:$0x1]
    %v848 = vlaneseq
    %v849 = vshrl.u32 %v848, 7
    %v850 = vsub.s32 0, %v849
    %v851 = vrot.slane %v846, %v850
    %v854 = vsel %vm283, %v840, 0
    %v857 = vsel %vm283, %v841, 0
    %v860 = vsel %vm283, %v842, 0
    %v863 = vsel %vm283, %v843, 0
    %865 = vmatprep.subr.mxu0 0.0
    %866 = vmatpush1.msra.mxu0 %v844
    %867 = vmatprep.subr.mxu0 0.0
    %868 = vmatpush1.msra.mxu0 %v845
    %869 = vmatprep.subr.mxu0 0.0
    %870 = vmatpush1.msra.mxu0 0.0
    %871 = vmatprep.subr.mxu0 0.0
    %872 = vmatpush1.msra.mxu0 0.0
    %873 = vmatprep.subr.mxu0 0.0
    %874 = vmatpush1.msra.mxu0 0.0
    %875 = vmatprep.subr.mxu0 0.0
    %876 = vmatpush1.msra.mxu0 0.0
    %877 = vmatprep.subr.mxu0 0.0
    %878 = vmatpush1.msra.mxu0 0.0
    %879 = vmatprep.subr.mxu0 0.0
    %880 = vmatpush1.msra.mxu0 0.0
    %881 = vmatprep.subr.mxu0 0.0
    %882 = vmatpush1.msra.mxu0 0.0
    %883 = vmatprep.subr.mxu0 0.0
    %884 = vmatpush1.msra.mxu0 0.0
    %885 = vmatprep.subr.mxu0 0.0
    %886 = vmatpush1.msra.mxu0 0.0
    %887 = vmatprep.subr.mxu0 0.0
    %888 = vmatpush1.msra.mxu0 0.0
    %889 = vmatprep.subr.mxu0 0.0
    %890 = vmatpush1.msra.mxu0 0.0
    %891 = vmatprep.subr.mxu0 0.0
    %892 = vmatpush1.msra.mxu0 0.0
    %893 = vmatprep.subr.mxu0 0.0
    %894 = vmatpush1.msra.mxu0 0.0
    %895 = vmatprep.subr.mxu0 0.0
    %896 = vmatpush1.msra.mxu0 0.0
    %897 = vmatprep.subr.mxu0 0.0
    %898 = vmatpush1.msra.mxu0 0.0
    %899 = vmatprep.subr.mxu0 0.0
    %900 = vmatpush1.msra.mxu0 0.0
    %901 = vmatprep.subr.mxu0 0.0
    %902 = vmatpush1.msra.mxu0 0.0
    %903 = vmatprep.subr.mxu0 0.0
    %904 = vmatpush1.msra.mxu0 0.0
    %905 = vmatprep.subr.mxu0 0.0
    %906 = vmatpush1.msra.mxu0 0.0
    %907 = vmatprep.subr.mxu0 0.0
    %908 = vmatpush1.msra.mxu0 0.0
    %909 = vmatprep.subr.mxu0 0.0
    %910 = vmatpush1.msra.mxu0 0.0
    %911 = vmatprep.subr.mxu0 0.0
    %912 = vmatpush1.msra.mxu0 0.0
    %913 = vmatprep.subr.mxu0 0.0
    %914 = vmatpush1.msra.mxu0 0.0
    %915 = vmatprep.subr.mxu0 0.0
    %916 = vmatpush1.msra.mxu0 0.0
    %917 = vmatprep.subr.mxu0 0.0
    %918 = vmatpush1.msra.mxu0 0.0
    %919 = vmatprep.subr.mxu0 0.0
    %920 = vmatpush1.msra.mxu0 0.0
    %921 = vmatprep.subr.mxu0 0.0
    %922 = vmatpush1.msra.mxu0 0.0
    %923 = vmatprep.subr.mxu0 0.0
    %924 = vmatpush1.msra.mxu0 0.0
    %925 = vmatprep.subr.mxu0 0.0
    %926 = vmatpush1.msra.mxu0 0.0
    %927 = vmatprep.subr.mxu0 0.0
    %928 = vmatpush1.msra.mxu0 0.0
    %929 = vmatprep.mubr.f32.mxu0 0.0
    %930 = vmatmul.mubr.f32.gmra.mrb[0].mxu0 %v854
    %v931 = vpop.f32.mrb[0].mxu0
    %v932 = vpop.f32.mrb[0].mxu0
    %933 = vmatprep.mubr.f32.mxu0 0.0
    %934 = vmatmul.mubr.f32.gmra.mrb[0].mxu0 %v857
    %v935 = vpop.f32.mrb[0].mxu0
    %v936 = vpop.f32.mrb[0].mxu0
    %937 = vmatprep.mubr.f32.mxu0 0.0
    %938 = vmatmul.mubr.f32.gmra.mrb[0].mxu0 %v860
    %v939 = vpop.f32.mrb[0].mxu0
    %v940 = vpop.f32.mrb[0].mxu0
    %941 = vmatprep.mubr.f32.mxu0 0.0
    %942 = vmatmul.mubr.f32.gmra.mrb[0].mxu0 %v863
    %v943 = vpop.f32.mrb[0].mxu0
    %v944 = vadd.f32 %v851, %v943
    %v945 = vpop.f32.mrb[0].mxu0
    %946 = vdwg.mxu0
    %v947 = vld [vmem:[%s12] sm:$0xff]
    %v948 = vld [vmem:[%s12 + $0x8] sm:$0xff]
    %v949 = vld [vmem:[%s13] sm:$0x1]
    %v951 = vlaneseq
    %v952 = vshrl.u32 %v951, 7
    %v953 = vsub.s32 0, %v952
    %v954 = vrot.slane %v949, %v953
    %956 = vmatprep.subr.mxu0 0.0
    %957 = vmatpush1.msra.mxu0 %v947
    %958 = vmatprep.subr.mxu0 0.0
    %959 = vmatpush1.msra.mxu0 %v948
    %960 = vmatprep.subr.mxu0 0.0
    %961 = vmatpush1.msra.mxu0 0.0
    %962 = vmatprep.subr.mxu0 0.0
    %963 = vmatpush1.msra.mxu0 0.0
    %964 = vmatprep.subr.mxu0 0.0
    %965 = vmatpush1.msra.mxu0 0.0
    %966 = vmatprep.subr.mxu0 0.0
    %967 = vmatpush1.msra.mxu0 0.0
    %968 = vmatprep.subr.mxu0 0.0
    %969 = vmatpush1.msra.mxu0 0.0
    %970 = vmatprep.subr.mxu0 0.0
    %971 = vmatpush1.msra.mxu0 0.0
    %972 = vmatprep.subr.mxu0 0.0
    %973 = vmatpush1.msra.mxu0 0.0
    %974 = vmatprep.subr.mxu0 0.0
    %975 = vmatpush1.msra.mxu0 0.0
    %976 = vmatprep.subr.mxu0 0.0
    %977 = vmatpush1.msra.mxu0 0.0
    %978 = vmatprep.subr.mxu0 0.0
    %979 = vmatpush1.msra.mxu0 0.0
    %980 = vmatprep.subr.mxu0 0.0
    %981 = vmatpush1.msra.mxu0 0.0
    %982 = vmatprep.subr.mxu0 0.0
    %983 = vmatpush1.msra.mxu0 0.0
    %984 = vmatprep.subr.mxu0 0.0
    %985 = vmatpush1.msra.mxu0 0.0
    %986 = vmatprep.subr.mxu0 0.0
    %987 = vmatpush1.msra.mxu0 0.0
    %988 = vmatprep.subr.mxu0 0.0
    %989 = vmatpush1.msra.mxu0 0.0
    %990 = vmatprep.subr.mxu0 0.0
    %991 = vmatpush1.msra.mxu0 0.0
    %992 = vmatprep.subr.mxu0 0.0
    %993 = vmatpush1.msra.mxu0 0.0
    %994 = vmatprep.subr.mxu0 0.0
    %995 = vmatpush1.msra.mxu0 0.0
    %996 = vmatprep.subr.mxu0 0.0
    %997 = vmatpush1.msra.mxu0 0.0
    %998 = vmatprep.subr.mxu0 0.0
    %999 = vmatpush1.msra.mxu0 0.0
    %1000 = vmatprep.subr.mxu0 0.0
    %1001 = vmatpush1.msra.mxu0 0.0
    %1002 = vmatprep.subr.mxu0 0.0
    %1003 = vmatpush1.msra.mxu0 0.0
    %1004 = vmatprep.subr.mxu0 0.0
    %1005 = vmatpush1.msra.mxu0 0.0
    %1006 = vmatprep.subr.mxu0 0.0
    %1007 = vmatpush1.msra.mxu0 0.0
    %1008 = vmatprep.subr.mxu0 0.0
    %1009 = vmatpush1.msra.mxu0 0.0
    %1010 = vmatprep.subr.mxu0 0.0
    %1011 = vmatpush1.msra.mxu0 0.0
    %1012 = vmatprep.subr.mxu0 0.0
    %1013 = vmatpush1.msra.mxu0 0.0
    %1014 = vmatprep.subr.mxu0 0.0
    %1015 = vmatpush1.msra.mxu0 0.0
    %1016 = vmatprep.subr.mxu0 0.0
    %1017 = vmatpush1.msra.mxu0 0.0
    %1018 = vmatprep.subr.mxu0 0.0
    %1019 = vmatpush1.msra.mxu0 0.0
    %1020 = vmatprep.mubr.f32.mxu0 0.0
    %1021 = vmatmul.mubr.f32.gmra.mrb[0].mxu0 %v854
    %v1022 = vpop.f32.mrb[0].mxu0
    %v1023 = vpop.f32.mrb[0].mxu0
    %1024 = vmatprep.mubr.f32.mxu0 0.0
    %1025 = vmatmul.mubr.f32.gmra.mrb[0].mxu0 %v857
    %v1026 = vpop.f32.mrb[0].mxu0
    %v1027 = vpop.f32.mrb[0].mxu0
    %1028 = vmatprep.mubr.f32.mxu0 0.0
    %1029 = vmatmul.mubr.f32.gmra.mrb[0].mxu0 %v860
    %v1030 = vpop.f32.mrb[0].mxu0
    %v1031 = vpop.f32.mrb[0].mxu0
    %1032 = vmatprep.mubr.f32.mxu0 0.0
    %1033 = vmatmul.mubr.f32.gmra.mrb[0].mxu0 %v863
    %v1034 = vpop.f32.mrb[0].mxu0
    %v1035 = vadd.f32 %v954, %v1034
    %v1036 = vpop.f32.mrb[0].mxu0
    %1037 = vdwg.mxu0
    %v1038 = vld [vmem:[%s14] sm:$0xff]
    %v1039 = vld [vmem:[%s14 + $0x8] sm:$0xff]
    %v1040 = vld [vmem:[%s15] sm:$0x1]
    %v1042 = vlaneseq
    %v1043 = vshrl.u32 %v1042, 7
    %v1044 = vsub.s32 0, %v1043
    %v1045 = vrot.slane %v1040, %v1044
    %1047 = vmatprep.subr.mxu0 0.0
    %1048 = vmatpush1.msra.mxu0 %v1038
    %1049 = vmatprep.subr.mxu0 0.0
    %1050 = vmatpush1.msra.mxu0 %v1039
    %1051 = vmatprep.subr.mxu0 0.0
    %1052 = vmatpush1.msra.mxu0 0.0
    %1053 = vmatprep.subr.mxu0 0.0
    %1054 = vmatpush1.msra.mxu0 0.0
    %1055 = vmatprep.subr.mxu0 0.0
    %1056 = vmatpush1.msra.mxu0 0.0
    %1057 = vmatprep.subr.mxu0 0.0
    %1058 = vmatpush1.msra.mxu0 0.0
    %1059 = vmatprep.subr.mxu0 0.0
    %1060 = vmatpush1.msra.mxu0 0.0
    %1061 = vmatprep.subr.mxu0 0.0
    %1062 = vmatpush1.msra.mxu0 0.0
    %1063 = vmatprep.subr.mxu0 0.0
    %1064 = vmatpush1.msra.mxu0 0.0
    %1065 = vmatprep.subr.mxu0 0.0
    %1066 = vmatpush1.msra.mxu0 0.0
    %1067 = vmatprep.subr.mxu0 0.0
    %1068 = vmatpush1.msra.mxu0 0.0
    %1069 = vmatprep.subr.mxu0 0.0
    %1070 = vmatpush1.msra.mxu0 0.0
    %1071 = vmatprep.subr.mxu0 0.0
    %1072 = vmatpush1.msra.mxu0 0.0
    %1073 = vmatprep.subr.mxu0 0.0
    %1074 = vmatpush1.msra.mxu0 0.0
    %1075 = vmatprep.subr.mxu0 0.0
    %1076 = vmatpush1.msra.mxu0 0.0
    %1077 = vmatprep.subr.mxu0 0.0
    %1078 = vmatpush1.msra.mxu0 0.0
    %1079 = vmatprep.subr.mxu0 0.0
    %1080 = vmatpush1.msra.mxu0 0.0
    %1081 = vmatprep.subr.mxu0 0.0
    %1082 = vmatpush1.msra.mxu0 0.0
    %1083 = vmatprep.subr.mxu0 0.0
    %1084 = vmatpush1.msra.mxu0 0.0
    %1085 = vmatprep.subr.mxu0 0.0
    %1086 = vmatpush1.msra.mxu0 0.0
    %1087 = vmatprep.subr.mxu0 0.0
    %1088 = vmatpush1.msra.mxu0 0.0
    %1089 = vmatprep.subr.mxu0 0.0
    %1090 = vmatpush1.msra.mxu0 0.0
    %1091 = vmatprep.subr.mxu0 0.0
    %1092 = vmatpush1.msra.mxu0 0.0
    %1093 = vmatprep.subr.mxu0 0.0
    %1094 = vmatpush1.msra.mxu0 0.0
    %1095 = vmatprep.subr.mxu0 0.0
    %1096 = vmatpush1.msra.mxu0 0.0
    %1097 = vmatprep.subr.mxu0 0.0
    %1098 = vmatpush1.msra.mxu0 0.0
    %1099 = vmatprep.subr.mxu0 0.0
    %1100 = vmatpush1.msra.mxu0 0.0
    %1101 = vmatprep.subr.mxu0 0.0
    %1102 = vmatpush1.msra.mxu0 0.0
    %1103 = vmatprep.subr.mxu0 0.0
    %1104 = vmatpush1.msra.mxu0 0.0
    %1105 = vmatprep.subr.mxu0 0.0
    %1106 = vmatpush1.msra.mxu0 0.0
    %1107 = vmatprep.subr.mxu0 0.0
    %1108 = vmatpush1.msra.mxu0 0.0
    %1109 = vmatprep.subr.mxu0 0.0
    %1110 = vmatpush1.msra.mxu0 0.0
    %1111 = vmatprep.mubr.f32.mxu0 0.0
    %1112 = vmatmul.mubr.f32.gmra.mrb[0].mxu0 %v854
    %v1113 = vpop.f32.mrb[0].mxu0
    %v1114 = vpop.f32.mrb[0].mxu0
    %1115 = vmatprep.mubr.f32.mxu0 0.0
    %1116 = vmatmul.mubr.f32.gmra.mrb[0].mxu0 %v857
    %v1117 = vpop.f32.mrb[0].mxu0
    %v1118 = vpop.f32.mrb[0].mxu0
    %1119 = vmatprep.mubr.f32.mxu0 0.0
    %1120 = vmatmul.mubr.f32.gmra.mrb[0].mxu0 %v860
    %v1121 = vpop.f32.mrb[0].mxu0
    %v1122 = vpop.f32.mrb[0].mxu0
    %1123 = vmatprep.mubr.f32.mxu0 0.0
    %1124 = vmatmul.mubr.f32.gmra.mrb[0].mxu0 %v863
    %v1125 = vpop.f32.mrb[0].mxu0
    %v1126 = vadd.f32 %v1045, %v1125
    %v1127 = vpop.f32.mrb[0].mxu0
    %1128 = vdwg.mxu0
    %v1130 = vsel %vm283, %v944, 0
    %v1133 = vsel %vm283, %v1035, 0
    %1135 = vmatprep.subr.mxu0 0.0
    %1136 = vmatpush1.xpose.msra.mxu0 %v1133
    %1137 = vmatprep.subr.mxu0 0.0
    %1138 = vmatpush1.xpose.msra.mxu0 0.0
    %1139 = vmatprep.subr.mxu0 0.0
    %1140 = vmatpush1.xpose.msra.mxu0 0.0
    %1141 = vmatprep.subr.mxu0 0.0
    %1142 = vmatpush1.xpose.msra.mxu0 0.0
    %1143 = vmatprep.subr.mxu0 0.0
    %1144 = vmatpush1.xpose.msra.mxu0 0.0
    %1145 = vmatprep.subr.mxu0 0.0
    %1146 = vmatpush1.xpose.msra.mxu0 0.0
    %1147 = vmatprep.subr.mxu0 0.0
    %1148 = vmatpush1.xpose.msra.mxu0 0.0
    %1149 = vmatprep.subr.mxu0 0.0
    %1150 = vmatpush1.xpose.msra.mxu0 0.0
    %1151 = vmatprep.subr.mxu0 0.0
    %1152 = vmatpush1.xpose.msra.mxu0 0.0
    %1153 = vmatprep.subr.mxu0 0.0
    %1154 = vmatpush1.xpose.msra.mxu0 0.0
    %1155 = vmatprep.subr.mxu0 0.0
    %1156 = vmatpush1.xpose.msra.mxu0 0.0
    %1157 = vmatprep.subr.mxu0 0.0
    %1158 = vmatpush1.xpose.msra.mxu0 0.0
    %1159 = vmatprep.subr.mxu0 0.0
    %1160 = vmatpush1.xpose.msra.mxu0 0.0
    %1161 = vmatprep.subr.mxu0 0.0
    %1162 = vmatpush1.xpose.msra.mxu0 0.0
    %1163 = vmatprep.subr.mxu0 0.0
    %1164 = vmatpush1.xpose.msra.mxu0 0.0
    %1165 = vmatprep.subr.mxu0 0.0
    %1166 = vmatpush1.xpose.msra.mxu0 0.0
    %1167 = vmatprep.subr.mxu0 0.0
    %1168 = vmatpush1.xpose.msra.mxu0 0.0
    %1169 = vmatprep.subr.mxu0 0.0
    %1170 = vmatpush1.xpose.msra.mxu0 0.0
    %1171 = vmatprep.subr.mxu0 0.0
    %1172 = vmatpush1.xpose.msra.mxu0 0.0
    %1173 = vmatprep.subr.mxu0 0.0
    %1174 = vmatpush1.xpose.msra.mxu0 0.0
    %1175 = vmatprep.subr.mxu0 0.0
    %1176 = vmatpush1.xpose.msra.mxu0 0.0
    %1177 = vmatprep.subr.mxu0 0.0
    %1178 = vmatpush1.xpose.msra.mxu0 0.0
    %1179 = vmatprep.subr.mxu0 0.0
    %1180 = vmatpush1.xpose.msra.mxu0 0.0
    %1181 = vmatprep.subr.mxu0 0.0
    %1182 = vmatpush1.xpose.msra.mxu0 0.0
    %1183 = vmatprep.subr.mxu0 0.0
    %1184 = vmatpush1.xpose.msra.mxu0 0.0
    %1185 = vmatprep.subr.mxu0 0.0
    %1186 = vmatpush1.xpose.msra.mxu0 0.0
    %1187 = vmatprep.subr.mxu0 0.0
    %1188 = vmatpush1.xpose.msra.mxu0 0.0
    %1189 = vmatprep.subr.mxu0 0.0
    %1190 = vmatpush1.xpose.msra.mxu0 0.0
    %1191 = vmatprep.subr.mxu0 0.0
    %1192 = vmatpush1.xpose.msra.mxu0 0.0
    %1193 = vmatprep.subr.mxu0 0.0
    %1194 = vmatpush1.xpose.msra.mxu0 0.0
    %1195 = vmatprep.subr.mxu0 0.0
    %1196 = vmatpush1.xpose.msra.mxu0 0.0
    %1197 = vmatprep.subr.mxu0 0.0
    %1198 = vmatpush1.xpose.msra.mxu0 0.0
    %1199 = vmatprep.mubr.f32.mxu0 0.0
    %1200 = vmatmul.mubr.f32.gmra.mrb[0].mxu0 %v1130
    %v1201 = vpop.f32.mrb[0].mxu0
    %v1202 = vadd.f32 0.0, %v1201
    %v1203 = vpop.f32.mrb[0].mxu0
    %1204 = vdwg.mxu0
    %v1205 = vmul.f32 %v1202, 0.25
    %v1206 = vsel %vm80, %v1205, -inf
    %1207 = vmax.xlane.f32.xlu0 %v1206
    %v1208 = vpop.xlane.xlu0 %1207
    %v1209 = vsub.f32 %v1205, %v1208
    %v1210 = vmul.f32 %v1209, 1.442695
    %v1211 = vpow.pop %v1210
    %v1212 = vsel %vm80, %v1211, 0.0
    %1213 = vadd.xlane.f32.xlu0 %v1212
    %v1214 = vpop.xlane.xlu0 %1213
    %v1215 = vrcp.pop %v1214
    %v1216 = vmul.f32 %v1211, %v1215
    %v1218 = vsel %vm80, %v1216, 0
    %1220 = vmatprep.subr.mxu0 0.0
    %1221 = vmatpush1.msra.mxu0 %v1126
    %1222 = vmatprep.subr.mxu0 0.0
    %1223 = vmatpush1.msra.mxu0 0.0
    %1224 = vmatprep.subr.mxu0 0.0
    %1225 = vmatpush1.msra.mxu0 0.0
    %1226 = vmatprep.subr.mxu0 0.0
    %1227 = vmatpush1.msra.mxu0 0.0
    %1228 = vmatprep.subr.mxu0 0.0
    %1229 = vmatpush1.msra.mxu0 0.0
    %1230 = vmatprep.subr.mxu0 0.0
    %1231 = vmatpush1.msra.mxu0 0.0
    %1232 = vmatprep.subr.mxu0 0.0
    %1233 = vmatpush1.msra.mxu0 0.0
    %1234 = vmatprep.subr.mxu0 0.0
    %1235 = vmatpush1.msra.mxu0 0.0
    %1236 = vmatprep.subr.mxu0 0.0
    %1237 = vmatpush1.msra.mxu0 0.0
    %1238 = vmatprep.subr.mxu0 0.0
    %1239 = vmatpush1.msra.mxu0 0.0
    %1240 = vmatprep.subr.mxu0 0.0
    %1241 = vmatpush1.msra.mxu0 0.0
    %1242 = vmatprep.subr.mxu0 0.0
    %1243 = vmatpush1.msra.mxu0 0.0
    %1244 = vmatprep.subr.mxu0 0.0
    %1245 = vmatpush1.msra.mxu0 0.0
    %1246 = vmatprep.subr.mxu0 0.0
    %1247 = vmatpush1.msra.mxu0 0.0
    %1248 = vmatprep.subr.mxu0 0.0
    %1249 = vmatpush1.msra.mxu0 0.0
    %1250 = vmatprep.subr.mxu0 0.0
    %1251 = vmatpush1.msra.mxu0 0.0
    %1252 = vmatprep.subr.mxu0 0.0
    %1253 = vmatpush1.msra.mxu0 0.0
    %1254 = vmatprep.subr.mxu0 0.0
    %1255 = vmatpush1.msra.mxu0 0.0
    %1256 = vmatprep.subr.mxu0 0.0
    %1257 = vmatpush1.msra.mxu0 0.0
    %1258 = vmatprep.subr.mxu0 0.0
    %1259 = vmatpush1.msra.mxu0 0.0
    %1260 = vmatprep.subr.mxu0 0.0
    %1261 = vmatpush1.msra.mxu0 0.0
    %1262 = vmatprep.subr.mxu0 0.0
    %1263 = vmatpush1.msra.mxu0 0.0
    %1264 = vmatprep.subr.mxu0 0.0
    %1265 = vmatpush1.msra.mxu0 0.0
    %1266 = vmatprep.subr.mxu0 0.0
    %1267 = vmatpush1.msra.mxu0 0.0
    %1268 = vmatprep.subr.mxu0 0.0
    %1269 = vmatpush1.msra.mxu0 0.0
    %1270 = vmatprep.subr.mxu0 0.0
    %1271 = vmatpush1.msra.mxu0 0.0
    %1272 = vmatprep.subr.mxu0 0.0
    %1273 = vmatpush1.msra.mxu0 0.0
    %1274 = vmatprep.subr.mxu0 0.0
    %1275 = vmatpush1.msra.mxu0 0.0
    %1276 = vmatprep.subr.mxu0 0.0
    %1277 = vmatpush1.msra.mxu0 0.0
    %1278 = vmatprep.subr.mxu0 0.0
    %1279 = vmatpush1.msra.mxu0 0.0
    %1280 = vmatprep.subr.mxu0 0.0
    %1281 = vmatpush1.msra.mxu0 0.0
    %1282 = vmatprep.subr.mxu0 0.0
    %1283 = vmatpush1.msra.mxu0 0.0
    %1284 = vmatprep.mubr.f32.mxu0 0.0
    %1285 = vmatmul.mubr.f32.gmra.mrb[0].mxu0 %v1218
    %v1286 = vpop.f32.mrb[0].mxu0
    %v1287 = vadd.f32 0.0, %v1286
    %v1288 = vpop.f32.mrb[0].mxu0
    %1289 = vdwg.mxu0
    %v1290 = vstv %s67
    %v1291 = vmul.f32 %v1290, %v1287
    %s1292 = ssub.f32 1.0, %s67
    %v1293 = vstv %s1292
    %v1294 = vmul.f32 %v1293, %v843
    %v1295 = vadd.f32 %v1291, %v1294
    %v1297 = vsel %vm80, %v69, 0
    %1299 = vmatprep.subr.mxu0 0.0
    %1300 = vmatpush1.msra.mxu0 %v1295
    %1301 = vmatprep.subr.mxu0 0.0
    %1302 = vmatpush1.msra.mxu0 0.0
    %1303 = vmatprep.subr.mxu0 0.0
    %1304 = vmatpush1.msra.mxu0 0.0
    %1305 = vmatprep.subr.mxu0 0.0
    %1306 = vmatpush1.msra.mxu0 0.0
    %1307 = vmatprep.subr.mxu0 0.0
    %1308 = vmatpush1.msra.mxu0 0.0
    %1309 = vmatprep.subr.mxu0 0.0
    %1310 = vmatpush1.msra.mxu0 0.0
    %1311 = vmatprep.subr.mxu0 0.0
    %1312 = vmatpush1.msra.mxu0 0.0
    %1313 = vmatprep.subr.mxu0 0.0
    %1314 = vmatpush1.msra.mxu0 0.0
    %1315 = vmatprep.subr.mxu0 0.0
    %1316 = vmatpush1.msra.mxu0 0.0
    %1317 = vmatprep.subr.mxu0 0.0
    %1318 = vmatpush1.msra.mxu0 0.0
    %1319 = vmatprep.subr.mxu0 0.0
    %1320 = vmatpush1.msra.mxu0 0.0
    %1321 = vmatprep.subr.mxu0 0.0
    %1322 = vmatpush1.msra.mxu0 0.0
    %1323 = vmatprep.subr.mxu0 0.0
    %1324 = vmatpush1.msra.mxu0 0.0
    %1325 = vmatprep.subr.mxu0 0.0
    %1326 = vmatpush1.msra.mxu0 0.0
    %1327 = vmatprep.subr.mxu0 0.0
    %1328 = vmatpush1.msra.mxu0 0.0
    %1329 = vmatprep.subr.mxu0 0.0
    %1330 = vmatpush1.msra.mxu0 0.0
    %1331 = vmatprep.subr.mxu0 0.0
    %1332 = vmatpush1.msra.mxu0 0.0
    %1333 = vmatprep.subr.mxu0 0.0
    %1334 = vmatpush1.msra.mxu0 0.0
    %1335 = vmatprep.subr.mxu0 0.0
    %1336 = vmatpush1.msra.mxu0 0.0
    %1337 = vmatprep.subr.mxu0 0.0
    %1338 = vmatpush1.msra.mxu0 0.0
    %1339 = vmatprep.subr.mxu0 0.0
    %1340 = vmatpush1.msra.mxu0 0.0
    %1341 = vmatprep.subr.mxu0 0.0
    %1342 = vmatpush1.msra.mxu0 0.0
    %1343 = vmatprep.subr.mxu0 0.0
    %1344 = vmatpush1.msra.mxu0 0.0
    %1345 = vmatprep.subr.mxu0 0.0
    %1346 = vmatpush1.msra.mxu0 0.0
    %1347 = vmatprep.subr.mxu0 0.0
    %1348 = vmatpush1.msra.mxu0 0.0
    %1349 = vmatprep.subr.mxu0 0.0
    %1350 = vmatpush1.msra.mxu0 0.0
    %1351 = vmatprep.subr.mxu0 0.0
    %1352 = vmatpush1.msra.mxu0 0.0
    %1353 = vmatprep.subr.mxu0 0.0
    %1354 = vmatpush1.msra.mxu0 0.0
    %1355 = vmatprep.subr.mxu0 0.0
    %1356 = vmatpush1.msra.mxu0 0.0
    %1357 = vmatprep.subr.mxu0 0.0
    %1358 = vmatpush1.msra.mxu0 0.0
    %1359 = vmatprep.subr.mxu0 0.0
    %1360 = vmatpush1.msra.mxu0 0.0
    %1361 = vmatprep.subr.mxu0 0.0
    %1362 = vmatpush1.msra.mxu0 0.0
    %1363 = vmatprep.mubr.f32.mxu0 0.0
    %1364 = vmatmul.mubr.f32.gmra.mrb[0].mxu0 %v1297
    %v1365 = vpop.f32.mrb[0].mxu0
    %v1366 = vadd.f32 0.0, %v1365
    %v1367 = vpop.f32.mrb[0].mxu0
    %1368 = vdwg.mxu0
    %s1369 = scalar_lea.vmem %s0, 24
    %v1370 = vld [vmem:[%s1369] sm:$0xff]
    %v1372 = vsel %vm80, %v1370, 0
    %1374 = vmatprep.subr.mxu0 0.0
    %1375 = vmatpush1.msra.mxu0 %v1366
    %1376 = vmatprep.subr.mxu0 0.0
    %1377 = vmatpush1.msra.mxu0 0.0
    %1378 = vmatprep.subr.mxu0 0.0
    %1379 = vmatpush1.msra.mxu0 0.0
    %1380 = vmatprep.subr.mxu0 0.0
    %1381 = vmatpush1.msra.mxu0 0.0
    %1382 = vmatprep.subr.mxu0 0.0
    %1383 = vmatpush1.msra.mxu0 0.0
    %1384 = vmatprep.subr.mxu0 0.0
    %1385 = vmatpush1.msra.mxu0 0.0
    %1386 = vmatprep.subr.mxu0 0.0
    %1387 = vmatpush1.msra.mxu0 0.0
    %1388 = vmatprep.subr.mxu0 0.0
    %1389 = vmatpush1.msra.mxu0 0.0
    %1390 = vmatprep.subr.mxu0 0.0
    %1391 = vmatpush1.msra.mxu0 0.0
    %1392 = vmatprep.subr.mxu0 0.0
    %1393 = vmatpush1.msra.mxu0 0.0
    %1394 = vmatprep.subr.mxu0 0.0
    %1395 = vmatpush1.msra.mxu0 0.0
    %1396 = vmatprep.subr.mxu0 0.0
    %1397 = vmatpush1.msra.mxu0 0.0
    %1398 = vmatprep.subr.mxu0 0.0
    %1399 = vmatpush1.msra.mxu0 0.0
    %1400 = vmatprep.subr.mxu0 0.0
    %1401 = vmatpush1.msra.mxu0 0.0
    %1402 = vmatprep.subr.mxu0 0.0
    %1403 = vmatpush1.msra.mxu0 0.0
    %1404 = vmatprep.subr.mxu0 0.0
    %1405 = vmatpush1.msra.mxu0 0.0
    %1406 = vmatprep.subr.mxu0 0.0
    %1407 = vmatpush1.msra.mxu0 0.0
    %1408 = vmatprep.subr.mxu0 0.0
    %1409 = vmatpush1.msra.mxu0 0.0
    %1410 = vmatprep.subr.mxu0 0.0
    %1411 = vmatpush1.msra.mxu0 0.0
    %1412 = vmatprep.subr.mxu0 0.0
    %1413 = vmatpush1.msra.mxu0 0.0
    %1414 = vmatprep.subr.mxu0 0.0
    %1415 = vmatpush1.msra.mxu0 0.0
    %1416 = vmatprep.subr.mxu0 0.0
    %1417 = vmatpush1.msra.mxu0 0.0
    %1418 = vmatprep.subr.mxu0 0.0
    %1419 = vmatpush1.msra.mxu0 0.0
    %1420 = vmatprep.subr.mxu0 0.0
    %1421 = vmatpush1.msra.mxu0 0.0
    %1422 = vmatprep.subr.mxu0 0.0
    %1423 = vmatpush1.msra.mxu0 0.0
    %1424 = vmatprep.subr.mxu0 0.0
    %1425 = vmatpush1.msra.mxu0 0.0
    %1426 = vmatprep.subr.mxu0 0.0
    %1427 = vmatpush1.msra.mxu0 0.0
    %1428 = vmatprep.subr.mxu0 0.0
    %1429 = vmatpush1.msra.mxu0 0.0
    %1430 = vmatprep.subr.mxu0 0.0
    %1431 = vmatpush1.msra.mxu0 0.0
    %1432 = vmatprep.subr.mxu0 0.0
    %1433 = vmatpush1.msra.mxu0 0.0
    %1434 = vmatprep.subr.mxu0 0.0
    %1435 = vmatpush1.msra.mxu0 0.0
    %1436 = vmatprep.subr.mxu0 0.0
    %1437 = vmatpush1.msra.mxu0 0.0
    %1438 = vmatprep.mubr.f32.mxu0 0.0
    %1439 = vmatmul.mubr.f32.gmra.mrb[0].mxu0 %v1372
    %v1440 = vpop.f32.mrb[0].mxu0
    %v1441 = vadd.f32 0.0, %v1440
    %v1442 = vpop.f32.mrb[0].mxu0
    %1443 = vdwg.mxu0
    %vm1444 = vcmp.ge.f32.partialorder %v1441, 0.0
    %v1445 = vmul.f32 %v1441, 0.22916667
    %v1446 = vsel %vm1444, %v1441, %v1445
    %v1447 = vld [vmem:[%s7] sm:$0xff]
    %v1448 = vld [vmem:[%s7 + $0x8] sm:$0xff]
    %v1449 = vld [vmem:[%s7 + $0x10] sm:$0xff]
    %v1450 = vld [vmem:[%s7 + $0x18] sm:$0xff]
    %v1451 = vld [vmem:[%s7 + $0x20] sm:$0xff]
    %v1452 = vld [vmem:[%s7 + $0x28] sm:$0xff]
    %v1453 = vld [vmem:[%s7 + $0x30] sm:$0xff]
    %v1454 = vld [vmem:[%s7 + $0x38] sm:$0xff]
    %v1455 = vld [vmem:[%s7 + $0x40] sm:$0xff]
    %v1456 = vld [vmem:[%s7 + $0x48] sm:$0xff]
    %v1457 = vld [vmem:[%s8] sm:$0xff]
    %v1458 = vld [vmem:[%s8 + $0x8] sm:$0xff]
    %v1459 = vld [vmem:[%s9] sm:$0xff]
    %v1460 = vld [vmem:[%s9 + $0x8] sm:$0xff]
    %v1461 = vld [vmem:[%s9 + $0x10] sm:$0xff]
    %v1462 = vld [vmem:[%s9 + $0x18] sm:$0xff]
    %v1463 = vld [vmem:[%s9 + $0x20] sm:$0xff]
    %v1464 = vld [vmem:[%s9 + $0x28] sm:$0xff]
    %v1465 = vld [vmem:[%s6] sm:$0xff]
    %v1466 = vld [vmem:[%s6 + $0x8] sm:$0xff]
    %v1468 = vsel %vm283, %v1447, 0
    %v1471 = vsel %vm283, %v1448, 0
    %v1474 = vsel %vm283, %v1449, 0
    %v1477 = vsel %vm283, %v1450, 0
    %v1480 = vsel %vm283, %v1451, 0
    %v1483 = vsel %vm283, %v1452, 0
    %v1486 = vsel %vm283, %v1453, 0
    %v1489 = vsel %vm283, %v1454, 0
    %v1492 = vsel %vm283, %v1455, 0
    %v1495 = vsel %vm283, %v1456, 0
    %1497 = vmatprep.subr.mxu0 0.0
    %1498 = vmatpush1.msra.mxu0 %v1465
    %1499 = vmatprep.subr.mxu0 0.0
    %1500 = vmatpush1.msra.mxu0 %v1466
    %1501 = vmatprep.subr.mxu0 0.0
    %1502 = vmatpush1.msra.mxu0 0.0
    %1503 = vmatprep.subr.mxu0 0.0
    %1504 = vmatpush1.msra.mxu0 0.0
    %1505 = vmatprep.subr.mxu0 0.0
    %1506 = vmatpush1.msra.mxu0 0.0
    %1507 = vmatprep.subr.mxu0 0.0
    %1508 = vmatpush1.msra.mxu0 0.0
    %1509 = vmatprep.subr.mxu0 0.0
    %1510 = vmatpush1.msra.mxu0 0.0
    %1511 = vmatprep.subr.mxu0 0.0
    %1512 = vmatpush1.msra.mxu0 0.0
    %1513 = vmatprep.subr.mxu0 0.0
    %1514 = vmatpush1.msra.mxu0 0.0
    %1515 = vmatprep.subr.mxu0 0.0
    %1516 = vmatpush1.msra.mxu0 0.0
    %1517 = vmatprep.subr.mxu0 0.0
    %1518 = vmatpush1.msra.mxu0 0.0
    %1519 = vmatprep.subr.mxu0 0.0
    %1520 = vmatpush1.msra.mxu0 0.0
    %1521 = vmatprep.subr.mxu0 0.0
    %1522 = vmatpush1.msra.mxu0 0.0
    %1523 = vmatprep.subr.mxu0 0.0
    %1524 = vmatpush1.msra.mxu0 0.0
    %1525 = vmatprep.subr.mxu0 0.0
    %1526 = vmatpush1.msra.mxu0 0.0
    %1527 = vmatprep.subr.mxu0 0.0
    %1528 = vmatpush1.msra.mxu0 0.0
    %1529 = vmatprep.subr.mxu0 0.0
    %1530 = vmatpush1.msra.mxu0 0.0
    %1531 = vmatprep.subr.mxu0 0.0
    %1532 = vmatpush1.msra.mxu0 0.0
    %1533 = vmatprep.subr.mxu0 0.0
    %1534 = vmatpush1.msra.mxu0 0.0
    %1535 = vmatprep.subr.mxu0 0.0
    %1536 = vmatpush1.msra.mxu0 0.0
    %1537 = vmatprep.subr.mxu0 0.0
    %1538 = vmatpush1.msra.mxu0 0.0
    %1539 = vmatprep.subr.mxu0 0.0
    %1540 = vmatpush1.msra.mxu0 0.0
    %1541 = vmatprep.subr.mxu0 0.0
    %1542 = vmatpush1.msra.mxu0 0.0
    %1543 = vmatprep.subr.mxu0 0.0
    %1544 = vmatpush1.msra.mxu0 0.0
    %1545 = vmatprep.subr.mxu0 0.0
    %1546 = vmatpush1.msra.mxu0 0.0
    %1547 = vmatprep.subr.mxu0 0.0
    %1548 = vmatpush1.msra.mxu0 0.0
    %1549 = vmatprep.subr.mxu0 0.0
    %1550 = vmatpush1.msra.mxu0 0.0
    %1551 = vmatprep.subr.mxu0 0.0
    %1552 = vmatpush1.msra.mxu0 0.0
    %1553 = vmatprep.subr.mxu0 0.0
    %1554 = vmatpush1.msra.mxu0 0.0
    %1555 = vmatprep.subr.mxu0 0.0
    %1556 = vmatpush1.msra.mxu0 0.0
    %1557 = vmatprep.subr.mxu0 0.0
    %1558 = vmatpush1.msra.mxu0 0.0
    %1559 = vmatprep.subr.mxu0 0.0
    %1560 = vmatpush1.msra.mxu0 0.0
    %1561 = vmatprep.mubr.f32.mxu0 0.0
    %1562 = vmatmul.mubr.f32.gmra.mrb[0].mxu0 %v1468
    %v1563 = vpop.f32.mrb[0].mxu0
    %v1564 = vadd.f32 0.0, %v1563
    %v1565 = vpop.f32.mrb[0].mxu0
    %1566 = vmatprep.mubr.f32.mxu0 0.0
    %1567 = vmatmul.mubr.f32.gmra.mrb[0].mxu0 %v1471
    %v1568 = vpop.f32.mrb[0].mxu0
    %v1569 = vadd.f32 0.0, %v1568
    %v1570 = vpop.f32.mrb[0].mxu0
    %1571 = vmatprep.mubr.f32.mxu0 0.0
    %1572 = vmatmul.mubr.f32.gmra.mrb[0].mxu0 %v1474
    %v1573 = vpop.f32.mrb[0].mxu0
    %v1574 = vadd.f32 0.0, %v1573
    %v1575 = vpop.f32.mrb[0].mxu0
    %1576 = vmatprep.mubr.f32.mxu0 0.0
    %1577 = vmatmul.mubr.f32.gmra.mrb[0].mxu0 %v1477
    %v1578 = vpop.f32.mrb[0].mxu0
    %v1579 = vadd.f32 0.0, %v1578
    %v1580 = vpop.f32.mrb[0].mxu0
    %1581 = vmatprep.mubr.f32.mxu0 0.0
    %1582 = vmatmul.mubr.f32.gmra.mrb[0].mxu0 %v1480
    %v1583 = vpop.f32.mrb[0].mxu0
    %v1584 = vadd.f32 0.0, %v1583
    %v1585 = vpop.f32.mrb[0].mxu0
    %1586 = vmatprep.mubr.f32.mxu0 0.0
    %1587 = vmatmul.mubr.f32.gmra.mrb[0].mxu0 %v1483
    %v1588 = vpop.f32.mrb[0].mxu0
    %v1589 = vadd.f32 0.0, %v1588
    %v1590 = vpop.f32.mrb[0].mxu0
    %1591 = vmatprep.mubr.f32.mxu0 0.0
    %1592 = vmatmul.mubr.f32.gmra.mrb[0].mxu0 %v1486
    %v1593 = vpop.f32.mrb[0].mxu0
    %v1594 = vadd.f32 0.0, %v1593
    %v1595 = vpop.f32.mrb[0].mxu0
    %1596 = vmatprep.mubr.f32.mxu0 0.0
    %1597 = vmatmul.mubr.f32.gmra.mrb[0].mxu0 %v1489
    %v1598 = vpop.f32.mrb[0].mxu0
    %v1599 = vadd.f32 0.0, %v1598
    %v1600 = vpop.f32.mrb[0].mxu0
    %1601 = vmatprep.mubr.f32.mxu0 0.0
    %1602 = vmatmul.mubr.f32.gmra.mrb[0].mxu0 %v1492
    %v1603 = vpop.f32.mrb[0].mxu0
    %v1604 = vadd.f32 0.0, %v1603
    %v1605 = vpop.f32.mrb[0].mxu0
    %1606 = vmatprep.mubr.f32.mxu0 0.0
    %1607 = vmatmul.mubr.f32.gmra.mrb[0].mxu0 %v1495
    %v1608 = vpop.f32.mrb[0].mxu0
    %v1609 = vadd.f32 0.0, %v1608
    %v1610 = vpop.f32.mrb[0].mxu0
    %1611 = vdwg.mxu0
    %v1612 = vadd.f32 %v1564, %v1594
    %v1613 = vadd.f32 %v1569, %v1599
    %v1614 = vadd.f32 %v1612, %v1459
    %v1615 = vadd.f32 %v1613, %v1460
    %v1616 = vxor.u32 %v1614, 2147483648
    %v1617 = vxor.u32 %v1615, 2147483648
    %v1618 = vmul.f32 %v1616, 1.442695
    %v1619 = vpow.pop %v1618
    %v1620 = vmul.f32 %v1617, 1.442695
    %v1621 = vpow.pop %v1620
    %v1622 = vadd.f32 %v1619, 1.0
    %v1623 = vadd.f32 %v1621, 1.0
    %v1624 = vrcp.pop %v1622
    %v1625 = vmul.f32 1.0, %v1624
    %v1626 = vrcp.pop %v1623
    %v1627 = vmul.f32 1.0, %v1626
    %v1628 = vadd.f32 %v1574, %v1604
    %v1629 = vadd.f32 %v1579, %v1609
    %v1630 = vadd.f32 %v1628, %v1461
    %v1631 = vadd.f32 %v1629, %v1462
    %v1632 = vxor.u32 %v1630, 2147483648
    %v1633 = vxor.u32 %v1631, 2147483648
    %v1634 = vmul.f32 %v1632, 1.442695
    %v1635 = vpow.pop %v1634
    %v1636 = vmul.f32 %v1633, 1.442695
    %v1637 = vpow.pop %v1636
    %v1638 = vadd.f32 %v1635, 1.0
    %v1639 = vadd.f32 %v1637, 1.0
    %v1640 = vrcp.pop %v1638
    %v1641 = vmul.f32 1.0, %v1640
    %v1642 = vrcp.pop %v1639
    %v1643 = vmul.f32 1.0, %v1642
    %v1644 = vmul.f32 %v1641, %v1465
    %v1645 = vmul.f32 %v1643, %v1466
    %v1647 = vsel %vm283, %v1457, 0
    %v1650 = vsel %vm283, %v1458, 0
    %1652 = vmatprep.subr.mxu0 0.0
    %1653 = vmatpush1.msra.mxu0 %v1644
    %1654 = vmatprep.subr.mxu0 0.0
    %1655 = vmatpush1.msra.mxu0 %v1645
    %1656 = vmatprep.subr.mxu0 0.0
    %1657 = vmatpush1.msra.mxu0 0.0
    %1658 = vmatprep.subr.mxu0 0.0
    %1659 = vmatpush1.msra.mxu0 0.0
    %1660 = vmatprep.subr.mxu0 0.0
    %1661 = vmatpush1.msra.mxu0 0.0
    %1662 = vmatprep.subr.mxu0 0.0
    %1663 = vmatpush1.msra.mxu0 0.0
    %1664 = vmatprep.subr.mxu0 0.0
    %1665 = vmatpush1.msra.mxu0 0.0
    %1666 = vmatprep.subr.mxu0 0.0
    %1667 = vmatpush1.msra.mxu0 0.0
    %1668 = vmatprep.subr.mxu0 0.0
    %1669 = vmatpush1.msra.mxu0 0.0
    %1670 = vmatprep.subr.mxu0 0.0
    %1671 = vmatpush1.msra.mxu0 0.0
    %1672 = vmatprep.subr.mxu0 0.0
    %1673 = vmatpush1.msra.mxu0 0.0
    %1674 = vmatprep.subr.mxu0 0.0
    %1675 = vmatpush1.msra.mxu0 0.0
    %1676 = vmatprep.subr.mxu0 0.0
    %1677 = vmatpush1.msra.mxu0 0.0
    %1678 = vmatprep.subr.mxu0 0.0
    %1679 = vmatpush1.msra.mxu0 0.0
    %1680 = vmatprep.subr.mxu0 0.0
    %1681 = vmatpush1.msra.mxu0 0.0
    %1682 = vmatprep.subr.mxu0 0.0
    %1683 = vmatpush1.msra.mxu0 0.0
    %1684 = vmatprep.subr.mxu0 0.0
    %1685 = vmatpush1.msra.mxu0 0.0
    %1686 = vmatprep.subr.mxu0 0.0
    %1687 = vmatpush1.msra.mxu0 0.0
    %1688 = vmatprep.subr.mxu0 0.0
    %1689 = vmatpush1.msra.mxu0 0.0
    %1690 = vmatprep.subr.mxu0 0.0
    %1691 = vmatpush1.msra.mxu0 0.0
    %1692 = vmatprep.subr.mxu0 0.0
    %1693 = vmatpush1.msra.mxu0 0.0
    %1694 = vmatprep.subr.mxu0 0.0
    %1695 = vmatpush1.msra.mxu0 0.0
    %1696 = vmatprep.subr.mxu0 0.0
    %1697 = vmatpush1.msra.mxu0 0.0
    %1698 = vmatprep.subr.mxu0 0.0
    %1699 = vmatpush1.msra.mxu0 0.0
    %1700 = vmatprep.subr.mxu0 0.0
    %1701 = vmatpush1.msra.mxu0 0.0
    %1702 = vmatprep.subr.mxu0 0.0
    %1703 = vmatpush1.msra.mxu0 0.0
    %1704 = vmatprep.subr.mxu0 0.0
    %1705 = vmatpush1.msra.mxu0 0.0
    %1706 = vmatprep.subr.mxu0 0.0
    %1707 = vmatpush1.msra.mxu0 0.0
    %1708 = vmatprep.subr.mxu0 0.0
    %1709 = vmatpush1.msra.mxu0 0.0
    %1710 = vmatprep.subr.mxu0 0.0
    %1711 = vmatpush1.msra.mxu0 0.0
    %1712 = vmatprep.subr.mxu0 0.0
    %1713 = vmatpush1.msra.mxu0 0.0
    %1714 = vmatprep.subr.mxu0 0.0
    %1715 = vmatpush1.msra.mxu0 0.0
    %1716 = vmatprep.mubr.f32.mxu0 0.0
    %1717 = vmatmul.mubr.f32.gmra.mrb[0].mxu0 %v1647
    %v1718 = vpop.f32.mrb[0].mxu0
    %v1719 = vadd.f32 0.0, %v1718
    %v1720 = vpop.f32.mrb[0].mxu0
    %1721 = vmatprep.mubr.f32.mxu0 0.0
    %1722 = vmatmul.mubr.f32.gmra.mrb[0].mxu0 %v1650
    %v1723 = vpop.f32.mrb[0].mxu0
    %v1724 = vadd.f32 0.0, %v1723
    %v1725 = vpop.f32.mrb[0].mxu0
    %1726 = vdwg.mxu0
    %v1727 = vadd.f32 %v1584, %v1719
    %v1728 = vadd.f32 %v1589, %v1724
    %v1729 = vadd.f32 %v1727, %v1463
    %v1730 = vadd.f32 %v1728, %v1464
    %v1731 = vtanh.pop %v1729
    %v1732 = vtanh.pop %v1730
    %v1733 = vsub.f32 1.0, %v1625
    %v1734 = vsub.f32 1.0, %v1627
    %v1735 = vmul.f32 %v1733, %v1465
    %v1736 = vmul.f32 %v1734, %v1466
    %v1737 = vmul.f32 %v1625, %v1731
    %v1738 = vmul.f32 %v1627, %v1732
    %v1739 = vadd.f32 %v1735, %v1737
    %v1740 = vadd.f32 %v1736, %v1738
    %1741 = vst.msk [vmem:[#allocation2] sm:$0xff] %vm283, %v1739
    %1742 = vst.msk [vmem:[#allocation2 + $0x8] sm:$0xff] %vm283, %v1740
    %1743 = vmatprep.subr.mxu0 0.0
    %1744 = vmatpush1.msra.mxu0 %v1739
    %1745 = vmatprep.subr.mxu0 0.0
    %1746 = vmatpush1.msra.mxu0 %v1740
    %1747 = vmatprep.subr.mxu0 0.0
    %1748 = vmatpush1.msra.mxu0 0.0
    %1749 = vmatprep.subr.mxu0 0.0
    %1750 = vmatpush1.msra.mxu0 0.0
    %1751 = vmatprep.subr.mxu0 0.0
    %1752 = vmatpush1.msra.mxu0 0.0
    %1753 = vmatprep.subr.mxu0 0.0
    %1754 = vmatpush1.msra.mxu0 0.0
    %1755 = vmatprep.subr.mxu0 0.0
    %1756 = vmatpush1.msra.mxu0 0.0
    %1757 = vmatprep.subr.mxu0 0.0
    %1758 = vmatpush1.msra.mxu0 0.0
    %1759 = vmatprep.subr.mxu0 0.0
    %1760 = vmatpush1.msra.mxu0 0.0
    %1761 = vmatprep.subr.mxu0 0.0
    %1762 = vmatpush1.msra.mxu0 0.0
    %1763 = vmatprep.subr.mxu0 0.0
    %1764 = vmatpush1.msra.mxu0 0.0
    %1765 = vmatprep.subr.mxu0 0.0
    %1766 = vmatpush1.msra.mxu0 0.0
    %1767 = vmatprep.subr.mxu0 0.0
    %1768 = vmatpush1.msra.mxu0 0.0
    %1769 = vmatprep.subr.mxu0 0.0
    %1770 = vmatpush1.msra.mxu0 0.0
    %1771 = vmatprep.subr.mxu0 0.0
    %1772 = vmatpush1.msra.mxu0 0.0
    %1773 = vmatprep.subr.mxu0 0.0
    %1774 = vmatpush1.msra.mxu0 0.0
    %1775 = vmatprep.subr.mxu0 0.0
    %1776 = vmatpush1.msra.mxu0 0.0
    %1777 = vmatprep.subr.mxu0 0.0
    %1778 = vmatpush1.msra.mxu0 0.0
    %1779 = vmatprep.subr.mxu0 0.0
    %1780 = vmatpush1.msra.mxu0 0.0
    %1781 = vmatprep.subr.mxu0 0.0
    %1782 = vmatpush1.msra.mxu0 0.0
    %1783 = vmatprep.subr.mxu0 0.0
    %1784 = vmatpush1.msra.mxu0 0.0
    %1785 = vmatprep.subr.mxu0 0.0
    %1786 = vmatpush1.msra.mxu0 0.0
    %1787 = vmatprep.subr.mxu0 0.0
    %1788 = vmatpush1.msra.mxu0 0.0
    %1789 = vmatprep.subr.mxu0 0.0
    %1790 = vmatpush1.msra.mxu0 0.0
    %1791 = vmatprep.subr.mxu0 0.0
    %1792 = vmatpush1.msra.mxu0 0.0
    %1793 = vmatprep.subr.mxu0 0.0
    %1794 = vmatpush1.msra.mxu0 0.0
    %1795 = vmatprep.subr.mxu0 0.0
    %1796 = vmatpush1.msra.mxu0 0.0
    %1797 = vmatprep.subr.mxu0 0.0
    %1798 = vmatpush1.msra.mxu0 0.0
    %1799 = vmatprep.subr.mxu0 0.0
    %1800 = vmatpush1.msra.mxu0 0.0
    %1801 = vmatprep.subr.mxu0 0.0
    %1802 = vmatpush1.msra.mxu0 0.0
    %1803 = vmatprep.subr.mxu0 0.0
    %1804 = vmatpush1.msra.mxu0 0.0
    %1805 = vmatprep.subr.mxu0 0.0
    %1806 = vmatpush1.msra.mxu0 0.0
    %1807 = vmatprep.mubr.f32.mxu0 0.0
    %1808 = vmatmul.mubr.f32.gmra.mrb[0].mxu0 %v1468
    %v1809 = vpop.f32.mrb[0].mxu0
    %v1810 = vadd.f32 0.0, %v1809
    %v1811 = vpop.f32.mrb[0].mxu0
    %1812 = vmatprep.mubr.f32.mxu0 0.0
    %1813 = vmatmul.mubr.f32.gmra.mrb[0].mxu0 %v1471
    %v1814 = vpop.f32.mrb[0].mxu0
    %v1815 = vadd.f32 0.0, %v1814
    %v1816 = vpop.f32.mrb[0].mxu0
    %1817 = vmatprep.mubr.f32.mxu0 0.0
    %1818 = vmatmul.mubr.f32.gmra.mrb[0].mxu0 %v1474
    %v1819 = vpop.f32.mrb[0].mxu0
    %v1820 = vadd.f32 0.0, %v1819
    %v1821 = vpop.f32.mrb[0].mxu0
    %1822 = vmatprep.mubr.f32.mxu0 0.0
    %1823 = vmatmul.mubr.f32.gmra.mrb[0].mxu0 %v1477
    %v1824 = vpop.f32.mrb[0].mxu0
    %v1825 = vadd.f32 0.0, %v1824
    %v1826 = vpop.f32.mrb[0].mxu0
    %1827 = vmatprep.mubr.f32.mxu0 0.0
    %1828 = vmatmul.mubr.f32.gmra.mrb[0].mxu0 %v1480
    %v1829 = vpop.f32.mrb[0].mxu0
    %v1830 = vadd.f32 0.0, %v1829
    %v1831 = vpop.f32.mrb[0].mxu0
    %1832 = vmatprep.mubr.f32.mxu0 0.0
    %1833 = vmatmul.mubr.f32.gmra.mrb[0].mxu0 %v1483
    %v1834 = vpop.f32.mrb[0].mxu0
    %v1835 = vadd.f32 0.0, %v1834
    %v1836 = vpop.f32.mrb[0].mxu0
    %1837 = vmatprep.mubr.f32.mxu0 0.0
    %1838 = vmatmul.mubr.f32.gmra.mrb[0].mxu0 %v1486
    %v1839 = vpop.f32.mrb[0].mxu0
    %v1840 = vadd.f32 0.0, %v1839
    %v1841 = vpop.f32.mrb[0].mxu0
    %1842 = vmatprep.mubr.f32.mxu0 0.0
    %1843 = vmatmul.mubr.f32.gmra.mrb[0].mxu0 %v1489
    %v1844 = vpop.f32.mrb[0].mxu0
    %v1845 = vadd.f32 0.0, %v1844
    %v1846 = vpop.f32.mrb[0].mxu0
    %1847 = vmatprep.mubr.f32.mxu0 0.0
    %1848 = vmatmul.mubr.f32.gmra.mrb[0].mxu0 %v1492
    %v1849 = vpop.f32.mrb[0].mxu0
    %v1850 = vadd.f32 0.0, %v1849
    %v1851 = vpop.f32.mrb[0].mxu0
    %1852 = vmatprep.mubr.f32.mxu0 0.0
    %1853 = vmatmul.mubr.f32.gmra.mrb[0].mxu0 %v1495
    %v1854 = vpop.f32.mrb[0].mxu0
    %v1855 = vadd.f32 0.0, %v1854
    %v1856 = vpop.f32.mrb[0].mxu0
    %1857 = vdwg.mxu0
    %v1858 = vadd.f32 %v1810, %v1840
    %v1859 = vadd.f32 %v1815, %v1845
    %v1860 = vadd.f32 %v1858, %v1459
    %v1861 = vadd.f32 %v1859, %v1460
    %v1862 = vxor.u32 %v1860, 2147483648
    %v1863 = vxor.u32 %v1861, 2147483648
    %v1864 = vmul.f32 %v1862, 1.442695
    %v1865 = vpow.pop %v1864
    %v1866 = vmul.f32 %v1863, 1.442695
    %v1867 = vpow.pop %v1866
    %v1868 = vadd.f32 %v1865, 1.0
    %v1869 = vadd.f32 %v1867, 1.0
    %v1870 = vrcp.pop %v1868
    %v1871 = vmul.f32 1.0, %v1870
    %v1872 = vrcp.pop %v1869
    %v1873 = vmul.f32 1.0, %v1872
    %v1874 = vadd.f32 %v1820, %v1850
    %v1875 = vadd.f32 %v1825, %v1855
    %v1876 = vadd.f32 %v1874, %v1461
    %v1877 = vadd.f32 %v1875, %v1462
    %v1878 = vxor.u32 %v1876, 2147483648
    %v1879 = vxor.u32 %v1877, 2147483648
    %v1880 = vmul.f32 %v1878, 1.442695
    %v1881 = vpow.pop %v1880
    %v1882 = vmul.f32 %v1879, 1.442695
    %v1883 = vpow.pop %v1882
    %v1884 = vadd.f32 %v1881, 1.0
    %v1885 = vadd.f32 %v1883, 1.0
    %v1886 = vrcp.pop %v1884
    %v1887 = vmul.f32 1.0, %v1886
    %v1888 = vrcp.pop %v1885
    %v1889 = vmul.f32 1.0, %v1888
    %v1890 = vmul.f32 %v1887, %v1739
    %v1891 = vmul.f32 %v1889, %v1740
    %1892 = vmatprep.subr.mxu0 0.0
    %1893 = vmatpush1.msra.mxu0 %v1890
    %1894 = vmatprep.subr.mxu0 0.0
    %1895 = vmatpush1.msra.mxu0 %v1891
    %1896 = vmatprep.subr.mxu0 0.0
    %1897 = vmatpush1.msra.mxu0 0.0
    %1898 = vmatprep.subr.mxu0 0.0
    %1899 = vmatpush1.msra.mxu0 0.0
    %1900 = vmatprep.subr.mxu0 0.0
    %1901 = vmatpush1.msra.mxu0 0.0
    %1902 = vmatprep.subr.mxu0 0.0
    %1903 = vmatpush1.msra.mxu0 0.0
    %1904 = vmatprep.subr.mxu0 0.0
    %1905 = vmatpush1.msra.mxu0 0.0
    %1906 = vmatprep.subr.mxu0 0.0
    %1907 = vmatpush1.msra.mxu0 0.0
    %1908 = vmatprep.subr.mxu0 0.0
    %1909 = vmatpush1.msra.mxu0 0.0
    %1910 = vmatprep.subr.mxu0 0.0
    %1911 = vmatpush1.msra.mxu0 0.0
    %1912 = vmatprep.subr.mxu0 0.0
    %1913 = vmatpush1.msra.mxu0 0.0
    %1914 = vmatprep.subr.mxu0 0.0
    %1915 = vmatpush1.msra.mxu0 0.0
    %1916 = vmatprep.subr.mxu0 0.0
    %1917 = vmatpush1.msra.mxu0 0.0
    %1918 = vmatprep.subr.mxu0 0.0
    %1919 = vmatpush1.msra.mxu0 0.0
    %1920 = vmatprep.subr.mxu0 0.0
    %1921 = vmatpush1.msra.mxu0 0.0
    %1922 = vmatprep.subr.mxu0 0.0
    %1923 = vmatpush1.msra.mxu0 0.0
    %1924 = vmatprep.subr.mxu0 0.0
    %1925 = vmatpush1.msra.mxu0 0.0
    %1926 = vmatprep.subr.mxu0 0.0
    %1927 = vmatpush1.msra.mxu0 0.0
    %1928 = vmatprep.subr.mxu0 0.0
    %1929 = vmatpush1.msra.mxu0 0.0
    %1930 = vmatprep.subr.mxu0 0.0
    %1931 = vmatpush1.msra.mxu0 0.0
    %1932 = vmatprep.subr.mxu0 0.0
    %1933 = vmatpush1.msra.mxu0 0.0
    %1934 = vmatprep.subr.mxu0 0.0
    %1935 = vmatpush1.msra.mxu0 0.0
    %1936 = vmatprep.subr.mxu0 0.0
    %1937 = vmatpush1.msra.mxu0 0.0
    %1938 = vmatprep.subr.mxu0 0.0
    %1939 = vmatpush1.msra.mxu0 0.0
    %1940 = vmatprep.subr.mxu0 0.0
    %1941 = vmatpush1.msra.mxu0 0.0
    %1942 = vmatprep.subr.mxu0 0.0
    %1943 = vmatpush1.msra.mxu0 0.0
    %1944 = vmatprep.subr.mxu0 0.0
    %1945 = vmatpush1.msra.mxu0 0.0
    %1946 = vmatprep.subr.mxu0 0.0
    %1947 = vmatpush1.msra.mxu0 0.0
    %1948 = vmatprep.subr.mxu0 0.0
    %1949 = vmatpush1.msra.mxu0 0.0
    %1950 = vmatprep.subr.mxu0 0.0
    %1951 = vmatpush1.msra.mxu0 0.0
    %1952 = vmatprep.subr.mxu0 0.0
    %1953 = vmatpush1.msra.mxu0 0.0
    %1954 = vmatprep.subr.mxu0 0.0
    %1955 = vmatpush1.msra.mxu0 0.0
    %1956 = vmatprep.mubr.f32.mxu0 0.0
    %1957 = vmatmul.mubr.f32.gmra.mrb[0].mxu0 %v1647
    %v1958 = vpop.f32.mrb[0].mxu0
    %v1959 = vadd.f32 0.0, %v1958
    %v1960 = vpop.f32.mrb[0].mxu0
    %1961 = vmatprep.mubr.f32.mxu0 0.0
    %1962 = vmatmul.mubr.f32.gmra.mrb[0].mxu0 %v1650
    %v1963 = vpop.f32.mrb[0].mxu0
    %v1964 = vadd.f32 0.0, %v1963
    %v1965 = vpop.f32.mrb[0].mxu0
    %1966 = vdwg.mxu0
    %v1967 = vadd.f32 %v1830, %v1959
    %v1968 = vadd.f32 %v1835, %v1964
    %v1969 = vadd.f32 %v1967, %v1463
    %v1970 = vadd.f32 %v1968, %v1464
    %v1971 = vtanh.pop %v1969
    %v1972 = vtanh.pop %v1970
    %v1973 = vsub.f32 1.0, %v1871
    %v1974 = vsub.f32 1.0, %v1873
    %v1975 = vmul.f32 %v1973, %v1739
    %v1976 = vmul.f32 %v1974, %v1740
    %v1977 = vmul.f32 %v1871, %v1971
    %v1978 = vmul.f32 %v1873, %v1972
    %v1979 = vadd.f32 %v1975, %v1977
    %v1980 = vadd.f32 %v1976, %v1978
    %1981 = vst.msk [vmem:[#allocation2 + $0x10] sm:$0xff] %vm283, %v1979
    %1982 = vst.msk [vmem:[#allocation2 + $0x18] sm:$0xff] %vm283, %v1980
    %1983 = vmatprep.subr.mxu0 0.0
    %1984 = vmatpush1.msra.mxu0 %v1979
    %1985 = vmatprep.subr.mxu0 0.0
    %1986 = vmatpush1.msra.mxu0 %v1980
    %1987 = vmatprep.subr.mxu0 0.0
    %1988 = vmatpush1.msra.mxu0 0.0
    %1989 = vmatprep.subr.mxu0 0.0
    %1990 = vmatpush1.msra.mxu0 0.0
    %1991 = vmatprep.subr.mxu0 0.0
    %1992 = vmatpush1.msra.mxu0 0.0
    %1993 = vmatprep.subr.mxu0 0.0
    %1994 = vmatpush1.msra.mxu0 0.0
    %1995 = vmatprep.subr.mxu0 0.0
    %1996 = vmatpush1.msra.mxu0 0.0
    %1997 = vmatprep.subr.mxu0 0.0
    %1998 = vmatpush1.msra.mxu0 0.0
    %1999 = vmatprep.subr.mxu0 0.0
    %2000 = vmatpush1.msra.mxu0 0.0
    %2001 = vmatprep.subr.mxu0 0.0
    %2002 = vmatpush1.msra.mxu0 0.0
    %2003 = vmatprep.subr.mxu0 0.0
    %2004 = vmatpush1.msra.mxu0 0.0
    %2005 = vmatprep.subr.mxu0 0.0
    %2006 = vmatpush1.msra.mxu0 0.0
    %2007 = vmatprep.subr.mxu0 0.0
    %2008 = vmatpush1.msra.mxu0 0.0
    %2009 = vmatprep.subr.mxu0 0.0
    %2010 = vmatpush1.msra.mxu0 0.0
    %2011 = vmatprep.subr.mxu0 0.0
    %2012 = vmatpush1.msra.mxu0 0.0
    %2013 = vmatprep.subr.mxu0 0.0
    %2014 = vmatpush1.msra.mxu0 0.0
    %2015 = vmatprep.subr.mxu0 0.0
    %2016 = vmatpush1.msra.mxu0 0.0
    %2017 = vmatprep.subr.mxu0 0.0
    %2018 = vmatpush1.msra.mxu0 0.0
    %2019 = vmatprep.subr.mxu0 0.0
    %2020 = vmatpush1.msra.mxu0 0.0
    %2021 = vmatprep.subr.mxu0 0.0
    %2022 = vmatpush1.msra.mxu0 0.0
    %2023 = vmatprep.subr.mxu0 0.0
    %2024 = vmatpush1.msra.mxu0 0.0
    %2025 = vmatprep.subr.mxu0 0.0
    %2026 = vmatpush1.msra.mxu0 0.0
    %2027 = vmatprep.subr.mxu0 0.0
    %2028 = vmatpush1.msra.mxu0 0.0
    %2029 = vmatprep.subr.mxu0 0.0
    %2030 = vmatpush1.msra.mxu0 0.0
    %2031 = vmatprep.subr.mxu0 0.0
    %2032 = vmatpush1.msra.mxu0 0.0
    %2033 = vmatprep.subr.mxu0 0.0
    %2034 = vmatpush1.msra.mxu0 0.0
    %2035 = vmatprep.subr.mxu0 0.0
    %2036 = vmatpush1.msra.mxu0 0.0
    %2037 = vmatprep.subr.mxu0 0.0
    %2038 = vmatpush1.msra.mxu0 0.0
    %2039 = vmatprep.subr.mxu0 0.0
    %2040 = vmatpush1.msra.mxu0 0.0
    %2041 = vmatprep.subr.mxu0 0.0
    %2042 = vmatpush1.msra.mxu0 0.0
    %2043 = vmatprep.subr.mxu0 0.0
    %2044 = vmatpush1.msra.mxu0 0.0
    %2045 = vmatprep.subr.mxu0 0.0
    %2046 = vmatpush1.msra.mxu0 0.0
    %2047 = vmatprep.mubr.f32.mxu0 0.0
    %2048 = vmatmul.mubr.f32.gmra.mrb[0].mxu0 %v1468
    %v2049 = vpop.f32.mrb[0].mxu0
    %v2050 = vadd.f32 0.0, %v2049
    %v2051 = vpop.f32.mrb[0].mxu0
    %2052 = vmatprep.mubr.f32.mxu0 0.0
    %2053 = vmatmul.mubr.f32.gmra.mrb[0].mxu0 %v1471
    %v2054 = vpop.f32.mrb[0].mxu0
    %v2055 = vadd.f32 0.0, %v2054
    %v2056 = vpop.f32.mrb[0].mxu0
    %2057 = vmatprep.mubr.f32.mxu0 0.0
    %2058 = vmatmul.mubr.f32.gmra.mrb[0].mxu0 %v1474
    %v2059 = vpop.f32.mrb[0].mxu0
    %v2060 = vadd.f32 0.0, %v2059
    %v2061 = vpop.f32.mrb[0].mxu0
    %2062 = vmatprep.mubr.f32.mxu0 0.0
    %2063 = vmatmul.mubr.f32.gmra.mrb[0].mxu0 %v1477
    %v2064 = vpop.f32.mrb[0].mxu0
    %v2065 = vadd.f32 0.0, %v2064
    %v2066 = vpop.f32.mrb[0].mxu0
    %2067 = vmatprep.mubr.f32.mxu0 0.0
    %2068 = vmatmul.mubr.f32.gmra.mrb[0].mxu0 %v1480
    %v2069 = vpop.f32.mrb[0].mxu0
    %v2070 = vadd.f32 0.0, %v2069
    %v2071 = vpop.f32.mrb[0].mxu0
    %2072 = vmatprep.mubr.f32.mxu0 0.0
    %2073 = vmatmul.mubr.f32.gmra.mrb[0].mxu0 %v1483
    %v2074 = vpop.f32.mrb[0].mxu0
    %v2075 = vadd.f32 0.0, %v2074
    %v2076 = vpop.f32.mrb[0].mxu0
    %2077 = vmatprep.mubr.f32.mxu0 0.0
    %2078 = vmatmul.mubr.f32.gmra.mrb[0].mxu0 %v1486
    %v2079 = vpop.f32.mrb[0].mxu0
    %v2080 = vadd.f32 0.0, %v2079
    %v2081 = vpop.f32.mrb[0].mxu0
    %2082 = vmatprep.mubr.f32.mxu0 0.0
    %2083 = vmatmul.mubr.f32.gmra.mrb[0].mxu0 %v1489
    %v2084 = vpop.f32.mrb[0].mxu0
    %v2085 = vadd.f32 0.0, %v2084
    %v2086 = vpop.f32.mrb[0].mxu0
    %2087 = vmatprep.mubr.f32.mxu0 0.0
    %2088 = vmatmul.mubr.f32.gmra.mrb[0].mxu0 %v1492
    %v2089 = vpop.f32.mrb[0].mxu0
    %v2090 = vadd.f32 0.0, %v2089
    %v2091 = vpop.f32.mrb[0].mxu0
    %2092 = vmatprep.mubr.f32.mxu0 0.0
    %2093 = vmatmul.mubr.f32.gmra.mrb[0].mxu0 %v1495
    %v2094 = vpop.f32.mrb[0].mxu0
    %v2095 = vadd.f32 0.0, %v2094
    %v2096 = vpop.f32.mrb[0].mxu0
    %2097 = vdwg.mxu0
    %v2098 = vadd.f32 %v2050, %v2080
    %v2099 = vadd.f32 %v2055, %v2085
    %v2100 = vadd.f32 %v2098, %v1459
    %v2101 = vadd.f32 %v2099, %v1460
    %v2102 = vxor.u32 %v2100, 2147483648
    %v2103 = vxor.u32 %v2101, 2147483648
    %v2104 = vmul.f32 %v2102, 1.442695
    %v2105 = vpow.pop %v2104
    %v2106 = vmul.f32 %v2103, 1.442695
    %v2107 = vpow.pop %v2106
    %v2108 = vadd.f32 %v2105, 1.0
    %v2109 = vadd.f32 %v2107, 1.0
    %v2110 = vrcp.pop %v2108
    %v2111 = vmul.f32 1.0, %v2110
    %v2112 = vrcp.pop %v2109
    %v2113 = vmul.f32 1.0, %v2112
    %v2114 = vadd.f32 %v2060, %v2090
    %v2115 = vadd.f32 %v2065, %v2095
    %v2116 = vadd.f32 %v2114, %v1461
    %v2117 = vadd.f32 %v2115, %v1462
    %v2118 = vxor.u32 %v2116, 2147483648
    %v2119 = vxor.u32 %v2117, 2147483648
    %v2120 = vmul.f32 %v2118, 1.442695
    %v2121 = vpow.pop %v2120
    %v2122 = vmul.f32 %v2119, 1.442695
    %v2123 = vpow.pop %v2122
    %v2124 = vadd.f32 %v2121, 1.0
    %v2125 = vadd.f32 %v2123, 1.0
    %v2126 = vrcp.pop %v2124
    %v2127 = vmul.f32 1.0, %v2126
    %v2128 = vrcp.pop %v2125
    %v2129 = vmul.f32 1.0, %v2128
    %v2130 = vmul.f32 %v2127, %v1979
    %v2131 = vmul.f32 %v2129, %v1980
    %2132 = vmatprep.subr.mxu0 0.0
    %2133 = vmatpush1.msra.mxu0 %v2130
    %2134 = vmatprep.subr.mxu0 0.0
    %2135 = vmatpush1.msra.mxu0 %v2131
    %2136 = vmatprep.subr.mxu0 0.0
    %2137 = vmatpush1.msra.mxu0 0.0
    %2138 = vmatprep.subr.mxu0 0.0
    %2139 = vmatpush1.msra.mxu0 0.0
    %2140 = vmatprep.subr.mxu0 0.0
    %2141 = vmatpush1.msra.mxu0 0.0
    %2142 = vmatprep.subr.mxu0 0.0
    %2143 = vmatpush1.msra.mxu0 0.0
    %2144 = vmatprep.subr.mxu0 0.0
    %2145 = vmatpush1.msra.mxu0 0.0
    %2146 = vmatprep.subr.mxu0 0.0
    %2147 = vmatpush1.msra.mxu0 0.0
    %2148 = vmatprep.subr.mxu0 0.0
    %2149 = vmatpush1.msra.mxu0 0.0
    %2150 = vmatprep.subr.mxu0 0.0
    %2151 = vmatpush1.msra.mxu0 0.0
    %2152 = vmatprep.subr.mxu0 0.0
    %2153 = vmatpush1.msra.mxu0 0.0
    %2154 = vmatprep.subr.mxu0 0.0
    %2155 = vmatpush1.msra.mxu0 0.0
    %2156 = vmatprep.subr.mxu0 0.0
    %2157 = vmatpush1.msra.mxu0 0.0
    %2158 = vmatprep.subr.mxu0 0.0
    %2159 = vmatpush1.msra.mxu0 0.0
    %2160 = vmatprep.subr.mxu0 0.0
    %2161 = vmatpush1.msra.mxu0 0.0
    %2162 = vmatprep.subr.mxu0 0.0
    %2163 = vmatpush1.msra.mxu0 0.0
    %2164 = vmatprep.subr.mxu0 0.0
    %2165 = vmatpush1.msra.mxu0 0.0
    %2166 = vmatprep.subr.mxu0 0.0
    %2167 = vmatpush1.msra.mxu0 0.0
    %2168 = vmatprep.subr.mxu0 0.0
    %2169 = vmatpush1.msra.mxu0 0.0
    %2170 = vmatprep.subr.mxu0 0.0
    %2171 = vmatpush1.msra.mxu0 0.0
    %2172 = vmatprep.subr.mxu0 0.0
    %2173 = vmatpush1.msra.mxu0 0.0
    %2174 = vmatprep.subr.mxu0 0.0
    %2175 = vmatpush1.msra.mxu0 0.0
    %2176 = vmatprep.subr.mxu0 0.0
    %2177 = vmatpush1.msra.mxu0 0.0
    %2178 = vmatprep.subr.mxu0 0.0
    %2179 = vmatpush1.msra.mxu0 0.0
    %2180 = vmatprep.subr.mxu0 0.0
    %2181 = vmatpush1.msra.mxu0 0.0
    %2182 = vmatprep.subr.mxu0 0.0
    %2183 = vmatpush1.msra.mxu0 0.0
    %2184 = vmatprep.subr.mxu0 0.0
    %2185 = vmatpush1.msra.mxu0 0.0
    %2186 = vmatprep.subr.mxu0 0.0
    %2187 = vmatpush1.msra.mxu0 0.0
    %2188 = vmatprep.subr.mxu0 0.0
    %2189 = vmatpush1.msra.mxu0 0.0
    %2190 = vmatprep.subr.mxu0 0.0
    %2191 = vmatpush1.msra.mxu0 0.0
    %2192 = vmatprep.subr.mxu0 0.0
    %2193 = vmatpush1.msra.mxu0 0.0
    %2194 = vmatprep.subr.mxu0 0.0
    %2195 = vmatpush1.msra.mxu0 0.0
    %2196 = vmatprep.mubr.f32.mxu0 0.0
    %2197 = vmatmul.mubr.f32.gmra.mrb[0].mxu0 %v1647
    %v2198 = vpop.f32.mrb[0].mxu0
    %v2199 = vadd.f32 0.0, %v2198
    %v2200 = vpop.f32.mrb[0].mxu0
    %2201 = vmatprep.mubr.f32.mxu0 0.0
    %2202 = vmatmul.mubr.f32.gmra.mrb[0].mxu0 %v1650
    %v2203 = vpop.f32.mrb[0].mxu0
    %v2204 = vadd.f32 0.0, %v2203
    %v2205 = vpop.f32.mrb[0].mxu0
    %2206 = vdwg.mxu0
    %v2207 = vadd.f32 %v2070, %v2199
    %v2208 = vadd.f32 %v2075, %v2204
    %v2209 = vadd.f32 %v2207, %v1463
    %v2210 = vadd.f32 %v2208, %v1464
    %v2211 = vtanh.pop %v2209
    %v2212 = vtanh.pop %v2210
    %v2213 = vsub.f32 1.0, %v2111
    %v2214 = vsub.f32 1.0, %v2113
    %v2215 = vmul.f32 %v2213, %v1979
    %v2216 = vmul.f32 %v2214, %v1980
    %v2217 = vmul.f32 %v2111, %v2211
    %v2218 = vmul.f32 %v2113, %v2212
    %v2219 = vadd.f32 %v2215, %v2217
    %v2220 = vadd.f32 %v2216, %v2218
    %2221 = vst.msk [vmem:[#allocation2 + $0x20] sm:$0xff] %vm283, %v2219
    %2222 = vst.msk [vmem:[#allocation2 + $0x28] sm:$0xff] %vm283, %v2220
    %2223 = vmatprep.subr.mxu0 0.0
    %2224 = vmatpush1.msra.mxu0 %v2219
    %2225 = vmatprep.subr.mxu0 0.0
    %2226 = vmatpush1.msra.mxu0 %v2220
    %2227 = vmatprep.subr.mxu0 0.0
    %2228 = vmatpush1.msra.mxu0 0.0
    %2229 = vmatprep.subr.mxu0 0.0
    %2230 = vmatpush1.msra.mxu0 0.0
    %2231 = vmatprep.subr.mxu0 0.0
    %2232 = vmatpush1.msra.mxu0 0.0
    %2233 = vmatprep.subr.mxu0 0.0
    %2234 = vmatpush1.msra.mxu0 0.0
    %2235 = vmatprep.subr.mxu0 0.0
    %2236 = vmatpush1.msra.mxu0 0.0
    %2237 = vmatprep.subr.mxu0 0.0
    %2238 = vmatpush1.msra.mxu0 0.0
    %2239 = vmatprep.subr.mxu0 0.0
    %2240 = vmatpush1.msra.mxu0 0.0
    %2241 = vmatprep.subr.mxu0 0.0
    %2242 = vmatpush1.msra.mxu0 0.0
    %2243 = vmatprep.subr.mxu0 0.0
    %2244 = vmatpush1.msra.mxu0 0.0
    %2245 = vmatprep.subr.mxu0 0.0
    %2246 = vmatpush1.msra.mxu0 0.0
    %2247 = vmatprep.subr.mxu0 0.0
    %2248 = vmatpush1.msra.mxu0 0.0
    %2249 = vmatprep.subr.mxu0 0.0
    %2250 = vmatpush1.msra.mxu0 0.0
    %2251 = vmatprep.subr.mxu0 0.0
    %2252 = vmatpush1.msra.mxu0 0.0
    %2253 = vmatprep.subr.mxu0 0.0
    %2254 = vmatpush1.msra.mxu0 0.0
    %2255 = vmatprep.subr.mxu0 0.0
    %2256 = vmatpush1.msra.mxu0 0.0
    %2257 = vmatprep.subr.mxu0 0.0
    %2258 = vmatpush1.msra.mxu0 0.0
    %2259 = vmatprep.subr.mxu0 0.0
    %2260 = vmatpush1.msra.mxu0 0.0
    %2261 = vmatprep.subr.mxu0 0.0
    %2262 = vmatpush1.msra.mxu0 0.0
    %2263 = vmatprep.subr.mxu0 0.0
    %2264 = vmatpush1.msra.mxu0 0.0
    %2265 = vmatprep.subr.mxu0 0.0
    %2266 = vmatpush1.msra.mxu0 0.0
    %2267 = vmatprep.subr.mxu0 0.0
    %2268 = vmatpush1.msra.mxu0 0.0
    %2269 = vmatprep.subr.mxu0 0.0
    %2270 = vmatpush1.msra.mxu0 0.0
    %2271 = vmatprep.subr.mxu0 0.0
    %2272 = vmatpush1.msra.mxu0 0.0
    %2273 = vmatprep.subr.mxu0 0.0
    %2274 = vmatpush1.msra.mxu0 0.0
    %2275 = vmatprep.subr.mxu0 0.0
    %2276 = vmatpush1.msra.mxu0 0.0
    %2277 = vmatprep.subr.mxu0 0.0
    %2278 = vmatpush1.msra.mxu0 0.0
    %2279 = vmatprep.subr.mxu0 0.0
    %2280 = vmatpush1.msra.mxu0 0.0
    %2281 = vmatprep.subr.mxu0 0.0
    %2282 = vmatpush1.msra.mxu0 0.0
    %2283 = vmatprep.subr.mxu0 0.0
    %2284 = vmatpush1.msra.mxu0 0.0
    %2285 = vmatprep.subr.mxu0 0.0
    %2286 = vmatpush1.msra.mxu0 0.0
    %2287 = vmatprep.mubr.f32.mxu0 0.0
    %2288 = vmatmul.mubr.f32.gmra.mrb[0].mxu0 %v1468
    %v2289 = vpop.f32.mrb[0].mxu0
    %v2290 = vadd.f32 0.0, %v2289
    %v2291 = vpop.f32.mrb[0].mxu0
    %2292 = vmatprep.mubr.f32.mxu0 0.0
    %2293 = vmatmul.mubr.f32.gmra.mrb[0].mxu0 %v1471
    %v2294 = vpop.f32.mrb[0].mxu0
    %v2295 = vadd.f32 0.0, %v2294
    %v2296 = vpop.f32.mrb[0].mxu0
    %2297 = vmatprep.mubr.f32.mxu0 0.0
    %2298 = vmatmul.mubr.f32.gmra.mrb[0].mxu0 %v1474
    %v2299 = vpop.f32.mrb[0].mxu0
    %v2300 = vadd.f32 0.0, %v2299
    %v2301 = vpop.f32.mrb[0].mxu0
    %2302 = vmatprep.mubr.f32.mxu0 0.0
    %2303 = vmatmul.mubr.f32.gmra.mrb[0].mxu0 %v1477
    %v2304 = vpop.f32.mrb[0].mxu0
    %v2305 = vadd.f32 0.0, %v2304
    %v2306 = vpop.f32.mrb[0].mxu0
    %2307 = vmatprep.mubr.f32.mxu0 0.0
    %2308 = vmatmul.mubr.f32.gmra.mrb[0].mxu0 %v1480
    %v2309 = vpop.f32.mrb[0].mxu0
    %v2310 = vadd.f32 0.0, %v2309
    %v2311 = vpop.f32.mrb[0].mxu0
    %2312 = vmatprep.mubr.f32.mxu0 0.0
    %2313 = vmatmul.mubr.f32.gmra.mrb[0].mxu0 %v1483
    %v2314 = vpop.f32.mrb[0].mxu0
    %v2315 = vadd.f32 0.0, %v2314
    %v2316 = vpop.f32.mrb[0].mxu0
    %2317 = vmatprep.mubr.f32.mxu0 0.0
    %2318 = vmatmul.mubr.f32.gmra.mrb[0].mxu0 %v1486
    %v2319 = vpop.f32.mrb[0].mxu0
    %v2320 = vadd.f32 0.0, %v2319
    %v2321 = vpop.f32.mrb[0].mxu0
    %2322 = vmatprep.mubr.f32.mxu0 0.0
    %2323 = vmatmul.mubr.f32.gmra.mrb[0].mxu0 %v1489
    %v2324 = vpop.f32.mrb[0].mxu0
    %v2325 = vadd.f32 0.0, %v2324
    %v2326 = vpop.f32.mrb[0].mxu0
    %2327 = vmatprep.mubr.f32.mxu0 0.0
    %2328 = vmatmul.mubr.f32.gmra.mrb[0].mxu0 %v1492
    %v2329 = vpop.f32.mrb[0].mxu0
    %v2330 = vadd.f32 0.0, %v2329
    %v2331 = vpop.f32.mrb[0].mxu0
    %2332 = vmatprep.mubr.f32.mxu0 0.0
    %2333 = vmatmul.mubr.f32.gmra.mrb[0].mxu0 %v1495
    %v2334 = vpop.f32.mrb[0].mxu0
    %v2335 = vadd.f32 0.0, %v2334
    %v2336 = vpop.f32.mrb[0].mxu0
    %2337 = vdwg.mxu0
    %v2338 = vadd.f32 %v2290, %v2320
    %v2339 = vadd.f32 %v2295, %v2325
    %v2340 = vadd.f32 %v2338, %v1459
    %v2341 = vadd.f32 %v2339, %v1460
    %v2342 = vxor.u32 %v2340, 2147483648
    %v2343 = vxor.u32 %v2341, 2147483648
    %v2344 = vmul.f32 %v2342, 1.442695
    %v2345 = vpow.pop %v2344
    %v2346 = vmul.f32 %v2343, 1.442695
    %v2347 = vpow.pop %v2346
    %v2348 = vadd.f32 %v2345, 1.0
    %v2349 = vadd.f32 %v2347, 1.0
    %v2350 = vrcp.pop %v2348
    %v2351 = vmul.f32 1.0, %v2350
    %v2352 = vrcp.pop %v2349
    %v2353 = vmul.f32 1.0, %v2352
    %v2354 = vadd.f32 %v2300, %v2330
    %v2355 = vadd.f32 %v2305, %v2335
    %v2356 = vadd.f32 %v2354, %v1461
    %v2357 = vadd.f32 %v2355, %v1462
    %v2358 = vxor.u32 %v2356, 2147483648
    %v2359 = vxor.u32 %v2357, 2147483648
    %v2360 = vmul.f32 %v2358, 1.442695
    %v2361 = vpow.pop %v2360
    %v2362 = vmul.f32 %v2359, 1.442695
    %v2363 = vpow.pop %v2362
    %v2364 = vadd.f32 %v2361, 1.0
    %v2365 = vadd.f32 %v2363, 1.0
    %v2366 = vrcp.pop %v2364
    %v2367 = vmul.f32 1.0, %v2366
    %v2368 = vrcp.pop %v2365
    %v2369 = vmul.f32 1.0, %v2368
    %v2370 = vmul.f32 %v2367, %v2219
    %v2371 = vmul.f32 %v2369, %v2220
    %2372 = vmatprep.subr.mxu0 0.0
    %2373 = vmatpush1.msra.mxu0 %v2370
    %2374 = vmatprep.subr.mxu0 0.0
    %2375 = vmatpush1.msra.mxu0 %v2371
    %2376 = vmatprep.subr.mxu0 0.0
    %2377 = vmatpush1.msra.mxu0 0.0
    %2378 = vmatprep.subr.mxu0 0.0
    %2379 = vmatpush1.msra.mxu0 0.0
    %2380 = vmatprep.subr.mxu0 0.0
    %2381 = vmatpush1.msra.mxu0 0.0
    %2382 = vmatprep.subr.mxu0 0.0
    %2383 = vmatpush1.msra.mxu0 0.0
    %2384 = vmatprep.subr.mxu0 0.0
    %2385 = vmatpush1.msra.mxu0 0.0
    %2386 = vmatprep.subr.mxu0 0.0
    %2387 = vmatpush1.msra.mxu0 0.0
    %2388 = vmatprep.subr.mxu0 0.0
    %2389 = vmatpush1.msra.mxu0 0.0
    %2390 = vmatprep.subr.mxu0 0.0
    %2391 = vmatpush1.msra.mxu0 0.0
    %2392 = vmatprep.subr.mxu0 0.0
    %2393 = vmatpush1.msra.mxu0 0.0
    %2394 = vmatprep.subr.mxu0 0.0
    %2395 = vmatpush1.msra.mxu0 0.0
    %2396 = vmatprep.subr.mxu0 0.0
    %2397 = vmatpush1.msra.mxu0 0.0
    %2398 = vmatprep.subr.mxu0 0.0
    %2399 = vmatpush1.msra.mxu0 0.0
    %2400 = vmatprep.subr.mxu0 0.0
    %2401 = vmatpush1.msra.mxu0 0.0
    %2402 = vmatprep.subr.mxu0 0.0
    %2403 = vmatpush1.msra.mxu0 0.0
    %2404 = vmatprep.subr.mxu0 0.0
    %2405 = vmatpush1.msra.mxu0 0.0
    %2406 = vmatprep.subr.mxu0 0.0
    %2407 = vmatpush1.msra.mxu0 0.0
    %2408 = vmatprep.subr.mxu0 0.0
    %2409 = vmatpush1.msra.mxu0 0.0
    %2410 = vmatprep.subr.mxu0 0.0
    %2411 = vmatpush1.msra.mxu0 0.0
    %2412 = vmatprep.subr.mxu0 0.0
    %2413 = vmatpush1.msra.mxu0 0.0
    %2414 = vmatprep.subr.mxu0 0.0
    %2415 = vmatpush1.msra.mxu0 0.0
    %2416 = vmatprep.subr.mxu0 0.0
    %2417 = vmatpush1.msra.mxu0 0.0
    %2418 = vmatprep.subr.mxu0 0.0
    %2419 = vmatpush1.msra.mxu0 0.0
    %2420 = vmatprep.subr.mxu0 0.0
    %2421 = vmatpush1.msra.mxu0 0.0
    %2422 = vmatprep.subr.mxu0 0.0
    %2423 = vmatpush1.msra.mxu0 0.0
    %2424 = vmatprep.subr.mxu0 0.0
    %2425 = vmatpush1.msra.mxu0 0.0
    %2426 = vmatprep.subr.mxu0 0.0
    %2427 = vmatpush1.msra.mxu0 0.0
    %2428 = vmatprep.subr.mxu0 0.0
    %2429 = vmatpush1.msra.mxu0 0.0
    %2430 = vmatprep.subr.mxu0 0.0
    %2431 = vmatpush1.msra.mxu0 0.0
    %2432 = vmatprep.subr.mxu0 0.0
    %2433 = vmatpush1.msra.mxu0 0.0
    %2434 = vmatprep.subr.mxu0 0.0
    %2435 = vmatpush1.msra.mxu0 0.0
    %2436 = vmatprep.mubr.f32.mxu0 0.0
    %2437 = vmatmul.mubr.f32.gmra.mrb[0].mxu0 %v1647
    %v2438 = vpop.f32.mrb[0].mxu0
    %v2439 = vadd.f32 0.0, %v2438
    %v2440 = vpop.f32.mrb[0].mxu0
    %2441 = vmatprep.mubr.f32.mxu0 0.0
    %2442 = vmatmul.mubr.f32.gmra.mrb[0].mxu0 %v1650
    %v2443 = vpop.f32.mrb[0].mxu0
    %v2444 = vadd.f32 0.0, %v2443
    %v2445 = vpop.f32.mrb[0].mxu0
    %2446 = vdwg.mxu0
    %v2447 = vadd.f32 %v2310, %v2439
    %v2448 = vadd.f32 %v2315, %v2444
    %v2449 = vadd.f32 %v2447, %v1463
    %v2450 = vadd.f32 %v2448, %v1464
    %v2451 = vtanh.pop %v2449
    %v2452 = vtanh.pop %v2450
    %v2453 = vsub.f32 1.0, %v2351
    %v2454 = vsub.f32 1.0, %v2353
    %v2455 = vmul.f32 %v2453, %v2219
    %v2456 = vmul.f32 %v2454, %v2220
    %v2457 = vmul.f32 %v2351, %v2451
    %v2458 = vmul.f32 %v2353, %v2452
    %v2459 = vadd.f32 %v2455, %v2457
    %v2460 = vadd.f32 %v2456, %v2458
    %2461 = vst.msk [vmem:[#allocation2 + $0x30] sm:$0xff] %vm283, %v2459
    %2462 = vst.msk [vmem:[#allocation2 + $0x38] sm:$0xff] %vm283, %v2460
    %v2463 = vld [vmem:[#allocation2] sm:$0xff]
    %v2464 = vld [vmem:[#allocation2 + $0x8] sm:$0xff]
    %v2465 = vld [vmem:[#allocation2 + $0x10] sm:$0xff]
    %v2466 = vld [vmem:[#allocation2 + $0x18] sm:$0xff]
    %v2467 = vld [vmem:[#allocation2 + $0x20] sm:$0xff]
    %v2468 = vld [vmem:[#allocation2 + $0x28] sm:$0xff]
    %v2469 = vld [vmem:[#allocation2 + $0x30] sm:$0xff]
    %v2470 = vld [vmem:[#allocation2 + $0x38] sm:$0xff]
    %v2471 = vld [vmem:[%s10] sm:$0xff]
    %v2472 = vld [vmem:[%s10 + $0x8] sm:$0xff]
    %v2473 = vld [vmem:[%s11] sm:$0x1]
    %v2475 = vlaneseq
    %v2476 = vshrl.u32 %v2475, 7
    %v2477 = vsub.s32 0, %v2476
    %v2478 = vrot.slane %v2473, %v2477
    %v2481 = vsel %vm283, %v2463, 0
    %v2484 = vsel %vm283, %v2464, 0
    %v2487 = vsel %vm283, %v2465, 0
    %v2490 = vsel %vm283, %v2466, 0
    %v2493 = vsel %vm283, %v2467, 0
    %v2496 = vsel %vm283, %v2468, 0
    %v2499 = vsel %vm283, %v2469, 0
    %v2502 = vsel %vm283, %v2470, 0
    %2504 = vmatprep.subr.mxu0 0.0
    %2505 = vmatpush1.msra.mxu0 %v2471
    %2506 = vmatprep.subr.mxu0 0.0
    %2507 = vmatpush1.msra.mxu0 %v2472
    %2508 = vmatprep.subr.mxu0 0.0
    %2509 = vmatpush1.msra.mxu0 0.0
    %2510 = vmatprep.subr.mxu0 0.0
    %2511 = vmatpush1.msra.mxu0 0.0
    %2512 = vmatprep.subr.mxu0 0.0
    %2513 = vmatpush1.msra.mxu0 0.0
    %2514 = vmatprep.subr.mxu0 0.0
    %2515 = vmatpush1.msra.mxu0 0.0
    %2516 = vmatprep.subr.mxu0 0.0
    %2517 = vmatpush1.msra.mxu0 0.0
    %2518 = vmatprep.subr.mxu0 0.0
    %2519 = vmatpush1.msra.mxu0 0.0
    %2520 = vmatprep.subr.mxu0 0.0
    %2521 = vmatpush1.msra.mxu0 0.0
    %2522 = vmatprep.subr.mxu0 0.0
    %2523 = vmatpush1.msra.mxu0 0.0
    %2524 = vmatprep.subr.mxu0 0.0
    %2525 = vmatpush1.msra.mxu0 0.0
    %2526 = vmatprep.subr.mxu0 0.0
    %2527 = vmatpush1.msra.mxu0 0.0
    %2528 = vmatprep.subr.mxu0 0.0
    %2529 = vmatpush1.msra.mxu0 0.0
    %2530 = vmatprep.subr.mxu0 0.0
    %2531 = vmatpush1.msra.mxu0 0.0
    %2532 = vmatprep.subr.mxu0 0.0
    %2533 = vmatpush1.msra.mxu0 0.0
    %2534 = vmatprep.subr.mxu0 0.0
    %2535 = vmatpush1.msra.mxu0 0.0
    %2536 = vmatprep.subr.mxu0 0.0
    %2537 = vmatpush1.msra.mxu0 0.0
    %2538 = vmatprep.subr.mxu0 0.0
    %2539 = vmatpush1.msra.mxu0 0.0
    %2540 = vmatprep.subr.mxu0 0.0
    %2541 = vmatpush1.msra.mxu0 0.0
    %2542 = vmatprep.subr.mxu0 0.0
    %2543 = vmatpush1.msra.mxu0 0.0
    %2544 = vmatprep.subr.mxu0 0.0
    %2545 = vmatpush1.msra.mxu0 0.0
    %2546 = vmatprep.subr.mxu0 0.0
    %2547 = vmatpush1.msra.mxu0 0.0
    %2548 = vmatprep.subr.mxu0 0.0
    %2549 = vmatpush1.msra.mxu0 0.0
    %2550 = vmatprep.subr.mxu0 0.0
    %2551 = vmatpush1.msra.mxu0 0.0
    %2552 = vmatprep.subr.mxu0 0.0
    %2553 = vmatpush1.msra.mxu0 0.0
    %2554 = vmatprep.subr.mxu0 0.0
    %2555 = vmatpush1.msra.mxu0 0.0
    %2556 = vmatprep.subr.mxu0 0.0
    %2557 = vmatpush1.msra.mxu0 0.0
    %2558 = vmatprep.subr.mxu0 0.0
    %2559 = vmatpush1.msra.mxu0 0.0
    %2560 = vmatprep.subr.mxu0 0.0
    %2561 = vmatpush1.msra.mxu0 0.0
    %2562 = vmatprep.subr.mxu0 0.0
    %2563 = vmatpush1.msra.mxu0 0.0
    %2564 = vmatprep.subr.mxu0 0.0
    %2565 = vmatpush1.msra.mxu0 0.0
    %2566 = vmatprep.subr.mxu0 0.0
    %2567 = vmatpush1.msra.mxu0 0.0
    %2568 = vmatprep.mubr.f32.mxu0 0.0
    %2569 = vmatmul.mubr.f32.gmra.mrb[0].mxu0 %v2481
    %v2570 = vpop.f32.mrb[0].mxu0
    %v2571 = vpop.f32.mrb[0].mxu0
    %2572 = vmatprep.mubr.f32.mxu0 0.0
    %2573 = vmatmul.mubr.f32.gmra.mrb[0].mxu0 %v2484
    %v2574 = vpop.f32.mrb[0].mxu0
    %v2575 = vpop.f32.mrb[0].mxu0
    %2576 = vmatprep.mubr.f32.mxu0 0.0
    %2577 = vmatmul.mubr.f32.gmra.mrb[0].mxu0 %v2487
    %v2578 = vpop.f32.mrb[0].mxu0
    %v2579 = vpop.f32.mrb[0].mxu0
    %2580 = vmatprep.mubr.f32.mxu0 0.0
    %2581 = vmatmul.mubr.f32.gmra.mrb[0].mxu0 %v2490
    %v2582 = vpop.f32.mrb[0].mxu0
    %v2583 = vpop.f32.mrb[0].mxu0
    %2584 = vmatprep.mubr.f32.mxu0 0.0
    %2585 = vmatmul.mubr.f32.gmra.mrb[0].mxu0 %v2493
    %v2586 = vpop.f32.mrb[0].mxu0
    %v2587 = vpop.f32.mrb[0].mxu0
    %2588 = vmatprep.mubr.f32.mxu0 0.0
    %2589 = vmatmul.mubr.f32.gmra.mrb[0].mxu0 %v2496
    %v2590 = vpop.f32.mrb[0].mxu0
    %v2591 = vpop.f32.mrb[0].mxu0
    %2592 = vmatprep.mubr.f32.mxu0 0.0
    %2593 = vmatmul.mubr.f32.gmra.mrb[0].mxu0 %v2499
    %v2594 = vpop.f32.mrb[0].mxu0
    %v2595 = vadd.f32 %v2478, %v2594
    %v2596 = vpop.f32.mrb[0].mxu0
    %2597 = vmatprep.mubr.f32.mxu0 0.0
    %2598 = vmatmul.mubr.f32.gmra.mrb[0].mxu0 %v2502
    %v2599 = vpop.f32.mrb[0].mxu0
    %v2600 = vadd.f32 %v2478, %v2599
    %v2601 = vpop.f32.mrb[0].mxu0
    %2602 = vdwg.mxu0
    %v2603 = vld [vmem:[%s12] sm:$0xff]
    %v2604 = vld [vmem:[%s12 + $0x8] sm:$0xff]
    %v2605 = vld [vmem:[%s13] sm:$0x1]
    %v2607 = vlaneseq
    %v2608 = vshrl.u32 %v2607, 7
    %v2609 = vsub.s32 0, %v2608
    %v2610 = vrot.slane %v2605, %v2609
    %2612 = vmatprep.subr.mxu0 0.0
    %2613 = vmatpush1.msra.mxu0 %v2603
    %2614 = vmatprep.subr.mxu0 0.0
    %2615 = vmatpush1.msra.mxu0 %v2604
    %2616 = vmatprep.subr.mxu0 0.0
    %2617 = vmatpush1.msra.mxu0 0.0
    %2618 = vmatprep.subr.mxu0 0.0
    %2619 = vmatpush1.msra.mxu0 0.0
    %2620 = vmatprep.subr.mxu0 0.0
    %2621 = vmatpush1.msra.mxu0 0.0
    %2622 = vmatprep.subr.mxu0 0.0
    %2623 = vmatpush1.msra.mxu0 0.0
    %2624 = vmatprep.subr.mxu0 0.0
    %2625 = vmatpush1.msra.mxu0 0.0
    %2626 = vmatprep.subr.mxu0 0.0
    %2627 = vmatpush1.msra.mxu0 0.0
    %2628 = vmatprep.subr.mxu0 0.0
    %2629 = vmatpush1.msra.mxu0 0.0
    %2630 = vmatprep.subr.mxu0 0.0
    %2631 = vmatpush1.msra.mxu0 0.0
    %2632 = vmatprep.subr.mxu0 0.0
    %2633 = vmatpush1.msra.mxu0 0.0
    %2634 = vmatprep.subr.mxu0 0.0
    %2635 = vmatpush1.msra.mxu0 0.0
    %2636 = vmatprep.subr.mxu0 0.0
    %2637 = vmatpush1.msra.mxu0 0.0
    %2638 = vmatprep.subr.mxu0 0.0
    %2639 = vmatpush1.msra.mxu0 0.0
    %2640 = vmatprep.subr.mxu0 0.0
    %2641 = vmatpush1.msra.mxu0 0.0
    %2642 = vmatprep.subr.mxu0 0.0
    %2643 = vmatpush1.msra.mxu0 0.0
    %2644 = vmatprep.subr.mxu0 0.0
    %2645 = vmatpush1.msra.mxu0 0.0
    %2646 = vmatprep.subr.mxu0 0.0
    %2647 = vmatpush1.msra.mxu0 0.0
    %2648 = vmatprep.subr.mxu0 0.0
    %2649 = vmatpush1.msra.mxu0 0.0
    %2650 = vmatprep.subr.mxu0 0.0
    %2651 = vmatpush1.msra.mxu0 0.0
    %2652 = vmatprep.subr.mxu0 0.0
    %2653 = vmatpush1.msra.mxu0 0.0
    %2654 = vmatprep.subr.mxu0 0.0
    %2655 = vmatpush1.msra.mxu0 0.0
    %2656 = vmatprep.subr.mxu0 0.0
    %2657 = vmatpush1.msra.mxu0 0.0
    %2658 = vmatprep.subr.mxu0 0.0
    %2659 = vmatpush1.msra.mxu0 0.0
    %2660 = vmatprep.subr.mxu0 0.0
    %2661 = vmatpush1.msra.mxu0 0.0
    %2662 = vmatprep.subr.mxu0 0.0
    %2663 = vmatpush1.msra.mxu0 0.0
    %2664 = vmatprep.subr.mxu0 0.0
    %2665 = vmatpush1.msra.mxu0 0.0
    %2666 = vmatprep.subr.mxu0 0.0
    %2667 = vmatpush1.msra.mxu0 0.0
    %2668 = vmatprep.subr.mxu0 0.0
    %2669 = vmatpush1.msra.mxu0 0.0
    %2670 = vmatprep.subr.mxu0 0.0
    %2671 = vmatpush1.msra.mxu0 0.0
    %2672 = vmatprep.subr.mxu0 0.0
    %2673 = vmatpush1.msra.mxu0 0.0
    %2674 = vmatprep.subr.mxu0 0.0
    %2675 = vmatpush1.msra.mxu0 0.0
    %2676 = vmatprep.mubr.f32.mxu0 0.0
    %2677 = vmatmul.mubr.f32.gmra.mrb[0].mxu0 %v2481
    %v2678 = vpop.f32.mrb[0].mxu0
    %v2679 = vpop.f32.mrb[0].mxu0
    %2680 = vmatprep.mubr.f32.mxu0 0.0
    %2681 = vmatmul.mubr.f32.gmra.mrb[0].mxu0 %v2484
    %v2682 = vpop.f32.mrb[0].mxu0
    %v2683 = vpop.f32.mrb[0].mxu0
    %2684 = vmatprep.mubr.f32.mxu0 0.0
    %2685 = vmatmul.mubr.f32.gmra.mrb[0].mxu0 %v2487
    %v2686 = vpop.f32.mrb[0].mxu0
    %v2687 = vpop.f32.mrb[0].mxu0
    %2688 = vmatprep.mubr.f32.mxu0 0.0
    %2689 = vmatmul.mubr.f32.gmra.mrb[0].mxu0 %v2490
    %v2690 = vpop.f32.mrb[0].mxu0
    %v2691 = vpop.f32.mrb[0].mxu0
    %2692 = vmatprep.mubr.f32.mxu0 0.0
    %2693 = vmatmul.mubr.f32.gmra.mrb[0].mxu0 %v2493
    %v2694 = vpop.f32.mrb[0].mxu0
    %v2695 = vpop.f32.mrb[0].mxu0
    %2696 = vmatprep.mubr.f32.mxu0 0.0
    %2697 = vmatmul.mubr.f32.gmra.mrb[0].mxu0 %v2496
    %v2698 = vpop.f32.mrb[0].mxu0
    %v2699 = vpop.f32.mrb[0].mxu0
    %2700 = vmatprep.mubr.f32.mxu0 0.0
    %2701 = vmatmul.mubr.f32.gmra.mrb[0].mxu0 %v2499
    %v2702 = vpop.f32.mrb[0].mxu0
    %v2703 = vadd.f32 %v2610, %v2702
    %v2704 = vpop.f32.mrb[0].mxu0
    %2705 = vmatprep.mubr.f32.mxu0 0.0
    %2706 = vmatmul.mubr.f32.gmra.mrb[0].mxu0 %v2502
    %v2707 = vpop.f32.mrb[0].mxu0
    %v2708 = vadd.f32 %v2610, %v2707
    %v2709 = vpop.f32.mrb[0].mxu0
    %2710 = vdwg.mxu0
    %v2711 = vld [vmem:[%s14] sm:$0xff]
    %v2712 = vld [vmem:[%s14 + $0x8] sm:$0xff]
    %v2713 = vld [vmem:[%s15] sm:$0x1]
    %v2715 = vlaneseq
    %v2716 = vshrl.u32 %v2715, 7
    %v2717 = vsub.s32 0, %v2716
    %v2718 = vrot.slane %v2713, %v2717
    %2720 = vmatprep.subr.mxu0 0.0
    %2721 = vmatpush1.msra.mxu0 %v2711
    %2722 = vmatprep.subr.mxu0 0.0
    %2723 = vmatpush1.msra.mxu0 %v2712
    %2724 = vmatprep.subr.mxu0 0.0
    %2725 = vmatpush1.msra.mxu0 0.0
    %2726 = vmatprep.subr.mxu0 0.0
    %2727 = vmatpush1.msra.mxu0 0.0
    %2728 = vmatprep.subr.mxu0 0.0
    %2729 = vmatpush1.msra.mxu0 0.0
    %2730 = vmatprep.subr.mxu0 0.0
    %2731 = vmatpush1.msra.mxu0 0.0
    %2732 = vmatprep.subr.mxu0 0.0
    %2733 = vmatpush1.msra.mxu0 0.0
    %2734 = vmatprep.subr.mxu0 0.0
    %2735 = vmatpush1.msra.mxu0 0.0
    %2736 = vmatprep.subr.mxu0 0.0
    %2737 = vmatpush1.msra.mxu0 0.0
    %2738 = vmatprep.subr.mxu0 0.0
    %2739 = vmatpush1.msra.mxu0 0.0
    %2740 = vmatprep.subr.mxu0 0.0
    %2741 = vmatpush1.msra.mxu0 0.0
    %2742 = vmatprep.subr.mxu0 0.0
    %2743 = vmatpush1.msra.mxu0 0.0
    %2744 = vmatprep.subr.mxu0 0.0
    %2745 = vmatpush1.msra.mxu0 0.0
    %2746 = vmatprep.subr.mxu0 0.0
    %2747 = vmatpush1.msra.mxu0 0.0
    %2748 = vmatprep.subr.mxu0 0.0
    %2749 = vmatpush1.msra.mxu0 0.0
    %2750 = vmatprep.subr.mxu0 0.0
    %2751 = vmatpush1.msra.mxu0 0.0
    %2752 = vmatprep.subr.mxu0 0.0
    %2753 = vmatpush1.msra.mxu0 0.0
    %2754 = vmatprep.subr.mxu0 0.0
    %2755 = vmatpush1.msra.mxu0 0.0
    %2756 = vmatprep.subr.mxu0 0.0
    %2757 = vmatpush1.msra.mxu0 0.0
    %2758 = vmatprep.subr.mxu0 0.0
    %2759 = vmatpush1.msra.mxu0 0.0
    %2760 = vmatprep.subr.mxu0 0.0
    %2761 = vmatpush1.msra.mxu0 0.0
    %2762 = vmatprep.subr.mxu0 0.0
    %2763 = vmatpush1.msra.mxu0 0.0
    %2764 = vmatprep.subr.mxu0 0.0
    %2765 = vmatpush1.msra.mxu0 0.0
    %2766 = vmatprep.subr.mxu0 0.0
    %2767 = vmatpush1.msra.mxu0 0.0
    %2768 = vmatprep.subr.mxu0 0.0
    %2769 = vmatpush1.msra.mxu0 0.0
    %2770 = vmatprep.subr.mxu0 0.0
    %2771 = vmatpush1.msra.mxu0 0.0
    %2772 = vmatprep.subr.mxu0 0.0
    %2773 = vmatpush1.msra.mxu0 0.0
    %2774 = vmatprep.subr.mxu0 0.0
    %2775 = vmatpush1.msra.mxu0 0.0
    %2776 = vmatprep.subr.mxu0 0.0
    %2777 = vmatpush1.msra.mxu0 0.0
    %2778 = vmatprep.subr.mxu0 0.0
    %2779 = vmatpush1.msra.mxu0 0.0
    %2780 = vmatprep.subr.mxu0 0.0
    %2781 = vmatpush1.msra.mxu0 0.0
    %2782 = vmatprep.subr.mxu0 0.0
    %2783 = vmatpush1.msra.mxu0 0.0
    %2784 = vmatprep.mubr.f32.mxu0 0.0
    %2785 = vmatmul.mubr.f32.gmra.mrb[0].mxu0 %v2481
    %v2786 = vpop.f32.mrb[0].mxu0
    %v2787 = vpop.f32.mrb[0].mxu0
    %2788 = vmatprep.mubr.f32.mxu0 0.0
    %2789 = vmatmul.mubr.f32.gmra.mrb[0].mxu0 %v2484
    %v2790 = vpop.f32.mrb[0].mxu0
    %v2791 = vpop.f32.mrb[0].mxu0
    %2792 = vmatprep.mubr.f32.mxu0 0.0
    %2793 = vmatmul.mubr.f32.gmra.mrb[0].mxu0 %v2487
    %v2794 = vpop.f32.mrb[0].mxu0
    %v2795 = vpop.f32.mrb[0].mxu0
    %2796 = vmatprep.mubr.f32.mxu0 0.0
    %2797 = vmatmul.mubr.f32.gmra.mrb[0].mxu0 %v2490
    %v2798 = vpop.f32.mrb[0].mxu0
    %v2799 = vpop.f32.mrb[0].mxu0
    %2800 = vmatprep.mubr.f32.mxu0 0.0
    %2801 = vmatmul.mubr.f32.gmra.mrb[0].mxu0 %v2493
    %v2802 = vpop.f32.mrb[0].mxu0
    %v2803 = vpop.f32.mrb[0].mxu0
    %2804 = vmatprep.mubr.f32.mxu0 0.0
    %2805 = vmatmul.mubr.f32.gmra.mrb[0].mxu0 %v2496
    %v2806 = vpop.f32.mrb[0].mxu0
    %v2807 = vpop.f32.mrb[0].mxu0
    %2808 = vmatprep.mubr.f32.mxu0 0.0
    %2809 = vmatmul.mubr.f32.gmra.mrb[0].mxu0 %v2499
    %v2810 = vpop.f32.mrb[0].mxu0
    %v2811 = vadd.f32 %v2718, %v2810
    %v2812 = vpop.f32.mrb[0].mxu0
    %2813 = vmatprep.mubr.f32.mxu0 0.0
    %2814 = vmatmul.mubr.f32.gmra.mrb[0].mxu0 %v2502
    %v2815 = vpop.f32.mrb[0].mxu0
    %v2816 = vadd.f32 %v2718, %v2815
    %v2817 = vpop.f32.mrb[0].mxu0
    %2818 = vdwg.mxu0
    %v2820 = vsel %vm283, %v2595, 0
    %v2823 = vsel %vm283, %v2600, 0
    %v2826 = vsel %vm283, %v2703, 0
    %v2829 = vsel %vm283, %v2708, 0
    %2831 = vmatprep.subr.mxu0 0.0
    %2832 = vmatpush1.xpose.msra.mxu0 %v2826
    %2833 = vmatprep.subr.mxu0 0.0
    %2834 = vmatpush1.xpose.msra.mxu0 %v2829
    %2835 = vmatprep.subr.mxu0 0.0
    %2836 = vmatpush1.xpose.msra.mxu0 0.0
    %2837 = vmatprep.subr.mxu0 0.0
    %2838 = vmatpush1.xpose.msra.mxu0 0.0
    %2839 = vmatprep.subr.mxu0 0.0
    %2840 = vmatpush1.xpose.msra.mxu0 0.0
    %2841 = vmatprep.subr.mxu0 0.0
    %2842 = vmatpush1.xpose.msra.mxu0 0.0
    %2843 = vmatprep.subr.mxu0 0.0
    %2844 = vmatpush1.xpose.msra.mxu0 0.0
    %2845 = vmatprep.subr.mxu0 0.0
    %2846 = vmatpush1.xpose.msra.mxu0 0.0
    %2847 = vmatprep.subr.mxu0 0.0
    %2848 = vmatpush1.xpose.msra.mxu0 0.0
    %2849 = vmatprep.subr.mxu0 0.0
    %2850 = vmatpush1.xpose.msra.mxu0 0.0
    %2851 = vmatprep.subr.mxu0 0.0
    %2852 = vmatpush1.xpose.msra.mxu0 0.0
    %2853 = vmatprep.subr.mxu0 0.0
    %2854 = vmatpush1.xpose.msra.mxu0 0.0
    %2855 = vmatprep.subr.mxu0 0.0
    %2856 = vmatpush1.xpose.msra.mxu0 0.0
    %2857 = vmatprep.subr.mxu0 0.0
    %2858 = vmatpush1.xpose.msra.mxu0 0.0
    %2859 = vmatprep.subr.mxu0 0.0
    %2860 = vmatpush1.xpose.msra.mxu0 0.0
    %2861 = vmatprep.subr.mxu0 0.0
    %2862 = vmatpush1.xpose.msra.mxu0 0.0
    %2863 = vmatprep.subr.mxu0 0.0
    %2864 = vmatpush1.xpose.msra.mxu0 0.0
    %2865 = vmatprep.subr.mxu0 0.0
    %2866 = vmatpush1.xpose.msra.mxu0 0.0
    %2867 = vmatprep.subr.mxu0 0.0
    %2868 = vmatpush1.xpose.msra.mxu0 0.0
    %2869 = vmatprep.subr.mxu0 0.0
    %2870 = vmatpush1.xpose.msra.mxu0 0.0
    %2871 = vmatprep.subr.mxu0 0.0
    %2872 = vmatpush1.xpose.msra.mxu0 0.0
    %2873 = vmatprep.subr.mxu0 0.0
    %2874 = vmatpush1.xpose.msra.mxu0 0.0
    %2875 = vmatprep.subr.mxu0 0.0
    %2876 = vmatpush1.xpose.msra.mxu0 0.0
    %2877 = vmatprep.subr.mxu0 0.0
    %2878 = vmatpush1.xpose.msra.mxu0 0.0
    %2879 = vmatprep.subr.mxu0 0.0
    %2880 = vmatpush1.xpose.msra.mxu0 0.0
    %2881 = vmatprep.subr.mxu0 0.0
    %2882 = vmatpush1.xpose.msra.mxu0 0.0
    %2883 = vmatprep.subr.mxu0 0.0
    %2884 = vmatpush1.xpose.msra.mxu0 0.0
    %2885 = vmatprep.subr.mxu0 0.0
    %2886 = vmatpush1.xpose.msra.mxu0 0.0
    %2887 = vmatprep.subr.mxu0 0.0
    %2888 = vmatpush1.xpose.msra.mxu0 0.0
    %2889 = vmatprep.subr.mxu0 0.0
    %2890 = vmatpush1.xpose.msra.mxu0 0.0
    %2891 = vmatprep.subr.mxu0 0.0
    %2892 = vmatpush1.xpose.msra.mxu0 0.0
    %2893 = vmatprep.subr.mxu0 0.0
    %2894 = vmatpush1.xpose.msra.mxu0 0.0
    %2895 = vmatprep.mubr.f32.mxu0 0.0
    %2896 = vmatmul.mubr.f32.gmra.mrb[0].mxu0 %v2820
    %v2897 = vpop.f32.mrb[0].mxu0
    %v2898 = vadd.f32 0.0, %v2897
    %v2899 = vpop.f32.mrb[0].mxu0
    %2900 = vmatprep.mubr.f32.mxu0 0.0
    %2901 = vmatmul.mubr.f32.gmra.mrb[0].mxu0 %v2823
    %v2902 = vpop.f32.mrb[0].mxu0
    %v2903 = vadd.f32 0.0, %v2902
    %v2904 = vpop.f32.mrb[0].mxu0
    %2905 = vdwg.mxu0
    %v2906 = vmul.f32 %v2898, 0.25
    %v2907 = vmul.f32 %v2903, 0.25
    %v2908 = vsel %vm283, %v2906, -inf
    %2909 = vmax.xlane.f32.xlu0 %v2908
    %v2910 = vpop.xlane.xlu0 %2909
    %v2911 = vsel %vm283, %v2907, -inf
    %2912 = vmax.xlane.f32.xlu0 %v2911
    %v2913 = vpop.xlane.xlu0 %2912
    %v2914 = vsub.f32 %v2906, %v2910
    %v2915 = vsub.f32 %v2907, %v2913
    %v2916 = vmul.f32 %v2914, 1.442695
    %v2917 = vpow.pop %v2916
    %v2918 = vmul.f32 %v2915, 1.442695
    %v2919 = vpow.pop %v2918
    %v2920 = vsel %vm283, %v2917, 0.0
    %2921 = vadd.xlane.f32.xlu0 %v2920
    %v2922 = vpop.xlane.xlu0 %2921
    %v2923 = vsel %vm283, %v2919, 0.0
    %2924 = vadd.xlane.f32.xlu0 %v2923
    %v2925 = vpop.xlane.xlu0 %2924
    %v2926 = vrcp.pop %v2922
    %v2927 = vmul.f32 %v2917, %v2926
    %v2928 = vrcp.pop %v2925
    %v2929 = vmul.f32 %v2919, %v2928
    %v2931 = vsel %vm283, %v2927, 0
    %v2934 = vsel %vm283, %v2929, 0
    %2936 = vmatprep.subr.mxu0 0.0
    %2937 = vmatpush1.msra.mxu0 %v2811
    %2938 = vmatprep.subr.mxu0 0.0
    %2939 = vmatpush1.msra.mxu0 %v2816
    %2940 = vmatprep.subr.mxu0 0.0
    %2941 = vmatpush1.msra.mxu0 0.0
    %2942 = vmatprep.subr.mxu0 0.0
    %2943 = vmatpush1.msra.mxu0 0.0
    %2944 = vmatprep.subr.mxu0 0.0
    %2945 = vmatpush1.msra.mxu0 0.0
    %2946 = vmatprep.subr.mxu0 0.0
    %2947 = vmatpush1.msra.mxu0 0.0
    %2948 = vmatprep.subr.mxu0 0.0
    %2949 = vmatpush1.msra.mxu0 0.0
    %2950 = vmatprep.subr.mxu0 0.0
    %2951 = vmatpush1.msra.mxu0 0.0
    %2952 = vmatprep.subr.mxu0 0.0
    %2953 = vmatpush1.msra.mxu0 0.0
    %2954 = vmatprep.subr.mxu0 0.0
    %2955 = vmatpush1.msra.mxu0 0.0
    %2956 = vmatprep.subr.mxu0 0.0
    %2957 = vmatpush1.msra.mxu0 0.0
    %2958 = vmatprep.subr.mxu0 0.0
    %2959 = vmatpush1.msra.mxu0 0.0
    %2960 = vmatprep.subr.mxu0 0.0
    %2961 = vmatpush1.msra.mxu0 0.0
    %2962 = vmatprep.subr.mxu0 0.0
    %2963 = vmatpush1.msra.mxu0 0.0
    %2964 = vmatprep.subr.mxu0 0.0
    %2965 = vmatpush1.msra.mxu0 0.0
    %2966 = vmatprep.subr.mxu0 0.0
    %2967 = vmatpush1.msra.mxu0 0.0
    %2968 = vmatprep.subr.mxu0 0.0
    %2969 = vmatpush1.msra.mxu0 0.0
    %2970 = vmatprep.subr.mxu0 0.0
    %2971 = vmatpush1.msra.mxu0 0.0
    %2972 = vmatprep.subr.mxu0 0.0
    %2973 = vmatpush1.msra.mxu0 0.0
    %2974 = vmatprep.subr.mxu0 0.0
    %2975 = vmatpush1.msra.mxu0 0.0
    %2976 = vmatprep.subr.mxu0 0.0
    %2977 = vmatpush1.msra.mxu0 0.0
    %2978 = vmatprep.subr.mxu0 0.0
    %2979 = vmatpush1.msra.mxu0 0.0
    %2980 = vmatprep.subr.mxu0 0.0
    %2981 = vmatpush1.msra.mxu0 0.0
    %2982 = vmatprep.subr.mxu0 0.0
    %2983 = vmatpush1.msra.mxu0 0.0
    %2984 = vmatprep.subr.mxu0 0.0
    %2985 = vmatpush1.msra.mxu0 0.0
    %2986 = vmatprep.subr.mxu0 0.0
    %2987 = vmatpush1.msra.mxu0 0.0
    %2988 = vmatprep.subr.mxu0 0.0
    %2989 = vmatpush1.msra.mxu0 0.0
    %2990 = vmatprep.subr.mxu0 0.0
    %2991 = vmatpush1.msra.mxu0 0.0
    %2992 = vmatprep.subr.mxu0 0.0
    %2993 = vmatpush1.msra.mxu0 0.0
    %2994 = vmatprep.subr.mxu0 0.0
    %2995 = vmatpush1.msra.mxu0 0.0
    %2996 = vmatprep.subr.mxu0 0.0
    %2997 = vmatpush1.msra.mxu0 0.0
    %2998 = vmatprep.subr.mxu0 0.0
    %2999 = vmatpush1.msra.mxu0 0.0
    %3000 = vmatprep.mubr.f32.mxu0 0.0
    %3001 = vmatmul.mubr.f32.gmra.mrb[0].mxu0 %v2931
    %v3002 = vpop.f32.mrb[0].mxu0
    %v3003 = vadd.f32 0.0, %v3002
    %v3004 = vpop.f32.mrb[0].mxu0
    %3005 = vmatprep.mubr.f32.mxu0 0.0
    %3006 = vmatmul.mubr.f32.gmra.mrb[0].mxu0 %v2934
    %v3007 = vpop.f32.mrb[0].mxu0
    %v3008 = vadd.f32 0.0, %v3007
    %v3009 = vpop.f32.mrb[0].mxu0
    %3010 = vdwg.mxu0
    %v3011 = vmul.f32 %v1290, %v3003
    %v3012 = vmul.f32 %v1290, %v3008
    %v3013 = vmul.f32 %v1293, %v2469
    %v3014 = vmul.f32 %v1293, %v2470
    %v3015 = vadd.f32 %v3011, %v3013
    %v3016 = vadd.f32 %v3012, %v3014
    %v3018 = vsel %vm283, %v1446, 0
    %3020 = vmatprep.subr.mxu0 0.0
    %3021 = vmatpush1.msra.mxu0 %v3015
    %3022 = vmatprep.subr.mxu0 0.0
    %3023 = vmatpush1.msra.mxu0 %v3016
    %3024 = vmatprep.subr.mxu0 0.0
    %3025 = vmatpush1.msra.mxu0 0.0
    %3026 = vmatprep.subr.mxu0 0.0
    %3027 = vmatpush1.msra.mxu0 0.0
    %3028 = vmatprep.subr.mxu0 0.0
    %3029 = vmatpush1.msra.mxu0 0.0
    %3030 = vmatprep.subr.mxu0 0.0
    %3031 = vmatpush1.msra.mxu0 0.0
    %3032 = vmatprep.subr.mxu0 0.0
    %3033 = vmatpush1.msra.mxu0 0.0
    %3034 = vmatprep.subr.mxu0 0.0
    %3035 = vmatpush1.msra.mxu0 0.0
    %3036 = vmatprep.subr.mxu0 0.0
    %3037 = vmatpush1.msra.mxu0 0.0
    %3038 = vmatprep.subr.mxu0 0.0
    %3039 = vmatpush1.msra.mxu0 0.0
    %3040 = vmatprep.subr.mxu0 0.0
    %3041 = vmatpush1.msra.mxu0 0.0
    %3042 = vmatprep.subr.mxu0 0.0
    %3043 = vmatpush1.msra.mxu0 0.0
    %3044 = vmatprep.subr.mxu0 0.0
    %3045 = vmatpush1.msra.mxu0 0.0
    %3046 = vmatprep.subr.mxu0 0.0
    %3047 = vmatpush1.msra.mxu0 0.0
    %3048 = vmatprep.subr.mxu0 0.0
    %3049 = vmatpush1.msra.mxu0 0.0
    %3050 = vmatprep.subr.mxu0 0.0
    %3051 = vmatpush1.msra.mxu0 0.0
    %3052 = vmatprep.subr.mxu0 0.0
    %3053 = vmatpush1.msra.mxu0 0.0
    %3054 = vmatprep.subr.mxu0 0.0
    %3055 = vmatpush1.msra.mxu0 0.0
    %3056 = vmatprep.subr.mxu0 0.0
    %3057 = vmatpush1.msra.mxu0 0.0
    %3058 = vmatprep.subr.mxu0 0.0
    %3059 = vmatpush1.msra.mxu0 0.0
    %3060 = vmatprep.subr.mxu0 0.0
    %3061 = vmatpush1.msra.mxu0 0.0
    %3062 = vmatprep.subr.mxu0 0.0
    %3063 = vmatpush1.msra.mxu0 0.0
    %3064 = vmatprep.subr.mxu0 0.0
    %3065 = vmatpush1.msra.mxu0 0.0
    %3066 = vmatprep.subr.mxu0 0.0
    %3067 = vmatpush1.msra.mxu0 0.0
    %3068 = vmatprep.subr.mxu0 0.0
    %3069 = vmatpush1.msra.mxu0 0.0
    %3070 = vmatprep.subr.mxu0 0.0
    %3071 = vmatpush1.msra.mxu0 0.0
    %3072 = vmatprep.subr.mxu0 0.0
    %3073 = vmatpush1.msra.mxu0 0.0
    %3074 = vmatprep.subr.mxu0 0.0
    %3075 = vmatpush1.msra.mxu0 0.0
    %3076 = vmatprep.subr.mxu0 0.0
    %3077 = vmatpush1.msra.mxu0 0.0
    %3078 = vmatprep.subr.mxu0 0.0
    %3079 = vmatpush1.msra.mxu0 0.0
    %3080 = vmatprep.subr.mxu0 0.0
    %3081 = vmatpush1.msra.mxu0 0.0
    %3082 = vmatprep.subr.mxu0 0.0
    %3083 = vmatpush1.msra.mxu0 0.0
    %3084 = vmatprep.mubr.f32.mxu0 0.0
    %3085 = vmatmul.mubr.f32.gmra.mrb[0].mxu0 %v3018
    %v3086 = vpop.f32.mrb[0].mxu0
    %v3087 = vadd.f32 0.0, %v3086
    %v3088 = vpop.f32.mrb[0].mxu0
    %3089 = vdwg.mxu0
    %v3090 = vld [vmem:[%s1369] sm:$0xff]
    %v3092 = vsel %vm80, %v3090, 0
    %3094 = vmatprep.subr.mxu0 0.0
    %3095 = vmatpush1.msra.mxu0 %v3087
    %3096 = vmatprep.subr.mxu0 0.0
    %3097 = vmatpush1.msra.mxu0 0.0
    %3098 = vmatprep.subr.mxu0 0.0
    %3099 = vmatpush1.msra.mxu0 0.0
    %3100 = vmatprep.subr.mxu0 0.0
    %3101 = vmatpush1.msra.mxu0 0.0
    %3102 = vmatprep.subr.mxu0 0.0
    %3103 = vmatpush1.msra.mxu0 0.0
    %3104 = vmatprep.subr.mxu0 0.0
    %3105 = vmatpush1.msra.mxu0 0.0
    %3106 = vmatprep.subr.mxu0 0.0
    %3107 = vmatpush1.msra.mxu0 0.0
    %3108 = vmatprep.subr.mxu0 0.0
    %3109 = vmatpush1.msra.mxu0 0.0
    %3110 = vmatprep.subr.mxu0 0.0
    %3111 = vmatpush1.msra.mxu0 0.0
    %3112 = vmatprep.subr.mxu0 0.0
    %3113 = vmatpush1.msra.mxu0 0.0
    %3114 = vmatprep.subr.mxu0 0.0
    %3115 = vmatpush1.msra.mxu0 0.0
    %3116 = vmatprep.subr.mxu0 0.0
    %3117 = vmatpush1.msra.mxu0 0.0
    %3118 = vmatprep.subr.mxu0 0.0
    %3119 = vmatpush1.msra.mxu0 0.0
    %3120 = vmatprep.subr.mxu0 0.0
    %3121 = vmatpush1.msra.mxu0 0.0
    %3122 = vmatprep.subr.mxu0 0.0
    %3123 = vmatpush1.msra.mxu0 0.0
    %3124 = vmatprep.subr.mxu0 0.0
    %3125 = vmatpush1.msra.mxu0 0.0
    %3126 = vmatprep.subr.mxu0 0.0
    %3127 = vmatpush1.msra.mxu0 0.0
    %3128 = vmatprep.subr.mxu0 0.0
    %3129 = vmatpush1.msra.mxu0 0.0
    %3130 = vmatprep.subr.mxu0 0.0
    %3131 = vmatpush1.msra.mxu0 0.0
    %3132 = vmatprep.subr.mxu0 0.0
    %3133 = vmatpush1.msra.mxu0 0.0
    %3134 = vmatprep.subr.mxu0 0.0
    %3135 = vmatpush1.msra.mxu0 0.0
    %3136 = vmatprep.subr.mxu0 0.0
    %3137 = vmatpush1.msra.mxu0 0.0
    %3138 = vmatprep.subr.mxu0 0.0
    %3139 = vmatpush1.msra.mxu0 0.0
    %3140 = vmatprep.subr.mxu0 0.0
    %3141 = vmatpush1.msra.mxu0 0.0
    %3142 = vmatprep.subr.mxu0 0.0
    %3143 = vmatpush1.msra.mxu0 0.0
    %3144 = vmatprep.subr.mxu0 0.0
    %3145 = vmatpush1.msra.mxu0 0.0
    %3146 = vmatprep.subr.mxu0 0.0
    %3147 = vmatpush1.msra.mxu0 0.0
    %3148 = vmatprep.subr.mxu0 0.0
    %3149 = vmatpush1.msra.mxu0 0.0
    %3150 = vmatprep.subr.mxu0 0.0
    %3151 = vmatpush1.msra.mxu0 0.0
    %3152 = vmatprep.subr.mxu0 0.0
    %3153 = vmatpush1.msra.mxu0 0.0
    %3154 = vmatprep.subr.mxu0 0.0
    %3155 = vmatpush1.msra.mxu0 0.0
    %3156 = vmatprep.subr.mxu0 0.0
    %3157 = vmatpush1.msra.mxu0 0.0
    %3158 = vmatprep.mubr.f32.mxu0 0.0
    %3159 = vmatmul.mubr.f32.gmra.mrb[0].mxu0 %v3092
    %v3160 = vpop.f32.mrb[0].mxu0
    %v3161 = vadd.f32 0.0, %v3160
    %v3162 = vpop.f32.mrb[0].mxu0
    %3163 = vdwg.mxu0
    %vm3164 = vcmp.ge.f32.partialorder %v3161, 0.0
    %v3165 = vmul.f32 %v3161, 0.22916667
    %v3166 = vsel %vm3164, %v3161, %v3165
    %3167 = vst.msk [vmem:[#allocation4] sm:$0xff] %vm283, %v3166
    // Predicated region
    $region70: #{tgsan_forward.1} parent=1 // pred_check
      _
    $region71: #{tgsan_forward.1} parent=1 // pred_check_branch
      %3169 = sbr.rel (0) target = $region73
    $region72: #{tgsan_forward.1} parent=1 // pred_region
      %s3171 = ssub.s32 128, 128
      %3172 = vsyncadd [#allocation5], %s3171
      %s3174 = sshll.u32 [#allocation4], 4
      %s3175 = int_to_ptr.vmem [resolvable:$true] %s3174
      %3177 = dma.vmem_to_hbm [thread:$0]  %s3175, 128, %s17, [#allocation5]
    $region73: #{tgsan_forward.1} parent=1 // pred_fallthru
      _
    // Predicated region
    $region74: #{tgsan_forward.1} parent=1 // pred_check
      _
    $region75: #{tgsan_forward.1} parent=1 // pred_check_branch
      %3179 = sbr.rel (0) target = $region77
    $region76: #{tgsan_forward.1} parent=1 // pred_region
      %3180 = dma.done [#allocation5], 128
    $region77: #{tgsan_forward.1} parent=1 // pred_fallthru
      _
    %3181 = vsyncpa [#allocation5], 1

</llo_original>
